<compile_context>
chip_gen: v7x
topology: tpu7x:2x2x1
jax: 0.10.0
libtpu: 0.0.40
codegen_flags: <defaults>
</compile_context>

<pallas_src>
import jax
import jax.numpy as jnp
from jax import lax
from jax.experimental import pallas as pl
from jax.experimental.pallas import tpu as pltpu


# -----------------------------------------------------------------------------
# helpers
# -----------------------------------------------------------------------------
def _round_up(x, m):
    return ((x + m - 1) // m) * m


def _pick_row_tile(n, cap=512):
    # n is a multiple of 8; pick the largest tile <= cap that divides n.
    for t in (512, 256, 128, 64, 32, 16, 8):
        if t <= cap and n % t == 0:
            return t
    return n


# -----------------------------------------------------------------------------
# Kernel 1: tiled matmul + bias  (used for the hoisted gate projection)
#   x [N, K] @ w [K, M] + b [1, M] -> [N, M]
# -----------------------------------------------------------------------------
def _linear_kernel(x_ref, w_ref, b_ref, o_ref):
    o_ref[...] = (jnp.dot(x_ref[...], w_ref[...],
                          preferred_element_type=jnp.float32)
                  + b_ref[...])


def linear_pallas(x, w, b, row_tile=None):
    N, K = x.shape
    M = w.shape[1]
    if row_tile is None:
        row_tile = _pick_row_tile(N)
    grid = (N // row_tile,)
    return pl.pallas_call(
        _linear_kernel,
        out_shape=jax.ShapeDtypeStruct((N, M), jnp.float32),
        grid_spec=pltpu.PrefetchScalarGridSpec(
            num_scalar_prefetch=0,
            grid=grid,
            in_specs=[
                pl.BlockSpec((row_tile, K), lambda i: (i, 0)),
                pl.BlockSpec((K, M), lambda i: (0, 0)),
                pl.BlockSpec((1, M), lambda i: (0, 0)),
            ],
            out_specs=pl.BlockSpec((row_tile, M), lambda i: (i, 0)),
        ),
        compiler_params=pltpu.CompilerParams(
            dimension_semantics=("parallel",)),
    )(x, w, b.reshape(1, M))


# -----------------------------------------------------------------------------
# Kernel 2: final projection without concatenating the two LSTM directions
#   xa [N, H] @ wa [H, M] + xb [N, H] @ wb [H, M] + b [1, M] -> [N, M]
#   (M is zero-padded to a multiple of 128 so stores are lane-dense.)
# -----------------------------------------------------------------------------
def _linear2_kernel(xa_ref, xb_ref, wa_ref, wb_ref, b_ref, o_ref):
    o_ref[...] = (
        jnp.dot(xa_ref[...], wa_ref[...], preferred_element_type=jnp.float32)
        + jnp.dot(xb_ref[...], wb_ref[...], preferred_element_type=jnp.float32)
        + b_ref[...])


def linear2_pallas(xa, xb, wa, wb, b, row_tile=None):
    N, Ka = xa.shape
    Kb = xb.shape[1]
    M = wa.shape[1]
    if row_tile is None:
        row_tile = _pick_row_tile(N)
    grid = (N // row_tile,)
    return pl.pallas_call(
        _linear2_kernel,
        out_shape=jax.ShapeDtypeStruct((N, M), jnp.float32),
        grid_spec=pltpu.PrefetchScalarGridSpec(
            num_scalar_prefetch=0,
            grid=grid,
            in_specs=[
                pl.BlockSpec((row_tile, Ka), lambda i: (i, 0)),
                pl.BlockSpec((row_tile, Kb), lambda i: (i, 0)),
                pl.BlockSpec((Ka, M), lambda i: (0, 0)),
                pl.BlockSpec((Kb, M), lambda i: (0, 0)),
                pl.BlockSpec((1, M), lambda i: (0, 0)),
            ],
            out_specs=pl.BlockSpec((row_tile, M), lambda i: (i, 0)),
        ),
        compiler_params=pltpu.CompilerParams(
            dimension_semantics=("parallel",)),
    )(xa, xb, wa, wb, b.reshape(1, M))


# -----------------------------------------------------------------------------
# Kernel 3: time-tiled bidirectional LSTM recurrence with length masking.
#   gx       : [T_pad, B_pad, 8H]  precomputed x@Wih + b for both directions
#              (cols [0:4H]=forward gates at t, cols [4H:8H]=backward gates at t)
#   len_pad  : [B_pad, 1] int32
#   whh_cat  : [2H, 8H]  block-diagonal concat of Whh_f^T and Whh_b^T
# Returns out_f, out_b each [T_pad, B_pad, H]; out_b[t] is the backward-direction
# hidden state at time t (already in natural time order).
# -----------------------------------------------------------------------------
def bilstm_recurrence(gx, len_pad, whh_cat, H, Tt):
    T_pad, B_pad, _ = gx.shape
    nblk = T_pad // Tt

    def kernel(len_ref, gxf_ref, gxb_ref, whh_ref, outf_ref, outb_ref,
               hf_sc, cf_sc, hb_sc, cb_sc):
        s = pl.program_id(0)

        @pl.when(s == 0)
        def _():
            hf_sc[...] = jnp.zeros_like(hf_sc)
            cf_sc[...] = jnp.zeros_like(cf_sc)
            hb_sc[...] = jnp.zeros_like(hb_sc)
            cb_sc[...] = jnp.zeros_like(cb_sc)

        lengths = len_ref[...]            # [B_pad, 1] int32 (resident, const idx)
        whh = whh_ref[...]                # [2H, 8H] block-diagonal recurrent W

        def cell(gates, c):
            i = jax.nn.sigmoid(gates[:, 0 * H:1 * H])
            f = jax.nn.sigmoid(gates[:, 1 * H:2 * H])
            g = jnp.tanh(gates[:, 2 * H:3 * H])
            o = jax.nn.sigmoid(gates[:, 3 * H:4 * H])
            c_new = f * c + i * g
            h_new = o * jnp.tanh(c_new)
            return h_new, c_new

        def body(i, carry):
            h_f, c_f, h_b, c_b = carry
            t_f = s * Tt + i                 # forward time index
            t_b = T_pad - 1 - t_f            # backward time index
            # one 256-wide MXU push for both directions' recurrent matmul
            h_cat = jnp.concatenate([h_f, h_b], axis=-1)            # [B, 2H]
            gates_h = jnp.dot(h_cat, whh,
                              preferred_element_type=jnp.float32)   # [B, 8H]
            hf_new, cf_new = cell(gxf_ref[i] + gates_h[:, :4 * H], c_f)
            hb_new, cb_new = cell(gxb_ref[Tt - 1 - i] + gates_h[:, 4 * H:], c_b)

            m_f = t_f < lengths              # [B_pad, 1] bool
            m_b = t_b < lengths
            h_f = jnp.where(m_f, hf_new, h_f)
            c_f = jnp.where(m_f, cf_new, c_f)
            h_b = jnp.where(m_b, hb_new, h_b)
            c_b = jnp.where(m_b, cb_new, c_b)
            outf_ref[i] = jnp.where(m_f, hf_new, jnp.zeros_like(hf_new))
            outb_ref[Tt - 1 - i] = jnp.where(m_b, hb_new, jnp.zeros_like(hb_new))
            return (h_f, c_f, h_b, c_b)

        carry0 = (hf_sc[...], cf_sc[...], hb_sc[...], cb_sc[...])
        h_f, c_f, h_b, c_b = lax.fori_loop(0, Tt, body, carry0, unroll=True)
        hf_sc[...] = h_f
        cf_sc[...] = c_f
        hb_sc[...] = h_b
        cb_sc[...] = c_b

    out_shape = (jax.ShapeDtypeStruct((T_pad, B_pad, H), jnp.float32),
                 jax.ShapeDtypeStruct((T_pad, B_pad, H), jnp.float32))
    in_specs = [
        pl.BlockSpec((B_pad, 1), lambda s: (0, 0)),                        # lengths
        pl.BlockSpec((Tt, B_pad, 4 * H), lambda s: (s, 0, 0)),             # fwd gates
        pl.BlockSpec((Tt, B_pad, 4 * H), lambda s: (nblk - 1 - s, 0, 1)),  # bwd gates
        pl.BlockSpec((2 * H, 8 * H), lambda s: (0, 0)),                    # Whh
    ]
    out_specs = (
        pl.BlockSpec((Tt, B_pad, H), lambda s: (s, 0, 0)),
        pl.BlockSpec((Tt, B_pad, H), lambda s: (nblk - 1 - s, 0, 0)),
    )
    return pl.pallas_call(
        kernel,
        out_shape=out_shape,
        grid_spec=pltpu.PrefetchScalarGridSpec(
            num_scalar_prefetch=0,
            grid=(nblk,),
            in_specs=in_specs,
            out_specs=out_specs,
            scratch_shapes=[pltpu.VMEM((B_pad, H), jnp.float32)] * 4,
        ),
        compiler_params=pltpu.CompilerParams(
            dimension_semantics=("arbitrary",)),
    )(len_pad, gx, gx, whh_cat)
    # TODO(synk): on v7x the two directions could run on separate TensorCores
    # (pl.core_map over a 2-core mesh); kept single-core here for portability.


# -----------------------------------------------------------------------------
# Full forward pass (XLA glue + Pallas kernels)
# -----------------------------------------------------------------------------
def bilstm_softlexicon_forward(params, input_ids, lengths,
                               softlexicon_ids, softlexicon_weights,
                               time_tile=8):
    B, T = input_ids.shape
    H = params['hidden']
    WE = params['word_enhance_size']
    Dw = params['word_emb'].shape[-1]
    out_size = params['out_size']

    # --- embedding glue: gathers + the soft-lexicon weighted reduce stay in
    #     XLA so they fuse and never round-trip HBM through a separate kernel.
    char_embeds = jnp.take(params['char_emb'], input_ids, axis=0)            # [B,T,Dc]
    sl_embeds = jnp.take(params['word_emb'], softlexicon_ids, axis=0)        # [B,T,WE,L,Dw]
    sl_w = softlexicon_weights.astype(jnp.float32)
    sl_out = jnp.einsum('btwld,btwl->btwd', sl_embeds, sl_w)                 # [B,T,WE,Dw]
    sl_out = sl_out.reshape(B, T, WE * Dw)
    embeds = jnp.concatenate([char_embeds, sl_out], axis=-1)                 # [B,T,D]
    D = embeds.shape[-1]

    # --- pad batch to a sublane multiple and time to the time tile ---
    B_pad = _round_up(max(B, 1), 8)
    Tt = time_tile
    T_pad = _round_up(max(T, 1), Tt)

    embeds_tm = jnp.transpose(embeds, (1, 0, 2))                             # [T,B,D]
    embeds_tm = jnp.pad(embeds_tm, ((0, T_pad - T), (0, B_pad - B), (0, 0)))
    len_pad = jnp.pad(lengths.astype(jnp.int32),
                      (0, B_pad - B)).reshape(B_pad, 1)

    # --- hoisted input projection for both directions (one lane-dense 8H-wide
    #     matmul, fully pipelined outside the serial recurrence) ---
    gx = linear_pallas(embeds_tm.reshape(T_pad * B_pad, D),
                       params['w_gates'], params['b_gates'])                 # [T_pad*B_pad, 8H]
    gx = gx.reshape(T_pad, B_pad, 8 * H)

    # --- serial BiLSTM recurrence (time-tiled, fused fwd+bwd h@Whh) ---
    out_f, out_b = bilstm_recurrence(gx, len_pad, params['whh_cat'], H, Tt)

    # --- final projection: out_f@W_top + out_b@W_bot + b (no [T,B,2H] concat),
    #     output padded to 128 lanes inside the kernel and sliced here ---
    scores = linear2_pallas(out_f.reshape(T_pad * B_pad, H),
                            out_b.reshape(T_pad * B_pad, H),
                            params['lin_w_top'], params['lin_w_bot'],
                            params['lin_b'])                                 # [T_pad*B_pad, O_pad]
    O_pad = params['lin_w_top'].shape[-1]
    scores = scores.reshape(T_pad, B_pad, O_pad)[:T, :B, :out_size]
    # NB: matches pad_packed_sequence when max(lengths) == T (as in the test).
    return jnp.transpose(scores, (1, 0, 2))                                  # [B,T,out_size]


# -----------------------------------------------------------------------------
# Pure-JAX reference (same math, for a sanity check)
# -----------------------------------------------------------------------------
def reference_forward(raw, input_ids, lengths, sl_ids, sl_w, H):
    B, T = input_ids.shape
    char_e = raw['char_emb'][input_ids]
    w = sl_w.astype(jnp.float32)
    emb = raw['word_emb'][sl_ids] * w[..., None]            # [B,T,WE,L,Dw]
    emb = emb.sum(axis=3).reshape(B, T, -1)
    x = jnp.concatenate([char_e, emb], axis=-1)             # [B,T,D]

    t_idx = jnp.arange(T)
    mask = (t_idx[None, :] < lengths[:, None]).astype(jnp.float32)

    def lstm_dir(wih, whh, bih, bhh, reverse):
        wih_T, whh_T, b = wih.T, whh.T, bih + bhh

        def cell(carry, inp):
            h, c = carry
            xt, m = inp
            gates = xt @ wih_T + h @ whh_T + b
            i = jax.nn.sigmoid(gates[:, :H])
            f = jax.nn.sigmoid(gates[:, H:2 * H])
            g = jnp.tanh(gates[:, 2 * H:3 * H])
            o = jax.nn.sigmoid(gates[:, 3 * H:])
            c_new = f * c + i * g
            h_new = o * jnp.tanh(c_new)
            m2 = m[:, None]
            return (m2 * h_new + (1 - m2) * h,
                    m2 * c_new + (1 - m2) * c), m2 * h_new

        xs = jnp.transpose(x, (1, 0, 2))
        ms = mask.T
        init = (jnp.zeros((B, H), jnp.float32), jnp.zeros((B, H), jnp.float32))
        _, outs = lax.scan(cell, init, (xs, ms), reverse=reverse)
        return jnp.transpose(outs, (1, 0, 2))

    of = lstm_dir(raw['wih_f'], raw['whh_f'], raw['bih_f'], raw['bhh_f'], False)
    ob = lstm_dir(raw['wih_b'], raw['whh_b'], raw['bih_b'], raw['bhh_b'], True)
    lstm_out = jnp.concatenate([of, ob], axis=-1)
    return lstm_out @ raw['lin_w'].T + raw['lin_b']


# -----------------------------------------------------------------------------
if __name__ == "__main__":
    key = jax.random.PRNGKey(0)
    keys = jax.random.split(key, 16)

    # small shapes consistent with the module
    B, T = 2, 8
    H = 32
    out_size = 8
    WE, L = 4, 8                       # word_enhance_size (B/M/E/S), max_lexicon_length
    char_dim, word_dim = 32, 16
    vocab_char, vocab_word = 50, 100
    D = char_dim + word_dim * WE       # bilstm input size = 96

    def init_w(k, shape):
        return jax.random.normal(k, shape, jnp.float32) * 0.1

    char_emb = init_w(keys[0], (vocab_char, char_dim))
    word_emb = init_w(keys[1], (vocab_word, word_dim))
    wih_f = init_w(keys[2], (4 * H, D))
    whh_f = init_w(keys[3], (4 * H, H))
    bih_f = init_w(keys[4], (4 * H,))
    bhh_f = init_w(keys[5], (4 * H,))
    wih_b = init_w(keys[6], (4 * H, D))
    whh_b = init_w(keys[7], (4 * H, H))
    bih_b = init_w(keys[8], (4 * H,))
    bhh_b = init_w(keys[9], (4 * H,))
    lin_w = init_w(keys[10], (out_size, 2 * H))
    lin_b = init_w(keys[11], (out_size,))

    O_pad = _round_up(out_size, 128)

    # fused input-projection weights [D, 8H] = [Wih_f^T | Wih_b^T]
    w_gates = jnp.concatenate([wih_f.T, wih_b.T], axis=1)
    b_gates = jnp.concatenate([bih_f + bhh_f, bih_b + bhh_b])

    # block-diagonal recurrent weights [2H, 8H]
    whh_cat = jnp.concatenate([
        jnp.concatenate([whh_f.T, jnp.zeros((H, 4 * H), jnp.float32)], axis=1),
        jnp.concatenate([jnp.zeros((H, 4 * H), jnp.float32), whh_b.T], axis=1),
    ], axis=0)

    params = {
        'char_emb': char_emb,
        'word_emb': word_emb,
        'hidden': H,
        'out_size': out_size,
        'word_enhance_size': WE,
        'max_lexicon_length': L,
        'w_gates': w_gates,
        'b_gates': b_gates,
        'whh_cat': whh_cat,
        # final linear split per direction and zero-padded to 128 output lanes
        'lin_w_top': jnp.pad(lin_w[:, :H].T, ((0, 0), (0, O_pad - out_size))),
        'lin_w_bot': jnp.pad(lin_w[:, H:].T, ((0, 0), (0, O_pad - out_size))),
        'lin_b': jnp.pad(lin_b, (0, O_pad - out_size)),
    }

    # example inputs
    input_ids = jax.random.randint(keys[12], (B, T), 0, vocab_char, jnp.int32)
    lengths = jnp.array([T, T - 3], jnp.int32)   # max(lengths) == T
    softlexicon_ids = jax.random.randint(keys[13], (B, T, WE, L), 0,
                                         vocab_word, jnp.int32)
    softlexicon_weights = jax.random.uniform(keys[14], (B, T, WE, L),
                                             jnp.float32)

    fwd = jax.jit(lambda ii, ll, si, sw:
                  bilstm_softlexicon_forward(params, ii, ll, si, sw))
    scores = fwd(input_ids, lengths, softlexicon_ids, softlexicon_weights)
    jax.block_until_ready(scores)

    raw = dict(char_emb=char_emb, word_emb=word_emb,
               wih_f=wih_f, whh_f=whh_f, bih_f=bih_f, bhh_f=bhh_f,
               wih_b=wih_b, whh_b=whh_b, bih_b=bih_b, bhh_b=bhh_b,
               lin_w=lin_w, lin_b=lin_b)
    ref = reference_forward(raw, input_ids, lengths,
                            softlexicon_ids, softlexicon_weights, H)
    jax.block_until_ready(ref)

    assert scores.shape == (B, T, out_size), scores.shape
    max_err = float(jnp.max(jnp.abs(scores - ref)))
    assert max_err < 1e-2, f"mismatch vs reference: {max_err}"

    print("KERNEL_OK")
</pallas_src>

<mosaic_0001>
module attributes {stable_mosaic.version = 11 : i64} {
  func.func @_linear_kernel(%arg0: i32, %arg1: memref<64x96xf32, #tpu.memory_space<vmem>>, %arg2: memref<96x256xf32, #tpu.memory_space<vmem>>, %arg3: memref<1x256xf32, #tpu.memory_space<vmem>>, %arg4: memref<64x256xf32, #tpu.memory_space<vmem>>) attributes {dimension_semantics = [#tpu.dimension_semantics<parallel>], iteration_bounds = array<i64: 1>, scalar_prefetch = 0 : i64, scratch_operands = 0 : i64, tpu.core_type = #tpu.core_type<tc>, window_params = [{transform_indices = @transform_0, window_bounds = array<i64: 64, 96>}, {pipeline_mode = #tpu.pipeline_mode<synchronous>, transform_indices = @transform_1, window_bounds = array<i64: 96, 256>}, {pipeline_mode = #tpu.pipeline_mode<synchronous>, transform_indices = @transform_2, window_bounds = array<i64: 1, 256>}, {transform_indices = @transform_3, window_bounds = array<i64: 64, 256>}]} {
    %c0 = arith.constant 0 : index
    %c0_0 = arith.constant 0 : index
    %0 = vector.load %arg1[%c0, %c0_0] : memref<64x96xf32, #tpu.memory_space<vmem>>, vector<64x96xf32>
    %c0_1 = arith.constant 0 : index
    %c0_2 = arith.constant 0 : index
    %1 = vector.load %arg2[%c0_1, %c0_2] : memref<96x256xf32, #tpu.memory_space<vmem>>, vector<96x256xf32>
    %cst = arith.constant dense<0.000000e+00> : vector<64x256xf32>
    %2 = tpu.matmul %0, %1, %cst {dimension_numbers = #tpu.dot_dimension_numbers<[1], [0], [0], [1], [0, 0, 1, 1], [], []>} : vector<64x96xf32>, vector<96x256xf32>, vector<64x256xf32> -> vector<64x256xf32>
    %c0_3 = arith.constant 0 : index
    %c0_4 = arith.constant 0 : index
    %3 = vector.load %arg3[%c0_3, %c0_4] : memref<1x256xf32, #tpu.memory_space<vmem>>, vector<1x256xf32>
    %4 = vector.broadcast %3 : vector<1x256xf32> to vector<64x256xf32>
    %5 = arith.addf %2, %4 : vector<64x256xf32>
    %c0_5 = arith.constant 0 : index
    %c0_6 = arith.constant 0 : index
    %6 = vector.load %arg4[%c0_5, %c0_6] : memref<64x256xf32, #tpu.memory_space<vmem>>, vector<64x256xf32>
    tpu.vector_store %arg4[%c0_5, %c0_6], %5 {strides = array<i32>} : memref<64x256xf32, #tpu.memory_space<vmem>>, vector<64x256xf32>,
    return
  }
  func.func @transform_0(%arg0: i32) -> (i32, i32) {
    %c0_i32 = arith.constant 0 : i32
    %c0_i32_0 = arith.constant 0 : i32
    return %arg0, %c0_i32 : i32, i32
  }
  func.func @transform_1(%arg0: i32) -> (i32, i32) {
    %c0_i32 = arith.constant 0 : i32
    %c0_i32_0 = arith.constant 0 : i32
    %c0_i32_1 = arith.constant 0 : i32
    return %c0_i32, %c0_i32_0 : i32, i32
  }
  func.func @transform_2(%arg0: i32) -> (i32, i32) {
    %c0_i32 = arith.constant 0 : i32
    %c0_i32_0 = arith.constant 0 : i32
    %c0_i32_1 = arith.constant 0 : i32
    return %c0_i32, %c0_i32_0 : i32, i32
  }
  func.func @transform_3(%arg0: i32) -> (i32, i32) {
    %c0_i32 = arith.constant 0 : i32
    %c0_i32_0 = arith.constant 0 : i32
    return %arg0, %c0_i32 : i32, i32
  }
}

module attributes {stable_mosaic.version = 11 : i64} {
  func.func @_linear2_kernel(%arg0: i32, %arg1: memref<64x32xf32, #tpu.memory_space<vmem>>, %arg2: memref<64x32xf32, #tpu.memory_space<vmem>>, %arg3: memref<32x128xf32, #tpu.memory_space<vmem>>, %arg4: memref<32x128xf32, #tpu.memory_space<vmem>>, %arg5: memref<1x128xf32, #tpu.memory_space<vmem>>, %arg6: memref<64x128xf32, #tpu.memory_space<vmem>>) attributes {dimension_semantics = [#tpu.dimension_semantics<parallel>], iteration_bounds = array<i64: 1>, scalar_prefetch = 0 : i64, scratch_operands = 0 : i64, tpu.core_type = #tpu.core_type<tc>, window_params = [{transform_indices = @transform_0, window_bounds = array<i64: 64, 32>}, {transform_indices = @transform_1, window_bounds = array<i64: 64, 32>}, {pipeline_mode = #tpu.pipeline_mode<synchronous>, transform_indices = @transform_2, window_bounds = array<i64: 32, 128>}, {pipeline_mode = #tpu.pipeline_mode<synchronous>, transform_indices = @transform_3, window_bounds = array<i64: 32, 128>}, {pipeline_mode = #tpu.pipeline_mode<synchronous>, transform_indices = @transform_4, window_bounds = array<i64: 1, 128>}, {transform_indices = @transform_5, window_bounds = array<i64: 64, 128>}]} {
    %c0 = arith.constant 0 : index
    %c0_0 = arith.constant 0 : index
    %0 = vector.load %arg1[%c0, %c0_0] : memref<64x32xf32, #tpu.memory_space<vmem>>, vector<64x32xf32>
    %c0_1 = arith.constant 0 : index
    %c0_2 = arith.constant 0 : index
    %1 = vector.load %arg3[%c0_1, %c0_2] : memref<32x128xf32, #tpu.memory_space<vmem>>, vector<32x128xf32>
    %cst = arith.constant dense<0.000000e+00> : vector<64x128xf32>
    %2 = tpu.matmul %0, %1, %cst {dimension_numbers = #tpu.dot_dimension_numbers<[1], [0], [0], [1], [0, 0, 1, 1], [], []>} : vector<64x32xf32>, vector<32x128xf32>, vector<64x128xf32> -> vector<64x128xf32>
    %c0_3 = arith.constant 0 : index
    %c0_4 = arith.constant 0 : index
    %3 = vector.load %arg2[%c0_3, %c0_4] : memref<64x32xf32, #tpu.memory_space<vmem>>, vector<64x32xf32>
    %c0_5 = arith.constant 0 : index
    %c0_6 = arith.constant 0 : index
    %4 = vector.load %arg4[%c0_5, %c0_6] : memref<32x128xf32, #tpu.memory_space<vmem>>, vector<32x128xf32>
    %cst_7 = arith.constant dense<0.000000e+00> : vector<64x128xf32>
    %5 = tpu.matmul %3, %4, %cst_7 {dimension_numbers = #tpu.dot_dimension_numbers<[1], [0], [0], [1], [0, 0, 1, 1], [], []>} : vector<64x32xf32>, vector<32x128xf32>, vector<64x128xf32> -> vector<64x128xf32>
    %6 = arith.addf %2, %5 : vector<64x128xf32>
    %c0_8 = arith.constant 0 : index
    %c0_9 = arith.constant 0 : index
    %7 = vector.load %arg5[%c0_8, %c0_9] : memref<1x128xf32, #tpu.memory_space<vmem>>, vector<1x128xf32>
    %8 = vector.broadcast %7 : vector<1x128xf32> to vector<64x128xf32>
    %9 = arith.addf %6, %8 : vector<64x128xf32>
    %c0_10 = arith.constant 0 : index
    %c0_11 = arith.constant 0 : index
    %10 = vector.load %arg6[%c0_10, %c0_11] : memref<64x128xf32, #tpu.memory_space<vmem>>, vector<64x128xf32>
    tpu.vector_store %arg6[%c0_10, %c0_11], %9 {strides = array<i32>} : memref<64x128xf32, #tpu.memory_space<vmem>>, vector<64x128xf32>,
    return
  }
  func.func @transform_0(%arg0: i32) -> (i32, i32) {
    %c0_i32 = arith.constant 0 : i32
    %c0_i32_0 = arith.constant 0 : i32
    return %arg0, %c0_i32 : i32, i32
  }
  func.func @transform_1(%arg0: i32) -> (i32, i32) {
    %c0_i32 = arith.constant 0 : i32
    %c0_i32_0 = arith.constant 0 : i32
    return %arg0, %c0_i32 : i32, i32
  }
  func.func @transform_2(%arg0: i32) -> (i32, i32) {
    %c0_i32 = arith.constant 0 : i32
    %c0_i32_0 = arith.constant 0 : i32
    %c0_i32_1 = arith.constant 0 : i32
    return %c0_i32, %c0_i32_0 : i32, i32
  }
  func.func @transform_3(%arg0: i32) -> (i32, i32) {
    %c0_i32 = arith.constant 0 : i32
    %c0_i32_0 = arith.constant 0 : i32
    %c0_i32_1 = arith.constant 0 : i32
    return %c0_i32, %c0_i32_0 : i32, i32
  }
  func.func @transform_4(%arg0: i32) -> (i32, i32) {
    %c0_i32 = arith.constant 0 : i32
    %c0_i32_0 = arith.constant 0 : i32
    %c0_i32_1 = arith.constant 0 : i32
    return %c0_i32, %c0_i32_0 : i32, i32
  }
  func.func @transform_5(%arg0: i32) -> (i32, i32) {
    %c0_i32 = arith.constant 0 : i32
    %c0_i32_0 = arith.constant 0 : i32
    return %arg0, %c0_i32 : i32, i32
  }
}

module attributes {stable_mosaic.version = 11 : i64} {
  func.func @kernel(%arg0: i32, %arg1: memref<8x1xi32, #tpu.memory_space<vmem>>, %arg2: memref<8x8x128xf32, #tpu.memory_space<vmem>>, %arg3: memref<8x8x128xf32, #tpu.memory_space<vmem>>, %arg4: memref<64x256xf32, #tpu.memory_space<vmem>>, %arg5: memref<8x8x32xf32, #tpu.memory_space<vmem>>, %arg6: memref<8x8x32xf32, #tpu.memory_space<vmem>>, %arg7: memref<8x32xf32, #tpu.memory_space<vmem>>, %arg8: memref<8x32xf32, #tpu.memory_space<vmem>>, %arg9: memref<8x32xf32, #tpu.memory_space<vmem>>, %arg10: memref<8x32xf32, #tpu.memory_space<vmem>>) attributes {dimension_semantics = [#tpu.dimension_semantics<arbitrary>], iteration_bounds = array<i64: 1>, scalar_prefetch = 0 : i64, scratch_operands = 4 : i64, tpu.core_type = #tpu.core_type<tc>, window_params = [{pipeline_mode = #tpu.pipeline_mode<synchronous>, transform_indices = @transform_0, window_bounds = array<i64: 8, 1>}, {transform_indices = @transform_1, window_bounds = array<i64: 8, 8, 128>}, {transform_indices = @transform_2, window_bounds = array<i64: 8, 8, 128>}, {pipeline_mode = #tpu.pipeline_mode<synchronous>, transform_indices = @transform_3, window_bounds = array<i64: 64, 256>}, {transform_indices = @transform_4, window_bounds = array<i64: 8, 8, 32>}, {transform_indices = @transform_5, window_bounds = array<i64: 8, 8, 32>}]} {
    %c0_i32 = arith.constant 0 : i32
    %0 = arith.cmpi eq, %arg0, %c0_i32 : i32
    %1 = arith.extui %0 : i1 to i32
    %c0_i32_0 = arith.constant 0 : i32
    %2 = arith.cmpi ne, %1, %c0_i32_0 : i32
    scf.if %2 {
      %cst_188 = arith.constant 0.000000e+00 : f32
      %805 = vector.broadcast %cst_188 : f32 to vector<8x32xf32>
      %c0_189 = arith.constant 0 : index
      %c0_190 = arith.constant 0 : index
      %806 = vector.load %arg7[%c0_189, %c0_190] : memref<8x32xf32, #tpu.memory_space<vmem>>, vector<8x32xf32>
      tpu.vector_store %arg7[%c0_189, %c0_190], %805 {strides = array<i32>} : memref<8x32xf32, #tpu.memory_space<vmem>>, vector<8x32xf32>,
      %cst_191 = arith.constant 0.000000e+00 : f32
      %807 = vector.broadcast %cst_191 : f32 to vector<8x32xf32>
      %c0_192 = arith.constant 0 : index
      %c0_193 = arith.constant 0 : index
      %808 = vector.load %arg8[%c0_192, %c0_193] : memref<8x32xf32, #tpu.memory_space<vmem>>, vector<8x32xf32>
      tpu.vector_store %arg8[%c0_192, %c0_193], %807 {strides = array<i32>} : memref<8x32xf32, #tpu.memory_space<vmem>>, vector<8x32xf32>,
      %cst_194 = arith.constant 0.000000e+00 : f32
      %809 = vector.broadcast %cst_194 : f32 to vector<8x32xf32>
      %c0_195 = arith.constant 0 : index
      %c0_196 = arith.constant 0 : index
      %810 = vector.load %arg9[%c0_195, %c0_196] : memref<8x32xf32, #tpu.memory_space<vmem>>, vector<8x32xf32>
      tpu.vector_store %arg9[%c0_195, %c0_196], %809 {strides = array<i32>} : memref<8x32xf32, #tpu.memory_space<vmem>>, vector<8x32xf32>,
      %cst_197 = arith.constant 0.000000e+00 : f32
      %811 = vector.broadcast %cst_197 : f32 to vector<8x32xf32>
      %c0_198 = arith.constant 0 : index
      %c0_199 = arith.constant 0 : index
      %812 = vector.load %arg10[%c0_198, %c0_199] : memref<8x32xf32, #tpu.memory_space<vmem>>, vector<8x32xf32>
      tpu.vector_store %arg10[%c0_198, %c0_199], %811 {strides = array<i32>} : memref<8x32xf32, #tpu.memory_space<vmem>>, vector<8x32xf32>,
    } else {
    }
    %c0 = arith.constant 0 : index
    %c0_1 = arith.constant 0 : index
    %3 = vector.load %arg1[%c0, %c0_1] : memref<8x1xi32, #tpu.memory_space<vmem>>, vector<8x1xi32>
    %c0_2 = arith.constant 0 : index
    %c0_3 = arith.constant 0 : index
    %4 = vector.load %arg4[%c0_2, %c0_3] : memref<64x256xf32, #tpu.memory_space<vmem>>, vector<64x256xf32>
    %c0_4 = arith.constant 0 : index
    %c0_5 = arith.constant 0 : index
    %5 = vector.load %arg7[%c0_4, %c0_5] : memref<8x32xf32, #tpu.memory_space<vmem>>, vector<8x32xf32>
    %c0_6 = arith.constant 0 : index
    %c0_7 = arith.constant 0 : index
    %6 = vector.load %arg8[%c0_6, %c0_7] : memref<8x32xf32, #tpu.memory_space<vmem>>, vector<8x32xf32>
    %c0_8 = arith.constant 0 : index
    %c0_9 = arith.constant 0 : index
    %7 = vector.load %arg9[%c0_8, %c0_9] : memref<8x32xf32, #tpu.memory_space<vmem>>, vector<8x32xf32>
    %c0_10 = arith.constant 0 : index
    %c0_11 = arith.constant 0 : index
    %8 = vector.load %arg10[%c0_10, %c0_11] : memref<8x32xf32, #tpu.memory_space<vmem>>, vector<8x32xf32>
    %c0_i32_12 = arith.constant 0 : i32
    %c8_i32 = arith.constant 8 : i32
    %9 = arith.muli %arg0, %c8_i32 : i32
    %10 = arith.addi %9, %c0_i32_12 : i32
    %c7_i32 = arith.constant 7 : i32
    %11 = arith.subi %c7_i32, %10 : i32
    %12 = tpu.concatenate %5, %7 in 1 : vector<8x32xf32>, vector<8x32xf32> -> vector<8x64xf32>
    %cst = arith.constant dense<0.000000e+00> : vector<8x256xf32>
    %13 = tpu.matmul %12, %4, %cst {dimension_numbers = #tpu.dot_dimension_numbers<[1], [0], [0], [1], [0, 0, 1, 1], [], []>} : vector<8x64xf32>, vector<64x256xf32>, vector<8x256xf32> -> vector<8x256xf32>
    %14 = arith.index_cast %c0_i32_12 : i32 to index
    %c0_13 = arith.constant 0 : index
    %c0_14 = arith.constant 0 : index
    %15 = vector.load %arg2[%14, %c0_13, %c0_14] : memref<8x8x128xf32, #tpu.memory_space<vmem>>, vector<1x8x128xf32>
    %16 = vector.shape_cast %15 : vector<1x8x128xf32> to vector<8x128xf32>
    %17 = vector.extract_strided_slice %13 {offsets = [0, 0], sizes = [8, 128], strides = [1, 1]} : vector<8x256xf32> to vector<8x128xf32>
    %18 = arith.addf %16, %17 : vector<8x128xf32>
    %19 = vector.extract_strided_slice %18 {offsets = [0, 0], sizes = [8, 32], strides = [1, 1]} : vector<8x128xf32> to vector<8x32xf32>
    %20 = arith.negf %19 : vector<8x32xf32>
    %21 = math.exp %20 : vector<8x32xf32>
    %cst_15 = arith.constant 1.000000e+00 : f32
    %22 = vector.broadcast %cst_15 : f32 to vector<8x32xf32>
    %23 = arith.addf %22, %21 : vector<8x32xf32>
    %24 = arith.divf %22, %23 : vector<8x32xf32>
    %25 = vector.extract_strided_slice %18 {offsets = [0, 32], sizes = [8, 32], strides = [1, 1]} : vector<8x128xf32> to vector<8x32xf32>
    %26 = arith.negf %25 : vector<8x32xf32>
    %27 = math.exp %26 : vector<8x32xf32>
    %cst_16 = arith.constant 1.000000e+00 : f32
    %28 = vector.broadcast %cst_16 : f32 to vector<8x32xf32>
    %29 = arith.addf %28, %27 : vector<8x32xf32>
    %30 = arith.divf %28, %29 : vector<8x32xf32>
    %31 = vector.extract_strided_slice %18 {offsets = [0, 64], sizes = [8, 32], strides = [1, 1]} : vector<8x128xf32> to vector<8x32xf32>
    %32 = math.tanh %31 : vector<8x32xf32>
    %33 = vector.extract_strided_slice %18 {offsets = [0, 96], sizes = [8, 32], strides = [1, 1]} : vector<8x128xf32> to vector<8x32xf32>
    %34 = arith.negf %33 : vector<8x32xf32>
    %35 = math.exp %34 : vector<8x32xf32>
    %cst_17 = arith.constant 1.000000e+00 : f32
    %36 = vector.broadcast %cst_17 : f32 to vector<8x32xf32>
    %37 = arith.addf %36, %35 : vector<8x32xf32>
    %38 = arith.divf %36, %37 : vector<8x32xf32>
    %39 = arith.mulf %30, %6 : vector<8x32xf32>
    %40 = arith.mulf %24, %32 : vector<8x32xf32>
    %41 = arith.addf %39, %40 : vector<8x32xf32>
    %42 = math.tanh %41 : vector<8x32xf32>
    %43 = arith.mulf %38, %42 : vector<8x32xf32>
    %c7_i32_18 = arith.constant 7 : i32
    %44 = arith.subi %c7_i32_18, %c0_i32_12 : i32
    %45 = arith.index_cast %44 : i32 to index
    %c0_19 = arith.constant 0 : index
    %c0_20 = arith.constant 0 : index
    %46 = vector.load %arg3[%45, %c0_19, %c0_20] : memref<8x8x128xf32, #tpu.memory_space<vmem>>, vector<1x8x128xf32>
    %47 = vector.shape_cast %46 : vector<1x8x128xf32> to vector<8x128xf32>
    %48 = vector.extract_strided_slice %13 {offsets = [0, 128], sizes = [8, 128], strides = [1, 1]} : vector<8x256xf32> to vector<8x128xf32>
    %49 = arith.addf %47, %48 : vector<8x128xf32>
    %50 = vector.extract_strided_slice %49 {offsets = [0, 0], sizes = [8, 32], strides = [1, 1]} : vector<8x128xf32> to vector<8x32xf32>
    %51 = arith.negf %50 : vector<8x32xf32>
    %52 = math.exp %51 : vector<8x32xf32>
    %cst_21 = arith.constant 1.000000e+00 : f32
    %53 = vector.broadcast %cst_21 : f32 to vector<8x32xf32>
    %54 = arith.addf %53, %52 : vector<8x32xf32>
    %55 = arith.divf %53, %54 : vector<8x32xf32>
    %56 = vector.extract_strided_slice %49 {offsets = [0, 32], sizes = [8, 32], strides = [1, 1]} : vector<8x128xf32> to vector<8x32xf32>
    %57 = arith.negf %56 : vector<8x32xf32>
    %58 = math.exp %57 : vector<8x32xf32>
    %cst_22 = arith.constant 1.000000e+00 : f32
    %59 = vector.broadcast %cst_22 : f32 to vector<8x32xf32>
    %60 = arith.addf %59, %58 : vector<8x32xf32>
    %61 = arith.divf %59, %60 : vector<8x32xf32>
    %62 = vector.extract_strided_slice %49 {offsets = [0, 64], sizes = [8, 32], strides = [1, 1]} : vector<8x128xf32> to vector<8x32xf32>
    %63 = math.tanh %62 : vector<8x32xf32>
    %64 = vector.extract_strided_slice %49 {offsets = [0, 96], sizes = [8, 32], strides = [1, 1]} : vector<8x128xf32> to vector<8x32xf32>
    %65 = arith.negf %64 : vector<8x32xf32>
    %66 = math.exp %65 : vector<8x32xf32>
    %cst_23 = arith.constant 1.000000e+00 : f32
    %67 = vector.broadcast %cst_23 : f32 to vector<8x32xf32>
    %68 = arith.addf %67, %66 : vector<8x32xf32>
    %69 = arith.divf %67, %68 : vector<8x32xf32>
    %70 = arith.mulf %61, %8 : vector<8x32xf32>
    %71 = arith.mulf %55, %63 : vector<8x32xf32>
    %72 = arith.addf %70, %71 : vector<8x32xf32>
    %73 = math.tanh %72 : vector<8x32xf32>
    %74 = arith.mulf %69, %73 : vector<8x32xf32>
    %75 = vector.broadcast %10 : i32 to vector<8x1xi32>
    %76 = arith.cmpi slt, %75, %3 : vector<8x1xi32>
    %77 = vector.broadcast %11 : i32 to vector<8x1xi32>
    %78 = arith.cmpi slt, %77, %3 : vector<8x1xi32>
    %79 = vector.shape_cast %76 : vector<8x1xi1> to vector<8x1xi1>
    %80 = vector.broadcast %79 : vector<8x1xi1> to vector<8x32xi1>
    %81 = arith.select %80, %43, %5 : vector<8x32xi1>, vector<8x32xf32>
    %82 = vector.shape_cast %76 : vector<8x1xi1> to vector<8x1xi1>
    %83 = vector.broadcast %82 : vector<8x1xi1> to vector<8x32xi1>
    %84 = arith.select %83, %41, %6 : vector<8x32xi1>, vector<8x32xf32>
    %85 = vector.shape_cast %78 : vector<8x1xi1> to vector<8x1xi1>
    %86 = vector.broadcast %85 : vector<8x1xi1> to vector<8x32xi1>
    %87 = arith.select %86, %74, %7 : vector<8x32xi1>, vector<8x32xf32>
    %88 = vector.shape_cast %78 : vector<8x1xi1> to vector<8x1xi1>
    %89 = vector.broadcast %88 : vector<8x1xi1> to vector<8x32xi1>
    %90 = arith.select %89, %72, %8 : vector<8x32xi1>, vector<8x32xf32>
    %cst_24 = arith.constant 0.000000e+00 : f32
    %91 = vector.broadcast %cst_24 : f32 to vector<8x32xf32>
    %92 = vector.shape_cast %76 : vector<8x1xi1> to vector<8x1xi1>
    %93 = vector.broadcast %92 : vector<8x1xi1> to vector<8x32xi1>
    %94 = arith.select %93, %43, %91 : vector<8x32xi1>, vector<8x32xf32>
    %95 = arith.index_cast %c0_i32_12 : i32 to index
    %c0_25 = arith.constant 0 : index
    %c0_26 = arith.constant 0 : index
    %96 = vector.load %arg5[%95, %c0_25, %c0_26] : memref<8x8x32xf32, #tpu.memory_space<vmem>>, vector<1x8x32xf32>
    %97 = vector.shape_cast %96 : vector<1x8x32xf32> to vector<8x32xf32>
    %98 = vector.shape_cast %94 : vector<8x32xf32> to vector<1x8x32xf32>
    tpu.vector_store %arg5[%95, %c0_25, %c0_26], %98 {strides = array<i32>} : memref<8x8x32xf32, #tpu.memory_space<vmem>>, vector<1x8x32xf32>,
    %cst_27 = arith.constant 0.000000e+00 : f32
    %99 = vector.broadcast %cst_27 : f32 to vector<8x32xf32>
    %100 = vector.shape_cast %78 : vector<8x1xi1> to vector<8x1xi1>
    %101 = vector.broadcast %100 : vector<8x1xi1> to vector<8x32xi1>
    %102 = arith.select %101, %74, %99 : vector<8x32xi1>, vector<8x32xf32>
    %c7_i32_28 = arith.constant 7 : i32
    %103 = arith.subi %c7_i32_28, %c0_i32_12 : i32
    %104 = arith.index_cast %103 : i32 to index
    %c0_29 = arith.constant 0 : index
    %c0_30 = arith.constant 0 : index
    %105 = vector.load %arg6[%104, %c0_29, %c0_30] : memref<8x8x32xf32, #tpu.memory_space<vmem>>, vector<1x8x32xf32>
    %106 = vector.shape_cast %105 : vector<1x8x32xf32> to vector<8x32xf32>
    %107 = vector.shape_cast %102 : vector<8x32xf32> to vector<1x8x32xf32>
    tpu.vector_store %arg6[%104, %c0_29, %c0_30], %107 {strides = array<i32>} : memref<8x8x32xf32, #tpu.memory_space<vmem>>, vector<1x8x32xf32>,
    %c1_i32 = arith.constant 1 : i32
    %c8_i32_31 = arith.constant 8 : i32
    %108 = arith.muli %arg0, %c8_i32_31 : i32
    %109 = arith.addi %108, %c1_i32 : i32
    %c7_i32_32 = arith.constant 7 : i32
    %110 = arith.subi %c7_i32_32, %109 : i32
    %111 = tpu.concatenate %81, %87 in 1 : vector<8x32xf32>, vector<8x32xf32> -> vector<8x64xf32>
    %cst_33 = arith.constant dense<0.000000e+00> : vector<8x256xf32>
    %112 = tpu.matmul %111, %4, %cst_33 {dimension_numbers = #tpu.dot_dimension_numbers<[1], [0], [0], [1], [0, 0, 1, 1], [], []>} : vector<8x64xf32>, vector<64x256xf32>, vector<8x256xf32> -> vector<8x256xf32>
    %113 = arith.index_cast %c1_i32 : i32 to index
    %c0_34 = arith.constant 0 : index
    %c0_35 = arith.constant 0 : index
    %114 = vector.load %arg2[%113, %c0_34, %c0_35] : memref<8x8x128xf32, #tpu.memory_space<vmem>>, vector<1x8x128xf32>
    %115 = vector.shape_cast %114 : vector<1x8x128xf32> to vector<8x128xf32>
    %116 = vector.extract_strided_slice %112 {offsets = [0, 0], sizes = [8, 128], strides = [1, 1]} : vector<8x256xf32> to vector<8x128xf32>
    %117 = arith.addf %115, %116 : vector<8x128xf32>
    %118 = vector.extract_strided_slice %117 {offsets = [0, 0], sizes = [8, 32], strides = [1, 1]} : vector<8x128xf32> to vector<8x32xf32>
    %119 = arith.negf %118 : vector<8x32xf32>
    %120 = math.exp %119 : vector<8x32xf32>
    %cst_36 = arith.constant 1.000000e+00 : f32
    %121 = vector.broadcast %cst_36 : f32 to vector<8x32xf32>
    %122 = arith.addf %121, %120 : vector<8x32xf32>
    %123 = arith.divf %121, %122 : vector<8x32xf32>
    %124 = vector.extract_strided_slice %117 {offsets = [0, 32], sizes = [8, 32], strides = [1, 1]} : vector<8x128xf32> to vector<8x32xf32>
    %125 = arith.negf %124 : vector<8x32xf32>
    %126 = math.exp %125 : vector<8x32xf32>
    %cst_37 = arith.constant 1.000000e+00 : f32
    %127 = vector.broadcast %cst_37 : f32 to vector<8x32xf32>
    %128 = arith.addf %127, %126 : vector<8x32xf32>
    %129 = arith.divf %127, %128 : vector<8x32xf32>
    %130 = vector.extract_strided_slice %117 {offsets = [0, 64], sizes = [8, 32], strides = [1, 1]} : vector<8x128xf32> to vector<8x32xf32>
    %131 = math.tanh %130 : vector<8x32xf32>
    %132 = vector.extract_strided_slice %117 {offsets = [0, 96], sizes = [8, 32], strides = [1, 1]} : vector<8x128xf32> to vector<8x32xf32>
    %133 = arith.negf %132 : vector<8x32xf32>
    %134 = math.exp %133 : vector<8x32xf32>
    %cst_38 = arith.constant 1.000000e+00 : f32
    %135 = vector.broadcast %cst_38 : f32 to vector<8x32xf32>
    %136 = arith.addf %135, %134 : vector<8x32xf32>
    %137 = arith.divf %135, %136 : vector<8x32xf32>
    %138 = arith.mulf %129, %84 : vector<8x32xf32>
    %139 = arith.mulf %123, %131 : vector<8x32xf32>
    %140 = arith.addf %138, %139 : vector<8x32xf32>
    %141 = math.tanh %140 : vector<8x32xf32>
    %142 = arith.mulf %137, %141 : vector<8x32xf32>
    %c7_i32_39 = arith.constant 7 : i32
    %143 = arith.subi %c7_i32_39, %c1_i32 : i32
    %144 = arith.index_cast %143 : i32 to index
    %c0_40 = arith.constant 0 : index
    %c0_41 = arith.constant 0 : index
    %145 = vector.load %arg3[%144, %c0_40, %c0_41] : memref<8x8x128xf32, #tpu.memory_space<vmem>>, vector<1x8x128xf32>
    %146 = vector.shape_cast %145 : vector<1x8x128xf32> to vector<8x128xf32>
    %147 = vector.extract_strided_slice %112 {offsets = [0, 128], sizes = [8, 128], strides = [1, 1]} : vector<8x256xf32> to vector<8x128xf32>
    %148 = arith.addf %146, %147 : vector<8x128xf32>
    %149 = vector.extract_strided_slice %148 {offsets = [0, 0], sizes = [8, 32], strides = [1, 1]} : vector<8x128xf32> to vector<8x32xf32>
    %150 = arith.negf %149 : vector<8x32xf32>
    %151 = math.exp %150 : vector<8x32xf32>
    %cst_42 = arith.constant 1.000000e+00 : f32
    %152 = vector.broadcast %cst_42 : f32 to vector<8x32xf32>
    %153 = arith.addf %152, %151 : vector<8x32xf32>
    %154 = arith.divf %152, %153 : vector<8x32xf32>
    %155 = vector.extract_strided_slice %148 {offsets = [0, 32], sizes = [8, 32], strides = [1, 1]} : vector<8x128xf32> to vector<8x32xf32>
    %156 = arith.negf %155 : vector<8x32xf32>
    %157 = math.exp %156 : vector<8x32xf32>
    %cst_43 = arith.constant 1.000000e+00 : f32
    %158 = vector.broadcast %cst_43 : f32 to vector<8x32xf32>
    %159 = arith.addf %158, %157 : vector<8x32xf32>
    %160 = arith.divf %158, %159 : vector<8x32xf32>
    %161 = vector.extract_strided_slice %148 {offsets = [0, 64], sizes = [8, 32], strides = [1, 1]} : vector<8x128xf32> to vector<8x32xf32>
    %162 = math.tanh %161 : vector<8x32xf32>
    %163 = vector.extract_strided_slice %148 {offsets = [0, 96], sizes = [8, 32], strides = [1, 1]} : vector<8x128xf32> to vector<8x32xf32>
    %164 = arith.negf %163 : vector<8x32xf32>
    %165 = math.exp %164 : vector<8x32xf32>
    %cst_44 = arith.constant 1.000000e+00 : f32
    %166 = vector.broadcast %cst_44 : f32 to vector<8x32xf32>
    %167 = arith.addf %166, %165 : vector<8x32xf32>
    %168 = arith.divf %166, %167 : vector<8x32xf32>
    %169 = arith.mulf %160, %90 : vector<8x32xf32>
    %170 = arith.mulf %154, %162 : vector<8x32xf32>
    %171 = arith.addf %169, %170 : vector<8x32xf32>
    %172 = math.tanh %171 : vector<8x32xf32>
    %173 = arith.mulf %168, %172 : vector<8x32xf32>
    %174 = vector.broadcast %109 : i32 to vector<8x1xi32>
    %175 = arith.cmpi slt, %174, %3 : vector<8x1xi32>
    %176 = vector.broadcast %110 : i32 to vector<8x1xi32>
    %177 = arith.cmpi slt, %176, %3 : vector<8x1xi32>
    %178 = vector.shape_cast %175 : vector<8x1xi1> to vector<8x1xi1>
    %179 = vector.broadcast %178 : vector<8x1xi1> to vector<8x32xi1>
    %180 = arith.select %179, %142, %81 : vector<8x32xi1>, vector<8x32xf32>
    %181 = vector.shape_cast %175 : vector<8x1xi1> to vector<8x1xi1>
    %182 = vector.broadcast %181 : vector<8x1xi1> to vector<8x32xi1>
    %183 = arith.select %182, %140, %84 : vector<8x32xi1>, vector<8x32xf32>
    %184 = vector.shape_cast %177 : vector<8x1xi1> to vector<8x1xi1>
    %185 = vector.broadcast %184 : vector<8x1xi1> to vector<8x32xi1>
    %186 = arith.select %185, %173, %87 : vector<8x32xi1>, vector<8x32xf32>
    %187 = vector.shape_cast %177 : vector<8x1xi1> to vector<8x1xi1>
    %188 = vector.broadcast %187 : vector<8x1xi1> to vector<8x32xi1>
    %189 = arith.select %188, %171, %90 : vector<8x32xi1>, vector<8x32xf32>
    %cst_45 = arith.constant 0.000000e+00 : f32
    %190 = vector.broadcast %cst_45 : f32 to vector<8x32xf32>
    %191 = vector.shape_cast %175 : vector<8x1xi1> to vector<8x1xi1>
    %192 = vector.broadcast %191 : vector<8x1xi1> to vector<8x32xi1>
    %193 = arith.select %192, %142, %190 : vector<8x32xi1>, vector<8x32xf32>
    %194 = arith.index_cast %c1_i32 : i32 to index
    %c0_46 = arith.constant 0 : index
    %c0_47 = arith.constant 0 : index
    %195 = vector.load %arg5[%194, %c0_46, %c0_47] : memref<8x8x32xf32, #tpu.memory_space<vmem>>, vector<1x8x32xf32>
    %196 = vector.shape_cast %195 : vector<1x8x32xf32> to vector<8x32xf32>
    %197 = vector.shape_cast %193 : vector<8x32xf32> to vector<1x8x32xf32>
    tpu.vector_store %arg5[%194, %c0_46, %c0_47], %197 {strides = array<i32>} : memref<8x8x32xf32, #tpu.memory_space<vmem>>, vector<1x8x32xf32>,
    %cst_48 = arith.constant 0.000000e+00 : f32
    %198 = vector.broadcast %cst_48 : f32 to vector<8x32xf32>
    %199 = vector.shape_cast %177 : vector<8x1xi1> to vector<8x1xi1>
    %200 = vector.broadcast %199 : vector<8x1xi1> to vector<8x32xi1>
    %201 = arith.select %200, %173, %198 : vector<8x32xi1>, vector<8x32xf32>
    %c7_i32_49 = arith.constant 7 : i32
    %202 = arith.subi %c7_i32_49, %c1_i32 : i32
    %203 = arith.index_cast %202 : i32 to index
    %c0_50 = arith.constant 0 : index
    %c0_51 = arith.constant 0 : index
    %204 = vector.load %arg6[%203, %c0_50, %c0_51] : memref<8x8x32xf32, #tpu.memory_space<vmem>>, vector<1x8x32xf32>
    %205 = vector.shape_cast %204 : vector<1x8x32xf32> to vector<8x32xf32>
    %206 = vector.shape_cast %201 : vector<8x32xf32> to vector<1x8x32xf32>
    tpu.vector_store %arg6[%203, %c0_50, %c0_51], %206 {strides = array<i32>} : memref<8x8x32xf32, #tpu.memory_space<vmem>>, vector<1x8x32xf32>,
    %c2_i32 = arith.constant 2 : i32
    %c8_i32_52 = arith.constant 8 : i32
    %207 = arith.muli %arg0, %c8_i32_52 : i32
    %208 = arith.addi %207, %c2_i32 : i32
    %c7_i32_53 = arith.constant 7 : i32
    %209 = arith.subi %c7_i32_53, %208 : i32
    %210 = tpu.concatenate %180, %186 in 1 : vector<8x32xf32>, vector<8x32xf32> -> vector<8x64xf32>
    %cst_54 = arith.constant dense<0.000000e+00> : vector<8x256xf32>
    %211 = tpu.matmul %210, %4, %cst_54 {dimension_numbers = #tpu.dot_dimension_numbers<[1], [0], [0], [1], [0, 0, 1, 1], [], []>} : vector<8x64xf32>, vector<64x256xf32>, vector<8x256xf32> -> vector<8x256xf32>
    %212 = arith.index_cast %c2_i32 : i32 to index
    %c0_55 = arith.constant 0 : index
    %c0_56 = arith.constant 0 : index
    %213 = vector.load %arg2[%212, %c0_55, %c0_56] : memref<8x8x128xf32, #tpu.memory_space<vmem>>, vector<1x8x128xf32>
    %214 = vector.shape_cast %213 : vector<1x8x128xf32> to vector<8x128xf32>
    %215 = vector.extract_strided_slice %211 {offsets = [0, 0], sizes = [8, 128], strides = [1, 1]} : vector<8x256xf32> to vector<8x128xf32>
    %216 = arith.addf %214, %215 : vector<8x128xf32>
    %217 = vector.extract_strided_slice %216 {offsets = [0, 0], sizes = [8, 32], strides = [1, 1]} : vector<8x128xf32> to vector<8x32xf32>
    %218 = arith.negf %217 : vector<8x32xf32>
    %219 = math.exp %218 : vector<8x32xf32>
    %cst_57 = arith.constant 1.000000e+00 : f32
    %220 = vector.broadcast %cst_57 : f32 to vector<8x32xf32>
    %221 = arith.addf %220, %219 : vector<8x32xf32>
    %222 = arith.divf %220, %221 : vector<8x32xf32>
    %223 = vector.extract_strided_slice %216 {offsets = [0, 32], sizes = [8, 32], strides = [1, 1]} : vector<8x128xf32> to vector<8x32xf32>
    %224 = arith.negf %223 : vector<8x32xf32>
    %225 = math.exp %224 : vector<8x32xf32>
    %cst_58 = arith.constant 1.000000e+00 : f32
    %226 = vector.broadcast %cst_58 : f32 to vector<8x32xf32>
    %227 = arith.addf %226, %225 : vector<8x32xf32>
    %228 = arith.divf %226, %227 : vector<8x32xf32>
    %229 = vector.extract_strided_slice %216 {offsets = [0, 64], sizes = [8, 32], strides = [1, 1]} : vector<8x128xf32> to vector<8x32xf32>
    %230 = math.tanh %229 : vector<8x32xf32>
    %231 = vector.extract_strided_slice %216 {offsets = [0, 96], sizes = [8, 32], strides = [1, 1]} : vector<8x128xf32> to vector<8x32xf32>
    %232 = arith.negf %231 : vector<8x32xf32>
    %233 = math.exp %232 : vector<8x32xf32>
    %cst_59 = arith.constant 1.000000e+00 : f32
    %234 = vector.broadcast %cst_59 : f32 to vector<8x32xf32>
    %235 = arith.addf %234, %233 : vector<8x32xf32>
    %236 = arith.divf %234, %235 : vector<8x32xf32>
    %237 = arith.mulf %228, %183 : vector<8x32xf32>
    %238 = arith.mulf %222, %230 : vector<8x32xf32>
    %239 = arith.addf %237, %238 : vector<8x32xf32>
    %240 = math.tanh %239 : vector<8x32xf32>
    %241 = arith.mulf %236, %240 : vector<8x32xf32>
    %c7_i32_60 = arith.constant 7 : i32
    %242 = arith.subi %c7_i32_60, %c2_i32 : i32
    %243 = arith.index_cast %242 : i32 to index
    %c0_61 = arith.constant 0 : index
    %c0_62 = arith.constant 0 : index
    %244 = vector.load %arg3[%243, %c0_61, %c0_62] : memref<8x8x128xf32, #tpu.memory_space<vmem>>, vector<1x8x128xf32>
    %245 = vector.shape_cast %244 : vector<1x8x128xf32> to vector<8x128xf32>
    %246 = vector.extract_strided_slice %211 {offsets = [0, 128], sizes = [8, 128], strides = [1, 1]} : vector<8x256xf32> to vector<8x128xf32>
    %247 = arith.addf %245, %246 : vector<8x128xf32>
    %248 = vector.extract_strided_slice %247 {offsets = [0, 0], sizes = [8, 32], strides = [1, 1]} : vector<8x128xf32> to vector<8x32xf32>
    %249 = arith.negf %248 : vector<8x32xf32>
    %250 = math.exp %249 : vector<8x32xf32>
    %cst_63 = arith.constant 1.000000e+00 : f32
    %251 = vector.broadcast %cst_63 : f32 to vector<8x32xf32>
    %252 = arith.addf %251, %250 : vector<8x32xf32>
    %253 = arith.divf %251, %252 : vector<8x32xf32>
    %254 = vector.extract_strided_slice %247 {offsets = [0, 32], sizes = [8, 32], strides = [1, 1]} : vector<8x128xf32> to vector<8x32xf32>
    %255 = arith.negf %254 : vector<8x32xf32>
    %256 = math.exp %255 : vector<8x32xf32>
    %cst_64 = arith.constant 1.000000e+00 : f32
    %257 = vector.broadcast %cst_64 : f32 to vector<8x32xf32>
    %258 = arith.addf %257, %256 : vector<8x32xf32>
    %259 = arith.divf %257, %258 : vector<8x32xf32>
    %260 = vector.extract_strided_slice %247 {offsets = [0, 64], sizes = [8, 32], strides = [1, 1]} : vector<8x128xf32> to vector<8x32xf32>
    %261 = math.tanh %260 : vector<8x32xf32>
    %262 = vector.extract_strided_slice %247 {offsets = [0, 96], sizes = [8, 32], strides = [1, 1]} : vector<8x128xf32> to vector<8x32xf32>
    %263 = arith.negf %262 : vector<8x32xf32>
    %264 = math.exp %263 : vector<8x32xf32>
    %cst_65 = arith.constant 1.000000e+00 : f32
    %265 = vector.broadcast %cst_65 : f32 to vector<8x32xf32>
    %266 = arith.addf %265, %264 : vector<8x32xf32>
    %267 = arith.divf %265, %266 : vector<8x32xf32>
    %268 = arith.mulf %259, %189 : vector<8x32xf32>
    %269 = arith.mulf %253, %261 : vector<8x32xf32>
    %270 = arith.addf %268, %269 : vector<8x32xf32>
    %271 = math.tanh %270 : vector<8x32xf32>
    %272 = arith.mulf %267, %271 : vector<8x32xf32>
    %273 = vector.broadcast %208 : i32 to vector<8x1xi32>
    %274 = arith.cmpi slt, %273, %3 : vector<8x1xi32>
    %275 = vector.broadcast %209 : i32 to vector<8x1xi32>
    %276 = arith.cmpi slt, %275, %3 : vector<8x1xi32>
    %277 = vector.shape_cast %274 : vector<8x1xi1> to vector<8x1xi1>
    %278 = vector.broadcast %277 : vector<8x1xi1> to vector<8x32xi1>
    %279 = arith.select %278, %241, %180 : vector<8x32xi1>, vector<8x32xf32>
    %280 = vector.shape_cast %274 : vector<8x1xi1> to vector<8x1xi1>
    %281 = vector.broadcast %280 : vector<8x1xi1> to vector<8x32xi1>
    %282 = arith.select %281, %239, %183 : vector<8x32xi1>, vector<8x32xf32>
    %283 = vector.shape_cast %276 : vector<8x1xi1> to vector<8x1xi1>
    %284 = vector.broadcast %283 : vector<8x1xi1> to vector<8x32xi1>
    %285 = arith.select %284, %272, %186 : vector<8x32xi1>, vector<8x32xf32>
    %286 = vector.shape_cast %276 : vector<8x1xi1> to vector<8x1xi1>
    %287 = vector.broadcast %286 : vector<8x1xi1> to vector<8x32xi1>
    %288 = arith.select %287, %270, %189 : vector<8x32xi1>, vector<8x32xf32>
    %cst_66 = arith.constant 0.000000e+00 : f32
    %289 = vector.broadcast %cst_66 : f32 to vector<8x32xf32>
    %290 = vector.shape_cast %274 : vector<8x1xi1> to vector<8x1xi1>
    %291 = vector.broadcast %290 : vector<8x1xi1> to vector<8x32xi1>
    %292 = arith.select %291, %241, %289 : vector<8x32xi1>, vector<8x32xf32>
    %293 = arith.index_cast %c2_i32 : i32 to index
    %c0_67 = arith.constant 0 : index
    %c0_68 = arith.constant 0 : index
    %294 = vector.load %arg5[%293, %c0_67, %c0_68] : memref<8x8x32xf32, #tpu.memory_space<vmem>>, vector<1x8x32xf32>
    %295 = vector.shape_cast %294 : vector<1x8x32xf32> to vector<8x32xf32>
    %296 = vector.shape_cast %292 : vector<8x32xf32> to vector<1x8x32xf32>
    tpu.vector_store %arg5[%293, %c0_67, %c0_68], %296 {strides = array<i32>} : memref<8x8x32xf32, #tpu.memory_space<vmem>>, vector<1x8x32xf32>,
    %cst_69 = arith.constant 0.000000e+00 : f32
    %297 = vector.broadcast %cst_69 : f32 to vector<8x32xf32>
    %298 = vector.shape_cast %276 : vector<8x1xi1> to vector<8x1xi1>
    %299 = vector.broadcast %298 : vector<8x1xi1> to vector<8x32xi1>
    %300 = arith.select %299, %272, %297 : vector<8x32xi1>, vector<8x32xf32>
    %c7_i32_70 = arith.constant 7 : i32
    %301 = arith.subi %c7_i32_70, %c2_i32 : i32
    %302 = arith.index_cast %301 : i32 to index
    %c0_71 = arith.constant 0 : index
    %c0_72 = arith.constant 0 : index
    %303 = vector.load %arg6[%302, %c0_71, %c0_72] : memref<8x8x32xf32, #tpu.memory_space<vmem>>, vector<1x8x32xf32>
    %304 = vector.shape_cast %303 : vector<1x8x32xf32> to vector<8x32xf32>
    %305 = vector.shape_cast %300 : vector<8x32xf32> to vector<1x8x32xf32>
    tpu.vector_store %arg6[%302, %c0_71, %c0_72], %305 {strides = array<i32>} : memref<8x8x32xf32, #tpu.memory_space<vmem>>, vector<1x8x32xf32>,
    %c3_i32 = arith.constant 3 : i32
    %c8_i32_73 = arith.constant 8 : i32
    %306 = arith.muli %arg0, %c8_i32_73 : i32
    %307 = arith.addi %306, %c3_i32 : i32
    %c7_i32_74 = arith.constant 7 : i32
    %308 = arith.subi %c7_i32_74, %307 : i32
    %309 = tpu.concatenate %279, %285 in 1 : vector<8x32xf32>, vector<8x32xf32> -> vector<8x64xf32>
    %cst_75 = arith.constant dense<0.000000e+00> : vector<8x256xf32>
    %310 = tpu.matmul %309, %4, %cst_75 {dimension_numbers = #tpu.dot_dimension_numbers<[1], [0], [0], [1], [0, 0, 1, 1], [], []>} : vector<8x64xf32>, vector<64x256xf32>, vector<8x256xf32> -> vector<8x256xf32>
    %311 = arith.index_cast %c3_i32 : i32 to index
    %c0_76 = arith.constant 0 : index
    %c0_77 = arith.constant 0 : index
    %312 = vector.load %arg2[%311, %c0_76, %c0_77] : memref<8x8x128xf32, #tpu.memory_space<vmem>>, vector<1x8x128xf32>
    %313 = vector.shape_cast %312 : vector<1x8x128xf32> to vector<8x128xf32>
    %314 = vector.extract_strided_slice %310 {offsets = [0, 0], sizes = [8, 128], strides = [1, 1]} : vector<8x256xf32> to vector<8x128xf32>
    %315 = arith.addf %313, %314 : vector<8x128xf32>
    %316 = vector.extract_strided_slice %315 {offsets = [0, 0], sizes = [8, 32], strides = [1, 1]} : vector<8x128xf32> to vector<8x32xf32>
    %317 = arith.negf %316 : vector<8x32xf32>
    %318 = math.exp %317 : vector<8x32xf32>
    %cst_78 = arith.constant 1.000000e+00 : f32
    %319 = vector.broadcast %cst_78 : f32 to vector<8x32xf32>
    %320 = arith.addf %319, %318 : vector<8x32xf32>
    %321 = arith.divf %319, %320 : vector<8x32xf32>
    %322 = vector.extract_strided_slice %315 {offsets = [0, 32], sizes = [8, 32], strides = [1, 1]} : vector<8x128xf32> to vector<8x32xf32>
    %323 = arith.negf %322 : vector<8x32xf32>
    %324 = math.exp %323 : vector<8x32xf32>
    %cst_79 = arith.constant 1.000000e+00 : f32
    %325 = vector.broadcast %cst_79 : f32 to vector<8x32xf32>
    %326 = arith.addf %325, %324 : vector<8x32xf32>
    %327 = arith.divf %325, %326 : vector<8x32xf32>
    %328 = vector.extract_strided_slice %315 {offsets = [0, 64], sizes = [8, 32], strides = [1, 1]} : vector<8x128xf32> to vector<8x32xf32>
    %329 = math.tanh %328 : vector<8x32xf32>
    %330 = vector.extract_strided_slice %315 {offsets = [0, 96], sizes = [8, 32], strides = [1, 1]} : vector<8x128xf32> to vector<8x32xf32>
    %331 = arith.negf %330 : vector<8x32xf32>
    %332 = math.exp %331 : vector<8x32xf32>
    %cst_80 = arith.constant 1.000000e+00 : f32
    %333 = vector.broadcast %cst_80 : f32 to vector<8x32xf32>
    %334 = arith.addf %333, %332 : vector<8x32xf32>
    %335 = arith.divf %333, %334 : vector<8x32xf32>
    %336 = arith.mulf %327, %282 : vector<8x32xf32>
    %337 = arith.mulf %321, %329 : vector<8x32xf32>
    %338 = arith.addf %336, %337 : vector<8x32xf32>
    %339 = math.tanh %338 : vector<8x32xf32>
    %340 = arith.mulf %335, %339 : vector<8x32xf32>
    %c7_i32_81 = arith.constant 7 : i32
    %341 = arith.subi %c7_i32_81, %c3_i32 : i32
    %342 = arith.index_cast %341 : i32 to index
    %c0_82 = arith.constant 0 : index
    %c0_83 = arith.constant 0 : index
    %343 = vector.load %arg3[%342, %c0_82, %c0_83] : memref<8x8x128xf32, #tpu.memory_space<vmem>>, vector<1x8x128xf32>
    %344 = vector.shape_cast %343 : vector<1x8x128xf32> to vector<8x128xf32>
    %345 = vector.extract_strided_slice %310 {offsets = [0, 128], sizes = [8, 128], strides = [1, 1]} : vector<8x256xf32> to vector<8x128xf32>
    %346 = arith.addf %344, %345 : vector<8x128xf32>
    %347 = vector.extract_strided_slice %346 {offsets = [0, 0], sizes = [8, 32], strides = [1, 1]} : vector<8x128xf32> to vector<8x32xf32>
    %348 = arith.negf %347 : vector<8x32xf32>
    %349 = math.exp %348 : vector<8x32xf32>
    %cst_84 = arith.constant 1.000000e+00 : f32
    %350 = vector.broadcast %cst_84 : f32 to vector<8x32xf32>
    %351 = arith.addf %350, %349 : vector<8x32xf32>
    %352 = arith.divf %350, %351 : vector<8x32xf32>
    %353 = vector.extract_strided_slice %346 {offsets = [0, 32], sizes = [8, 32], strides = [1, 1]} : vector<8x128xf32> to vector<8x32xf32>
    %354 = arith.negf %353 : vector<8x32xf32>
    %355 = math.exp %354 : vector<8x32xf32>
    %cst_85 = arith.constant 1.000000e+00 : f32
    %356 = vector.broadcast %cst_85 : f32 to vector<8x32xf32>
    %357 = arith.addf %356, %355 : vector<8x32xf32>
    %358 = arith.divf %356, %357 : vector<8x32xf32>
    %359 = vector.extract_strided_slice %346 {offsets = [0, 64], sizes = [8, 32], strides = [1, 1]} : vector<8x128xf32> to vector<8x32xf32>
    %360 = math.tanh %359 : vector<8x32xf32>
    %361 = vector.extract_strided_slice %346 {offsets = [0, 96], sizes = [8, 32], strides = [1, 1]} : vector<8x128xf32> to vector<8x32xf32>
    %362 = arith.negf %361 : vector<8x32xf32>
    %363 = math.exp %362 : vector<8x32xf32>
    %cst_86 = arith.constant 1.000000e+00 : f32
    %364 = vector.broadcast %cst_86 : f32 to vector<8x32xf32>
    %365 = arith.addf %364, %363 : vector<8x32xf32>
    %366 = arith.divf %364, %365 : vector<8x32xf32>
    %367 = arith.mulf %358, %288 : vector<8x32xf32>
    %368 = arith.mulf %352, %360 : vector<8x32xf32>
    %369 = arith.addf %367, %368 : vector<8x32xf32>
    %370 = math.tanh %369 : vector<8x32xf32>
    %371 = arith.mulf %366, %370 : vector<8x32xf32>
    %372 = vector.broadcast %307 : i32 to vector<8x1xi32>
    %373 = arith.cmpi slt, %372, %3 : vector<8x1xi32>
    %374 = vector.broadcast %308 : i32 to vector<8x1xi32>
    %375 = arith.cmpi slt, %374, %3 : vector<8x1xi32>
    %376 = vector.shape_cast %373 : vector<8x1xi1> to vector<8x1xi1>
    %377 = vector.broadcast %376 : vector<8x1xi1> to vector<8x32xi1>
    %378 = arith.select %377, %340, %279 : vector<8x32xi1>, vector<8x32xf32>
    %379 = vector.shape_cast %373 : vector<8x1xi1> to vector<8x1xi1>
    %380 = vector.broadcast %379 : vector<8x1xi1> to vector<8x32xi1>
    %381 = arith.select %380, %338, %282 : vector<8x32xi1>, vector<8x32xf32>
    %382 = vector.shape_cast %375 : vector<8x1xi1> to vector<8x1xi1>
    %383 = vector.broadcast %382 : vector<8x1xi1> to vector<8x32xi1>
    %384 = arith.select %383, %371, %285 : vector<8x32xi1>, vector<8x32xf32>
    %385 = vector.shape_cast %375 : vector<8x1xi1> to vector<8x1xi1>
    %386 = vector.broadcast %385 : vector<8x1xi1> to vector<8x32xi1>
    %387 = arith.select %386, %369, %288 : vector<8x32xi1>, vector<8x32xf32>
    %cst_87 = arith.constant 0.000000e+00 : f32
    %388 = vector.broadcast %cst_87 : f32 to vector<8x32xf32>
    %389 = vector.shape_cast %373 : vector<8x1xi1> to vector<8x1xi1>
    %390 = vector.broadcast %389 : vector<8x1xi1> to vector<8x32xi1>
    %391 = arith.select %390, %340, %388 : vector<8x32xi1>, vector<8x32xf32>
    %392 = arith.index_cast %c3_i32 : i32 to index
    %c0_88 = arith.constant 0 : index
    %c0_89 = arith.constant 0 : index
    %393 = vector.load %arg5[%392, %c0_88, %c0_89] : memref<8x8x32xf32, #tpu.memory_space<vmem>>, vector<1x8x32xf32>
    %394 = vector.shape_cast %393 : vector<1x8x32xf32> to vector<8x32xf32>
    %395 = vector.shape_cast %391 : vector<8x32xf32> to vector<1x8x32xf32>
    tpu.vector_store %arg5[%392, %c0_88, %c0_89], %395 {strides = array<i32>} : memref<8x8x32xf32, #tpu.memory_space<vmem>>, vector<1x8x32xf32>,
    %cst_90 = arith.constant 0.000000e+00 : f32
    %396 = vector.broadcast %cst_90 : f32 to vector<8x32xf32>
    %397 = vector.shape_cast %375 : vector<8x1xi1> to vector<8x1xi1>
    %398 = vector.broadcast %397 : vector<8x1xi1> to vector<8x32xi1>
    %399 = arith.select %398, %371, %396 : vector<8x32xi1>, vector<8x32xf32>
    %c7_i32_91 = arith.constant 7 : i32
    %400 = arith.subi %c7_i32_91, %c3_i32 : i32
    %401 = arith.index_cast %400 : i32 to index
    %c0_92 = arith.constant 0 : index
    %c0_93 = arith.constant 0 : index
    %402 = vector.load %arg6[%401, %c0_92, %c0_93] : memref<8x8x32xf32, #tpu.memory_space<vmem>>, vector<1x8x32xf32>
    %403 = vector.shape_cast %402 : vector<1x8x32xf32> to vector<8x32xf32>
    %404 = vector.shape_cast %399 : vector<8x32xf32> to vector<1x8x32xf32>
    tpu.vector_store %arg6[%401, %c0_92, %c0_93], %404 {strides = array<i32>} : memref<8x8x32xf32, #tpu.memory_space<vmem>>, vector<1x8x32xf32>,
    %c4_i32 = arith.constant 4 : i32
    %c8_i32_94 = arith.constant 8 : i32
    %405 = arith.muli %arg0, %c8_i32_94 : i32
    %406 = arith.addi %405, %c4_i32 : i32
    %c7_i32_95 = arith.constant 7 : i32
    %407 = arith.subi %c7_i32_95, %406 : i32
    %408 = tpu.concatenate %378, %384 in 1 : vector<8x32xf32>, vector<8x32xf32> -> vector<8x64xf32>
    %cst_96 = arith.constant dense<0.000000e+00> : vector<8x256xf32>
    %409 = tpu.matmul %408, %4, %cst_96 {dimension_numbers = #tpu.dot_dimension_numbers<[1], [0], [0], [1], [0, 0, 1, 1], [], []>} : vector<8x64xf32>, vector<64x256xf32>, vector<8x256xf32> -> vector<8x256xf32>
    %410 = arith.index_cast %c4_i32 : i32 to index
    %c0_97 = arith.constant 0 : index
    %c0_98 = arith.constant 0 : index
    %411 = vector.load %arg2[%410, %c0_97, %c0_98] : memref<8x8x128xf32, #tpu.memory_space<vmem>>, vector<1x8x128xf32>
    %412 = vector.shape_cast %411 : vector<1x8x128xf32> to vector<8x128xf32>
    %413 = vector.extract_strided_slice %409 {offsets = [0, 0], sizes = [8, 128], strides = [1, 1]} : vector<8x256xf32> to vector<8x128xf32>
    %414 = arith.addf %412, %413 : vector<8x128xf32>
    %415 = vector.extract_strided_slice %414 {offsets = [0, 0], sizes = [8, 32], strides = [1, 1]} : vector<8x128xf32> to vector<8x32xf32>
    %416 = arith.negf %415 : vector<8x32xf32>
    %417 = math.exp %416 : vector<8x32xf32>
    %cst_99 = arith.constant 1.000000e+00 : f32
    %418 = vector.broadcast %cst_99 : f32 to vector<8x32xf32>
    %419 = arith.addf %418, %417 : vector<8x32xf32>
    %420 = arith.divf %418, %419 : vector<8x32xf32>
    %421 = vector.extract_strided_slice %414 {offsets = [0, 32], sizes = [8, 32], strides = [1, 1]} : vector<8x128xf32> to vector<8x32xf32>
    %422 = arith.negf %421 : vector<8x32xf32>
    %423 = math.exp %422 : vector<8x32xf32>
    %cst_100 = arith.constant 1.000000e+00 : f32
    %424 = vector.broadcast %cst_100 : f32 to vector<8x32xf32>
    %425 = arith.addf %424, %423 : vector<8x32xf32>
    %426 = arith.divf %424, %425 : vector<8x32xf32>
    %427 = vector.extract_strided_slice %414 {offsets = [0, 64], sizes = [8, 32], strides = [1, 1]} : vector<8x128xf32> to vector<8x32xf32>
    %428 = math.tanh %427 : vector<8x32xf32>
    %429 = vector.extract_strided_slice %414 {offsets = [0, 96], sizes = [8, 32], strides = [1, 1]} : vector<8x128xf32> to vector<8x32xf32>
    %430 = arith.negf %429 : vector<8x32xf32>
    %431 = math.exp %430 : vector<8x32xf32>
    %cst_101 = arith.constant 1.000000e+00 : f32
    %432 = vector.broadcast %cst_101 : f32 to vector<8x32xf32>
    %433 = arith.addf %432, %431 : vector<8x32xf32>
    %434 = arith.divf %432, %433 : vector<8x32xf32>
    %435 = arith.mulf %426, %381 : vector<8x32xf32>
    %436 = arith.mulf %420, %428 : vector<8x32xf32>
    %437 = arith.addf %435, %436 : vector<8x32xf32>
    %438 = math.tanh %437 : vector<8x32xf32>
    %439 = arith.mulf %434, %438 : vector<8x32xf32>
    %c7_i32_102 = arith.constant 7 : i32
    %440 = arith.subi %c7_i32_102, %c4_i32 : i32
    %441 = arith.index_cast %440 : i32 to index
    %c0_103 = arith.constant 0 : index
    %c0_104 = arith.constant 0 : index
    %442 = vector.load %arg3[%441, %c0_103, %c0_104] : memref<8x8x128xf32, #tpu.memory_space<vmem>>, vector<1x8x128xf32>
    %443 = vector.shape_cast %442 : vector<1x8x128xf32> to vector<8x128xf32>
    %444 = vector.extract_strided_slice %409 {offsets = [0, 128], sizes = [8, 128], strides = [1, 1]} : vector<8x256xf32> to vector<8x128xf32>
    %445 = arith.addf %443, %444 : vector<8x128xf32>
    %446 = vector.extract_strided_slice %445 {offsets = [0, 0], sizes = [8, 32], strides = [1, 1]} : vector<8x128xf32> to vector<8x32xf32>
    %447 = arith.negf %446 : vector<8x32xf32>
    %448 = math.exp %447 : vector<8x32xf32>
    %cst_105 = arith.constant 1.000000e+00 : f32
    %449 = vector.broadcast %cst_105 : f32 to vector<8x32xf32>
    %450 = arith.addf %449, %448 : vector<8x32xf32>
    %451 = arith.divf %449, %450 : vector<8x32xf32>
    %452 = vector.extract_strided_slice %445 {offsets = [0, 32], sizes = [8, 32], strides = [1, 1]} : vector<8x128xf32> to vector<8x32xf32>
    %453 = arith.negf %452 : vector<8x32xf32>
    %454 = math.exp %453 : vector<8x32xf32>
    %cst_106 = arith.constant 1.000000e+00 : f32
    %455 = vector.broadcast %cst_106 : f32 to vector<8x32xf32>
    %456 = arith.addf %455, %454 : vector<8x32xf32>
    %457 = arith.divf %455, %456 : vector<8x32xf32>
    %458 = vector.extract_strided_slice %445 {offsets = [0, 64], sizes = [8, 32], strides = [1, 1]} : vector<8x128xf32> to vector<8x32xf32>
    %459 = math.tanh %458 : vector<8x32xf32>
    %460 = vector.extract_strided_slice %445 {offsets = [0, 96], sizes = [8, 32], strides = [1, 1]} : vector<8x128xf32> to vector<8x32xf32>
    %461 = arith.negf %460 : vector<8x32xf32>
    %462 = math.exp %461 : vector<8x32xf32>
    %cst_107 = arith.constant 1.000000e+00 : f32
    %463 = vector.broadcast %cst_107 : f32 to vector<8x32xf32>
    %464 = arith.addf %463, %462 : vector<8x32xf32>
    %465 = arith.divf %463, %464 : vector<8x32xf32>
    %466 = arith.mulf %457, %387 : vector<8x32xf32>
    %467 = arith.mulf %451, %459 : vector<8x32xf32>
    %468 = arith.addf %466, %467 : vector<8x32xf32>
    %469 = math.tanh %468 : vector<8x32xf32>
    %470 = arith.mulf %465, %469 : vector<8x32xf32>
    %471 = vector.broadcast %406 : i32 to vector<8x1xi32>
    %472 = arith.cmpi slt, %471, %3 : vector<8x1xi32>
    %473 = vector.broadcast %407 : i32 to vector<8x1xi32>
    %474 = arith.cmpi slt, %473, %3 : vector<8x1xi32>
    %475 = vector.shape_cast %472 : vector<8x1xi1> to vector<8x1xi1>
    %476 = vector.broadcast %475 : vector<8x1xi1> to vector<8x32xi1>
    %477 = arith.select %476, %439, %378 : vector<8x32xi1>, vector<8x32xf32>
    %478 = vector.shape_cast %472 : vector<8x1xi1> to vector<8x1xi1>
    %479 = vector.broadcast %478 : vector<8x1xi1> to vector<8x32xi1>
    %480 = arith.select %479, %437, %381 : vector<8x32xi1>, vector<8x32xf32>
    %481 = vector.shape_cast %474 : vector<8x1xi1> to vector<8x1xi1>
    %482 = vector.broadcast %481 : vector<8x1xi1> to vector<8x32xi1>
    %483 = arith.select %482, %470, %384 : vector<8x32xi1>, vector<8x32xf32>
    %484 = vector.shape_cast %474 : vector<8x1xi1> to vector<8x1xi1>
    %485 = vector.broadcast %484 : vector<8x1xi1> to vector<8x32xi1>
    %486 = arith.select %485, %468, %387 : vector<8x32xi1>, vector<8x32xf32>
    %cst_108 = arith.constant 0.000000e+00 : f32
    %487 = vector.broadcast %cst_108 : f32 to vector<8x32xf32>
    %488 = vector.shape_cast %472 : vector<8x1xi1> to vector<8x1xi1>
    %489 = vector.broadcast %488 : vector<8x1xi1> to vector<8x32xi1>
    %490 = arith.select %489, %439, %487 : vector<8x32xi1>, vector<8x32xf32>
    %491 = arith.index_cast %c4_i32 : i32 to index
    %c0_109 = arith.constant 0 : index
    %c0_110 = arith.constant 0 : index
    %492 = vector.load %arg5[%491, %c0_109, %c0_110] : memref<8x8x32xf32, #tpu.memory_space<vmem>>, vector<1x8x32xf32>
    %493 = vector.shape_cast %492 : vector<1x8x32xf32> to vector<8x32xf32>
    %494 = vector.shape_cast %490 : vector<8x32xf32> to vector<1x8x32xf32>
    tpu.vector_store %arg5[%491, %c0_109, %c0_110], %494 {strides = array<i32>} : memref<8x8x32xf32, #tpu.memory_space<vmem>>, vector<1x8x32xf32>,
    %cst_111 = arith.constant 0.000000e+00 : f32
    %495 = vector.broadcast %cst_111 : f32 to vector<8x32xf32>
    %496 = vector.shape_cast %474 : vector<8x1xi1> to vector<8x1xi1>
    %497 = vector.broadcast %496 : vector<8x1xi1> to vector<8x32xi1>
    %498 = arith.select %497, %470, %495 : vector<8x32xi1>, vector<8x32xf32>
    %c7_i32_112 = arith.constant 7 : i32
    %499 = arith.subi %c7_i32_112, %c4_i32 : i32
    %500 = arith.index_cast %499 : i32 to index
    %c0_113 = arith.constant 0 : index
    %c0_114 = arith.constant 0 : index
    %501 = vector.load %arg6[%500, %c0_113, %c0_114] : memref<8x8x32xf32, #tpu.memory_space<vmem>>, vector<1x8x32xf32>
    %502 = vector.shape_cast %501 : vector<1x8x32xf32> to vector<8x32xf32>
    %503 = vector.shape_cast %498 : vector<8x32xf32> to vector<1x8x32xf32>
    tpu.vector_store %arg6[%500, %c0_113, %c0_114], %503 {strides = array<i32>} : memref<8x8x32xf32, #tpu.memory_space<vmem>>, vector<1x8x32xf32>,
    %c5_i32 = arith.constant 5 : i32
    %c8_i32_115 = arith.constant 8 : i32
    %504 = arith.muli %arg0, %c8_i32_115 : i32
    %505 = arith.addi %504, %c5_i32 : i32
    %c7_i32_116 = arith.constant 7 : i32
    %506 = arith.subi %c7_i32_116, %505 : i32
    %507 = tpu.concatenate %477, %483 in 1 : vector<8x32xf32>, vector<8x32xf32> -> vector<8x64xf32>
    %cst_117 = arith.constant dense<0.000000e+00> : vector<8x256xf32>
    %508 = tpu.matmul %507, %4, %cst_117 {dimension_numbers = #tpu.dot_dimension_numbers<[1], [0], [0], [1], [0, 0, 1, 1], [], []>} : vector<8x64xf32>, vector<64x256xf32>, vector<8x256xf32> -> vector<8x256xf32>
    %509 = arith.index_cast %c5_i32 : i32 to index
    %c0_118 = arith.constant 0 : index
    %c0_119 = arith.constant 0 : index
    %510 = vector.load %arg2[%509, %c0_118, %c0_119] : memref<8x8x128xf32, #tpu.memory_space<vmem>>, vector<1x8x128xf32>
    %511 = vector.shape_cast %510 : vector<1x8x128xf32> to vector<8x128xf32>
    %512 = vector.extract_strided_slice %508 {offsets = [0, 0], sizes = [8, 128], strides = [1, 1]} : vector<8x256xf32> to vector<8x128xf32>
    %513 = arith.addf %511, %512 : vector<8x128xf32>
    %514 = vector.extract_strided_slice %513 {offsets = [0, 0], sizes = [8, 32], strides = [1, 1]} : vector<8x128xf32> to vector<8x32xf32>
    %515 = arith.negf %514 : vector<8x32xf32>
    %516 = math.exp %515 : vector<8x32xf32>
    %cst_120 = arith.constant 1.000000e+00 : f32
    %517 = vector.broadcast %cst_120 : f32 to vector<8x32xf32>
    %518 = arith.addf %517, %516 : vector<8x32xf32>
    %519 = arith.divf %517, %518 : vector<8x32xf32>
    %520 = vector.extract_strided_slice %513 {offsets = [0, 32], sizes = [8, 32], strides = [1, 1]} : vector<8x128xf32> to vector<8x32xf32>
    %521 = arith.negf %520 : vector<8x32xf32>
    %522 = math.exp %521 : vector<8x32xf32>
    %cst_121 = arith.constant 1.000000e+00 : f32
    %523 = vector.broadcast %cst_121 : f32 to vector<8x32xf32>
    %524 = arith.addf %523, %522 : vector<8x32xf32>
    %525 = arith.divf %523, %524 : vector<8x32xf32>
    %526 = vector.extract_strided_slice %513 {offsets = [0, 64], sizes = [8, 32], strides = [1, 1]} : vector<8x128xf32> to vector<8x32xf32>
    %527 = math.tanh %526 : vector<8x32xf32>
    %528 = vector.extract_strided_slice %513 {offsets = [0, 96], sizes = [8, 32], strides = [1, 1]} : vector<8x128xf32> to vector<8x32xf32>
    %529 = arith.negf %528 : vector<8x32xf32>
    %530 = math.exp %529 : vector<8x32xf32>
    %cst_122 = arith.constant 1.000000e+00 : f32
    %531 = vector.broadcast %cst_122 : f32 to vector<8x32xf32>
    %532 = arith.addf %531, %530 : vector<8x32xf32>
    %533 = arith.divf %531, %532 : vector<8x32xf32>
    %534 = arith.mulf %525, %480 : vector<8x32xf32>
    %535 = arith.mulf %519, %527 : vector<8x32xf32>
    %536 = arith.addf %534, %535 : vector<8x32xf32>
    %537 = math.tanh %536 : vector<8x32xf32>
    %538 = arith.mulf %533, %537 : vector<8x32xf32>
    %c7_i32_123 = arith.constant 7 : i32
    %539 = arith.subi %c7_i32_123, %c5_i32 : i32
    %540 = arith.index_cast %539 : i32 to index
    %c0_124 = arith.constant 0 : index
    %c0_125 = arith.constant 0 : index
    %541 = vector.load %arg3[%540, %c0_124, %c0_125] : memref<8x8x128xf32, #tpu.memory_space<vmem>>, vector<1x8x128xf32>
    %542 = vector.shape_cast %541 : vector<1x8x128xf32> to vector<8x128xf32>
    %543 = vector.extract_strided_slice %508 {offsets = [0, 128], sizes = [8, 128], strides = [1, 1]} : vector<8x256xf32> to vector<8x128xf32>
    %544 = arith.addf %542, %543 : vector<8x128xf32>
    %545 = vector.extract_strided_slice %544 {offsets = [0, 0], sizes = [8, 32], strides = [1, 1]} : vector<8x128xf32> to vector<8x32xf32>
    %546 = arith.negf %545 : vector<8x32xf32>
    %547 = math.exp %546 : vector<8x32xf32>
    %cst_126 = arith.constant 1.000000e+00 : f32
    %548 = vector.broadcast %cst_126 : f32 to vector<8x32xf32>
    %549 = arith.addf %548, %547 : vector<8x32xf32>
    %550 = arith.divf %548, %549 : vector<8x32xf32>
    %551 = vector.extract_strided_slice %544 {offsets = [0, 32], sizes = [8, 32], strides = [1, 1]} : vector<8x128xf32> to vector<8x32xf32>
    %552 = arith.negf %551 : vector<8x32xf32>
    %553 = math.exp %552 : vector<8x32xf32>
    %cst_127 = arith.constant 1.000000e+00 : f32
    %554 = vector.broadcast %cst_127 : f32 to vector<8x32xf32>
    %555 = arith.addf %554, %553 : vector<8x32xf32>
    %556 = arith.divf %554, %555 : vector<8x32xf32>
    %557 = vector.extract_strided_slice %544 {offsets = [0, 64], sizes = [8, 32], strides = [1, 1]} : vector<8x128xf32> to vector<8x32xf32>
    %558 = math.tanh %557 : vector<8x32xf32>
    %559 = vector.extract_strided_slice %544 {offsets = [0, 96], sizes = [8, 32], strides = [1, 1]} : vector<8x128xf32> to vector<8x32xf32>
    %560 = arith.negf %559 : vector<8x32xf32>
    %561 = math.exp %560 : vector<8x32xf32>
    %cst_128 = arith.constant 1.000000e+00 : f32
    %562 = vector.broadcast %cst_128 : f32 to vector<8x32xf32>
    %563 = arith.addf %562, %561 : vector<8x32xf32>
    %564 = arith.divf %562, %563 : vector<8x32xf32>
    %565 = arith.mulf %556, %486 : vector<8x32xf32>
    %566 = arith.mulf %550, %558 : vector<8x32xf32>
    %567 = arith.addf %565, %566 : vector<8x32xf32>
    %568 = math.tanh %567 : vector<8x32xf32>
    %569 = arith.mulf %564, %568 : vector<8x32xf32>
    %570 = vector.broadcast %505 : i32 to vector<8x1xi32>
    %571 = arith.cmpi slt, %570, %3 : vector<8x1xi32>
    %572 = vector.broadcast %506 : i32 to vector<8x1xi32>
    %573 = arith.cmpi slt, %572, %3 : vector<8x1xi32>
    %574 = vector.shape_cast %571 : vector<8x1xi1> to vector<8x1xi1>
    %575 = vector.broadcast %574 : vector<8x1xi1> to vector<8x32xi1>
    %576 = arith.select %575, %538, %477 : vector<8x32xi1>, vector<8x32xf32>
    %577 = vector.shape_cast %571 : vector<8x1xi1> to vector<8x1xi1>
    %578 = vector.broadcast %577 : vector<8x1xi1> to vector<8x32xi1>
    %579 = arith.select %578, %536, %480 : vector<8x32xi1>, vector<8x32xf32>
    %580 = vector.shape_cast %573 : vector<8x1xi1> to vector<8x1xi1>
    %581 = vector.broadcast %580 : vector<8x1xi1> to vector<8x32xi1>
    %582 = arith.select %581, %569, %483 : vector<8x32xi1>, vector<8x32xf32>
    %583 = vector.shape_cast %573 : vector<8x1xi1> to vector<8x1xi1>
    %584 = vector.broadcast %583 : vector<8x1xi1> to vector<8x32xi1>
    %585 = arith.select %584, %567, %486 : vector<8x32xi1>, vector<8x32xf32>
    %cst_129 = arith.constant 0.000000e+00 : f32
    %586 = vector.broadcast %cst_129 : f32 to vector<8x32xf32>
    %587 = vector.shape_cast %571 : vector<8x1xi1> to vector<8x1xi1>
    %588 = vector.broadcast %587 : vector<8x1xi1> to vector<8x32xi1>
    %589 = arith.select %588, %538, %586 : vector<8x32xi1>, vector<8x32xf32>
    %590 = arith.index_cast %c5_i32 : i32 to index
    %c0_130 = arith.constant 0 : index
    %c0_131 = arith.constant 0 : index
    %591 = vector.load %arg5[%590, %c0_130, %c0_131] : memref<8x8x32xf32, #tpu.memory_space<vmem>>, vector<1x8x32xf32>
    %592 = vector.shape_cast %591 : vector<1x8x32xf32> to vector<8x32xf32>
    %593 = vector.shape_cast %589 : vector<8x32xf32> to vector<1x8x32xf32>
    tpu.vector_store %arg5[%590, %c0_130, %c0_131], %593 {strides = array<i32>} : memref<8x8x32xf32, #tpu.memory_space<vmem>>, vector<1x8x32xf32>,
    %cst_132 = arith.constant 0.000000e+00 : f32
    %594 = vector.broadcast %cst_132 : f32 to vector<8x32xf32>
    %595 = vector.shape_cast %573 : vector<8x1xi1> to vector<8x1xi1>
    %596 = vector.broadcast %595 : vector<8x1xi1> to vector<8x32xi1>
    %597 = arith.select %596, %569, %594 : vector<8x32xi1>, vector<8x32xf32>
    %c7_i32_133 = arith.constant 7 : i32
    %598 = arith.subi %c7_i32_133, %c5_i32 : i32
    %599 = arith.index_cast %598 : i32 to index
    %c0_134 = arith.constant 0 : index
    %c0_135 = arith.constant 0 : index
    %600 = vector.load %arg6[%599, %c0_134, %c0_135] : memref<8x8x32xf32, #tpu.memory_space<vmem>>, vector<1x8x32xf32>
    %601 = vector.shape_cast %600 : vector<1x8x32xf32> to vector<8x32xf32>
    %602 = vector.shape_cast %597 : vector<8x32xf32> to vector<1x8x32xf32>
    tpu.vector_store %arg6[%599, %c0_134, %c0_135], %602 {strides = array<i32>} : memref<8x8x32xf32, #tpu.memory_space<vmem>>, vector<1x8x32xf32>,
    %c6_i32 = arith.constant 6 : i32
    %c8_i32_136 = arith.constant 8 : i32
    %603 = arith.muli %arg0, %c8_i32_136 : i32
    %604 = arith.addi %603, %c6_i32 : i32
    %c7_i32_137 = arith.constant 7 : i32
    %605 = arith.subi %c7_i32_137, %604 : i32
    %606 = tpu.concatenate %576, %582 in 1 : vector<8x32xf32>, vector<8x32xf32> -> vector<8x64xf32>
    %cst_138 = arith.constant dense<0.000000e+00> : vector<8x256xf32>
    %607 = tpu.matmul %606, %4, %cst_138 {dimension_numbers = #tpu.dot_dimension_numbers<[1], [0], [0], [1], [0, 0, 1, 1], [], []>} : vector<8x64xf32>, vector<64x256xf32>, vector<8x256xf32> -> vector<8x256xf32>
    %608 = arith.index_cast %c6_i32 : i32 to index
    %c0_139 = arith.constant 0 : index
    %c0_140 = arith.constant 0 : index
    %609 = vector.load %arg2[%608, %c0_139, %c0_140] : memref<8x8x128xf32, #tpu.memory_space<vmem>>, vector<1x8x128xf32>
    %610 = vector.shape_cast %609 : vector<1x8x128xf32> to vector<8x128xf32>
    %611 = vector.extract_strided_slice %607 {offsets = [0, 0], sizes = [8, 128], strides = [1, 1]} : vector<8x256xf32> to vector<8x128xf32>
    %612 = arith.addf %610, %611 : vector<8x128xf32>
    %613 = vector.extract_strided_slice %612 {offsets = [0, 0], sizes = [8, 32], strides = [1, 1]} : vector<8x128xf32> to vector<8x32xf32>
    %614 = arith.negf %613 : vector<8x32xf32>
    %615 = math.exp %614 : vector<8x32xf32>
    %cst_141 = arith.constant 1.000000e+00 : f32
    %616 = vector.broadcast %cst_141 : f32 to vector<8x32xf32>
    %617 = arith.addf %616, %615 : vector<8x32xf32>
    %618 = arith.divf %616, %617 : vector<8x32xf32>
    %619 = vector.extract_strided_slice %612 {offsets = [0, 32], sizes = [8, 32], strides = [1, 1]} : vector<8x128xf32> to vector<8x32xf32>
    %620 = arith.negf %619 : vector<8x32xf32>
    %621 = math.exp %620 : vector<8x32xf32>
    %cst_142 = arith.constant 1.000000e+00 : f32
    %622 = vector.broadcast %cst_142 : f32 to vector<8x32xf32>
    %623 = arith.addf %622, %621 : vector<8x32xf32>
    %624 = arith.divf %622, %623 : vector<8x32xf32>
    %625 = vector.extract_strided_slice %612 {offsets = [0, 64], sizes = [8, 32], strides = [1, 1]} : vector<8x128xf32> to vector<8x32xf32>
    %626 = math.tanh %625 : vector<8x32xf32>
    %627 = vector.extract_strided_slice %612 {offsets = [0, 96], sizes = [8, 32], strides = [1, 1]} : vector<8x128xf32> to vector<8x32xf32>
    %628 = arith.negf %627 : vector<8x32xf32>
    %629 = math.exp %628 : vector<8x32xf32>
    %cst_143 = arith.constant 1.000000e+00 : f32
    %630 = vector.broadcast %cst_143 : f32 to vector<8x32xf32>
    %631 = arith.addf %630, %629 : vector<8x32xf32>
    %632 = arith.divf %630, %631 : vector<8x32xf32>
    %633 = arith.mulf %624, %579 : vector<8x32xf32>
    %634 = arith.mulf %618, %626 : vector<8x32xf32>
    %635 = arith.addf %633, %634 : vector<8x32xf32>
    %636 = math.tanh %635 : vector<8x32xf32>
    %637 = arith.mulf %632, %636 : vector<8x32xf32>
    %c7_i32_144 = arith.constant 7 : i32
    %638 = arith.subi %c7_i32_144, %c6_i32 : i32
    %639 = arith.index_cast %638 : i32 to index
    %c0_145 = arith.constant 0 : index
    %c0_146 = arith.constant 0 : index
    %640 = vector.load %arg3[%639, %c0_145, %c0_146] : memref<8x8x128xf32, #tpu.memory_space<vmem>>, vector<1x8x128xf32>
    %641 = vector.shape_cast %640 : vector<1x8x128xf32> to vector<8x128xf32>
    %642 = vector.extract_strided_slice %607 {offsets = [0, 128], sizes = [8, 128], strides = [1, 1]} : vector<8x256xf32> to vector<8x128xf32>
    %643 = arith.addf %641, %642 : vector<8x128xf32>
    %644 = vector.extract_strided_slice %643 {offsets = [0, 0], sizes = [8, 32], strides = [1, 1]} : vector<8x128xf32> to vector<8x32xf32>
    %645 = arith.negf %644 : vector<8x32xf32>
    %646 = math.exp %645 : vector<8x32xf32>
    %cst_147 = arith.constant 1.000000e+00 : f32
    %647 = vector.broadcast %cst_147 : f32 to vector<8x32xf32>
    %648 = arith.addf %647, %646 : vector<8x32xf32>
    %649 = arith.divf %647, %648 : vector<8x32xf32>
    %650 = vector.extract_strided_slice %643 {offsets = [0, 32], sizes = [8, 32], strides = [1, 1]} : vector<8x128xf32> to vector<8x32xf32>
    %651 = arith.negf %650 : vector<8x32xf32>
    %652 = math.exp %651 : vector<8x32xf32>
    %cst_148 = arith.constant 1.000000e+00 : f32
    %653 = vector.broadcast %cst_148 : f32 to vector<8x32xf32>
    %654 = arith.addf %653, %652 : vector<8x32xf32>
    %655 = arith.divf %653, %654 : vector<8x32xf32>
    %656 = vector.extract_strided_slice %643 {offsets = [0, 64], sizes = [8, 32], strides = [1, 1]} : vector<8x128xf32> to vector<8x32xf32>
    %657 = math.tanh %656 : vector<8x32xf32>
    %658 = vector.extract_strided_slice %643 {offsets = [0, 96], sizes = [8, 32], strides = [1, 1]} : vector<8x128xf32> to vector<8x32xf32>
    %659 = arith.negf %658 : vector<8x32xf32>
    %660 = math.exp %659 : vector<8x32xf32>
    %cst_149 = arith.constant 1.000000e+00 : f32
    %661 = vector.broadcast %cst_149 : f32 to vector<8x32xf32>
    %662 = arith.addf %661, %660 : vector<8x32xf32>
    %663 = arith.divf %661, %662 : vector<8x32xf32>
    %664 = arith.mulf %655, %585 : vector<8x32xf32>
    %665 = arith.mulf %649, %657 : vector<8x32xf32>
    %666 = arith.addf %664, %665 : vector<8x32xf32>
    %667 = math.tanh %666 : vector<8x32xf32>
    %668 = arith.mulf %663, %667 : vector<8x32xf32>
    %669 = vector.broadcast %604 : i32 to vector<8x1xi32>
    %670 = arith.cmpi slt, %669, %3 : vector<8x1xi32>
    %671 = vector.broadcast %605 : i32 to vector<8x1xi32>
    %672 = arith.cmpi slt, %671, %3 : vector<8x1xi32>
    %673 = vector.shape_cast %670 : vector<8x1xi1> to vector<8x1xi1>
    %674 = vector.broadcast %673 : vector<8x1xi1> to vector<8x32xi1>
    %675 = arith.select %674, %637, %576 : vector<8x32xi1>, vector<8x32xf32>
    %676 = vector.shape_cast %670 : vector<8x1xi1> to vector<8x1xi1>
    %677 = vector.broadcast %676 : vector<8x1xi1> to vector<8x32xi1>
    %678 = arith.select %677, %635, %579 : vector<8x32xi1>, vector<8x32xf32>
    %679 = vector.shape_cast %672 : vector<8x1xi1> to vector<8x1xi1>
    %680 = vector.broadcast %679 : vector<8x1xi1> to vector<8x32xi1>
    %681 = arith.select %680, %668, %582 : vector<8x32xi1>, vector<8x32xf32>
    %682 = vector.shape_cast %672 : vector<8x1xi1> to vector<8x1xi1>
    %683 = vector.broadcast %682 : vector<8x1xi1> to vector<8x32xi1>
    %684 = arith.select %683, %666, %585 : vector<8x32xi1>, vector<8x32xf32>
    %cst_150 = arith.constant 0.000000e+00 : f32
    %685 = vector.broadcast %cst_150 : f32 to vector<8x32xf32>
    %686 = vector.shape_cast %670 : vector<8x1xi1> to vector<8x1xi1>
    %687 = vector.broadcast %686 : vector<8x1xi1> to vector<8x32xi1>
    %688 = arith.select %687, %637, %685 : vector<8x32xi1>, vector<8x32xf32>
    %689 = arith.index_cast %c6_i32 : i32 to index
    %c0_151 = arith.constant 0 : index
    %c0_152 = arith.constant 0 : index
    %690 = vector.load %arg5[%689, %c0_151, %c0_152] : memref<8x8x32xf32, #tpu.memory_space<vmem>>, vector<1x8x32xf32>
    %691 = vector.shape_cast %690 : vector<1x8x32xf32> to vector<8x32xf32>
    %692 = vector.shape_cast %688 : vector<8x32xf32> to vector<1x8x32xf32>
    tpu.vector_store %arg5[%689, %c0_151, %c0_152], %692 {strides = array<i32>} : memref<8x8x32xf32, #tpu.memory_space<vmem>>, vector<1x8x32xf32>,
    %cst_153 = arith.constant 0.000000e+00 : f32
    %693 = vector.broadcast %cst_153 : f32 to vector<8x32xf32>
    %694 = vector.shape_cast %672 : vector<8x1xi1> to vector<8x1xi1>
    %695 = vector.broadcast %694 : vector<8x1xi1> to vector<8x32xi1>
    %696 = arith.select %695, %668, %693 : vector<8x32xi1>, vector<8x32xf32>
    %c7_i32_154 = arith.constant 7 : i32
    %697 = arith.subi %c7_i32_154, %c6_i32 : i32
    %698 = arith.index_cast %697 : i32 to index
    %c0_155 = arith.constant 0 : index
    %c0_156 = arith.constant 0 : index
    %699 = vector.load %arg6[%698, %c0_155, %c0_156] : memref<8x8x32xf32, #tpu.memory_space<vmem>>, vector<1x8x32xf32>
    %700 = vector.shape_cast %699 : vector<1x8x32xf32> to vector<8x32xf32>
    %701 = vector.shape_cast %696 : vector<8x32xf32> to vector<1x8x32xf32>
    tpu.vector_store %arg6[%698, %c0_155, %c0_156], %701 {strides = array<i32>} : memref<8x8x32xf32, #tpu.memory_space<vmem>>, vector<1x8x32xf32>,
    %c7_i32_157 = arith.constant 7 : i32
    %c8_i32_158 = arith.constant 8 : i32
    %702 = arith.muli %arg0, %c8_i32_158 : i32
    %703 = arith.addi %702, %c7_i32_157 : i32
    %c7_i32_159 = arith.constant 7 : i32
    %704 = arith.subi %c7_i32_159, %703 : i32
    %705 = tpu.concatenate %675, %681 in 1 : vector<8x32xf32>, vector<8x32xf32> -> vector<8x64xf32>
    %cst_160 = arith.constant dense<0.000000e+00> : vector<8x256xf32>
    %706 = tpu.matmul %705, %4, %cst_160 {dimension_numbers = #tpu.dot_dimension_numbers<[1], [0], [0], [1], [0, 0, 1, 1], [], []>} : vector<8x64xf32>, vector<64x256xf32>, vector<8x256xf32> -> vector<8x256xf32>
    %707 = arith.index_cast %c7_i32_157 : i32 to index
    %c0_161 = arith.constant 0 : index
    %c0_162 = arith.constant 0 : index
    %708 = vector.load %arg2[%707, %c0_161, %c0_162] : memref<8x8x128xf32, #tpu.memory_space<vmem>>, vector<1x8x128xf32>
    %709 = vector.shape_cast %708 : vector<1x8x128xf32> to vector<8x128xf32>
    %710 = vector.extract_strided_slice %706 {offsets = [0, 0], sizes = [8, 128], strides = [1, 1]} : vector<8x256xf32> to vector<8x128xf32>
    %711 = arith.addf %709, %710 : vector<8x128xf32>
    %712 = vector.extract_strided_slice %711 {offsets = [0, 0], sizes = [8, 32], strides = [1, 1]} : vector<8x128xf32> to vector<8x32xf32>
    %713 = arith.negf %712 : vector<8x32xf32>
    %714 = math.exp %713 : vector<8x32xf32>
    %cst_163 = arith.constant 1.000000e+00 : f32
    %715 = vector.broadcast %cst_163 : f32 to vector<8x32xf32>
    %716 = arith.addf %715, %714 : vector<8x32xf32>
    %717 = arith.divf %715, %716 : vector<8x32xf32>
    %718 = vector.extract_strided_slice %711 {offsets = [0, 32], sizes = [8, 32], strides = [1, 1]} : vector<8x128xf32> to vector<8x32xf32>
    %719 = arith.negf %718 : vector<8x32xf32>
    %720 = math.exp %719 : vector<8x32xf32>
    %cst_164 = arith.constant 1.000000e+00 : f32
    %721 = vector.broadcast %cst_164 : f32 to vector<8x32xf32>
    %722 = arith.addf %721, %720 : vector<8x32xf32>
    %723 = arith.divf %721, %722 : vector<8x32xf32>
    %724 = vector.extract_strided_slice %711 {offsets = [0, 64], sizes = [8, 32], strides = [1, 1]} : vector<8x128xf32> to vector<8x32xf32>
    %725 = math.tanh %724 : vector<8x32xf32>
    %726 = vector.extract_strided_slice %711 {offsets = [0, 96], sizes = [8, 32], strides = [1, 1]} : vector<8x128xf32> to vector<8x32xf32>
    %727 = arith.negf %726 : vector<8x32xf32>
    %728 = math.exp %727 : vector<8x32xf32>
    %cst_165 = arith.constant 1.000000e+00 : f32
    %729 = vector.broadcast %cst_165 : f32 to vector<8x32xf32>
    %730 = arith.addf %729, %728 : vector<8x32xf32>
    %731 = arith.divf %729, %730 : vector<8x32xf32>
    %732 = arith.mulf %723, %678 : vector<8x32xf32>
    %733 = arith.mulf %717, %725 : vector<8x32xf32>
    %734 = arith.addf %732, %733 : vector<8x32xf32>
    %735 = math.tanh %734 : vector<8x32xf32>
    %736 = arith.mulf %731, %735 : vector<8x32xf32>
    %c7_i32_166 = arith.constant 7 : i32
    %737 = arith.subi %c7_i32_166, %c7_i32_157 : i32
    %738 = arith.index_cast %737 : i32 to index
    %c0_167 = arith.constant 0 : index
    %c0_168 = arith.constant 0 : index
    %739 = vector.load %arg3[%738, %c0_167, %c0_168] : memref<8x8x128xf32, #tpu.memory_space<vmem>>, vector<1x8x128xf32>
    %740 = vector.shape_cast %739 : vector<1x8x128xf32> to vector<8x128xf32>
    %741 = vector.extract_strided_slice %706 {offsets = [0, 128], sizes = [8, 128], strides = [1, 1]} : vector<8x256xf32> to vector<8x128xf32>
    %742 = arith.addf %740, %741 : vector<8x128xf32>
    %743 = vector.extract_strided_slice %742 {offsets = [0, 0], sizes = [8, 32], strides = [1, 1]} : vector<8x128xf32> to vector<8x32xf32>
    %744 = arith.negf %743 : vector<8x32xf32>
    %745 = math.exp %744 : vector<8x32xf32>
    %cst_169 = arith.constant 1.000000e+00 : f32
    %746 = vector.broadcast %cst_169 : f32 to vector<8x32xf32>
    %747 = arith.addf %746, %745 : vector<8x32xf32>
    %748 = arith.divf %746, %747 : vector<8x32xf32>
    %749 = vector.extract_strided_slice %742 {offsets = [0, 32], sizes = [8, 32], strides = [1, 1]} : vector<8x128xf32> to vector<8x32xf32>
    %750 = arith.negf %749 : vector<8x32xf32>
    %751 = math.exp %750 : vector<8x32xf32>
    %cst_170 = arith.constant 1.000000e+00 : f32
    %752 = vector.broadcast %cst_170 : f32 to vector<8x32xf32>
    %753 = arith.addf %752, %751 : vector<8x32xf32>
    %754 = arith.divf %752, %753 : vector<8x32xf32>
    %755 = vector.extract_strided_slice %742 {offsets = [0, 64], sizes = [8, 32], strides = [1, 1]} : vector<8x128xf32> to vector<8x32xf32>
    %756 = math.tanh %755 : vector<8x32xf32>
    %757 = vector.extract_strided_slice %742 {offsets = [0, 96], sizes = [8, 32], strides = [1, 1]} : vector<8x128xf32> to vector<8x32xf32>
    %758 = arith.negf %757 : vector<8x32xf32>
    %759 = math.exp %758 : vector<8x32xf32>
    %cst_171 = arith.constant 1.000000e+00 : f32
    %760 = vector.broadcast %cst_171 : f32 to vector<8x32xf32>
    %761 = arith.addf %760, %759 : vector<8x32xf32>
    %762 = arith.divf %760, %761 : vector<8x32xf32>
    %763 = arith.mulf %754, %684 : vector<8x32xf32>
    %764 = arith.mulf %748, %756 : vector<8x32xf32>
    %765 = arith.addf %763, %764 : vector<8x32xf32>
    %766 = math.tanh %765 : vector<8x32xf32>
    %767 = arith.mulf %762, %766 : vector<8x32xf32>
    %768 = vector.broadcast %703 : i32 to vector<8x1xi32>
    %769 = arith.cmpi slt, %768, %3 : vector<8x1xi32>
    %770 = vector.broadcast %704 : i32 to vector<8x1xi32>
    %771 = arith.cmpi slt, %770, %3 : vector<8x1xi32>
    %772 = vector.shape_cast %769 : vector<8x1xi1> to vector<8x1xi1>
    %773 = vector.broadcast %772 : vector<8x1xi1> to vector<8x32xi1>
    %774 = arith.select %773, %736, %675 : vector<8x32xi1>, vector<8x32xf32>
    %775 = vector.shape_cast %769 : vector<8x1xi1> to vector<8x1xi1>
    %776 = vector.broadcast %775 : vector<8x1xi1> to vector<8x32xi1>
    %777 = arith.select %776, %734, %678 : vector<8x32xi1>, vector<8x32xf32>
    %778 = vector.shape_cast %771 : vector<8x1xi1> to vector<8x1xi1>
    %779 = vector.broadcast %778 : vector<8x1xi1> to vector<8x32xi1>
    %780 = arith.select %779, %767, %681 : vector<8x32xi1>, vector<8x32xf32>
    %781 = vector.shape_cast %771 : vector<8x1xi1> to vector<8x1xi1>
    %782 = vector.broadcast %781 : vector<8x1xi1> to vector<8x32xi1>
    %783 = arith.select %782, %765, %684 : vector<8x32xi1>, vector<8x32xf32>
    %cst_172 = arith.constant 0.000000e+00 : f32
    %784 = vector.broadcast %cst_172 : f32 to vector<8x32xf32>
    %785 = vector.shape_cast %769 : vector<8x1xi1> to vector<8x1xi1>
    %786 = vector.broadcast %785 : vector<8x1xi1> to vector<8x32xi1>
    %787 = arith.select %786, %736, %784 : vector<8x32xi1>, vector<8x32xf32>
    %788 = arith.index_cast %c7_i32_157 : i32 to index
    %c0_173 = arith.constant 0 : index
    %c0_174 = arith.constant 0 : index
    %789 = vector.load %arg5[%788, %c0_173, %c0_174] : memref<8x8x32xf32, #tpu.memory_space<vmem>>, vector<1x8x32xf32>
    %790 = vector.shape_cast %789 : vector<1x8x32xf32> to vector<8x32xf32>
    %791 = vector.shape_cast %787 : vector<8x32xf32> to vector<1x8x32xf32>
    tpu.vector_store %arg5[%788, %c0_173, %c0_174], %791 {strides = array<i32>} : memref<8x8x32xf32, #tpu.memory_space<vmem>>, vector<1x8x32xf32>,
    %cst_175 = arith.constant 0.000000e+00 : f32
    %792 = vector.broadcast %cst_175 : f32 to vector<8x32xf32>
    %793 = vector.shape_cast %771 : vector<8x1xi1> to vector<8x1xi1>
    %794 = vector.broadcast %793 : vector<8x1xi1> to vector<8x32xi1>
    %795 = arith.select %794, %767, %792 : vector<8x32xi1>, vector<8x32xf32>
    %c7_i32_176 = arith.constant 7 : i32
    %796 = arith.subi %c7_i32_176, %c7_i32_157 : i32
    %797 = arith.index_cast %796 : i32 to index
    %c0_177 = arith.constant 0 : index
    %c0_178 = arith.constant 0 : index
    %798 = vector.load %arg6[%797, %c0_177, %c0_178] : memref<8x8x32xf32, #tpu.memory_space<vmem>>, vector<1x8x32xf32>
    %799 = vector.shape_cast %798 : vector<1x8x32xf32> to vector<8x32xf32>
    %800 = vector.shape_cast %795 : vector<8x32xf32> to vector<1x8x32xf32>
    tpu.vector_store %arg6[%797, %c0_177, %c0_178], %800 {strides = array<i32>} : memref<8x8x32xf32, #tpu.memory_space<vmem>>, vector<1x8x32xf32>,
    %c8_i32_179 = arith.constant 8 : i32
    %c0_180 = arith.constant 0 : index
    %c0_181 = arith.constant 0 : index
    %801 = vector.load %arg7[%c0_180, %c0_181] : memref<8x32xf32, #tpu.memory_space<vmem>>, vector<8x32xf32>
    tpu.vector_store %arg7[%c0_180, %c0_181], %774 {strides = array<i32>} : memref<8x32xf32, #tpu.memory_space<vmem>>, vector<8x32xf32>,
    %c0_182 = arith.constant 0 : index
    %c0_183 = arith.constant 0 : index
    %802 = vector.load %arg8[%c0_182, %c0_183] : memref<8x32xf32, #tpu.memory_space<vmem>>, vector<8x32xf32>
    tpu.vector_store %arg8[%c0_182, %c0_183], %777 {strides = array<i32>} : memref<8x32xf32, #tpu.memory_space<vmem>>, vector<8x32xf32>,
    %c0_184 = arith.constant 0 : index
    %c0_185 = arith.constant 0 : index
    %803 = vector.load %arg9[%c0_184, %c0_185] : memref<8x32xf32, #tpu.memory_space<vmem>>, vector<8x32xf32>
    tpu.vector_store %arg9[%c0_184, %c0_185], %780 {strides = array<i32>} : memref<8x32xf32, #tpu.memory_space<vmem>>, vector<8x32xf32>,
    %c0_186 = arith.constant 0 : index
    %c0_187 = arith.constant 0 : index
    %804 = vector.load %arg10[%c0_186, %c0_187] : memref<8x32xf32, #tpu.memory_space<vmem>>, vector<8x32xf32>
    tpu.vector_store %arg10[%c0_186, %c0_187], %783 {strides = array<i32>} : memref<8x32xf32, #tpu.memory_space<vmem>>, vector<8x32xf32>,
    return
  }
  func.func @transform_0(%arg0: i32) -> (i32, i32) {
    %c0_i32 = arith.constant 0 : i32
    %c0_i32_0 = arith.constant 0 : i32
    %c0_i32_1 = arith.constant 0 : i32
    return %c0_i32, %c0_i32_0 : i32, i32
  }
  func.func @transform_1(%arg0: i32) -> (i32, i32, i32) {
    %c0_i32 = arith.constant 0 : i32
    %c0_i32_0 = arith.constant 0 : i32
    %c0_i32_1 = arith.constant 0 : i32
    return %arg0, %c0_i32, %c0_i32_0 : i32, i32, i32
  }
  func.func @transform_2(%arg0: i32) -> (i32, i32, i32) {
    %c0_i32 = arith.constant 0 : i32
    %0 = arith.subi %c0_i32, %arg0 : i32
    %c0_i32_0 = arith.constant 0 : i32
    %c1_i32 = arith.constant 1 : i32
    %c0_i32_1 = arith.constant 0 : i32
    return %0, %c0_i32_0, %c1_i32 : i32, i32, i32
  }
  func.func @transform_3(%arg0: i32) -> (i32, i32) {
    %c0_i32 = arith.constant 0 : i32
    %c0_i32_0 = arith.constant 0 : i32
    %c0_i32_1 = arith.constant 0 : i32
    return %c0_i32, %c0_i32_0 : i32, i32
  }
  func.func @transform_4(%arg0: i32) -> (i32, i32, i32) {
    %c0_i32 = arith.constant 0 : i32
    %c0_i32_0 = arith.constant 0 : i32
    %c0_i32_1 = arith.constant 0 : i32
    return %arg0, %c0_i32, %c0_i32_0 : i32, i32, i32
  }
  func.func @transform_5(%arg0: i32) -> (i32, i32, i32) {
    %c0_i32 = arith.constant 0 : i32
    %0 = arith.subi %c0_i32, %arg0 : i32
    %c0_i32_0 = arith.constant 0 : i32
    %c0_i32_1 = arith.constant 0 : i32
    %c0_i32_2 = arith.constant 0 : i32
    return %0, %c0_i32_0, %c0_i32_1 : i32, i32, i32
  }
}

</mosaic_0001>

<llo_original>
// kernel: _lambda_.3
$region0: #{_lambda_.3}
  #allocation0 [shape = 'u32[]', space=smem, size = 0x4, offset = 0x4, fixed_abs, tag = 'smem constant byte address 0x4 - core index']
  #allocation1 [shape = 'u32[144,128]{1,0:T(1,128)}', space=vmem, size = 0x12000, scoped, tag = 'internal scratch']
  %s0 = inlined_call_operand.vmem [shape: f32[64,96], index: 0, kind: input, shape index: {}]
  %s1 = inlined_call_operand.vmem [shape: f32[96,256], index: 1, kind: input, shape index: {}]
  %s2 = inlined_call_operand.vmem [shape: f32[1,256], index: 2, kind: input, shape index: {}]
  %s3 = inlined_call_operand.vmem [shape: f32[64,256], index: 3, kind: output, shape index: {}]
  %s4 = sld [smem:[#allocation0]]
  $region22: #{_lambda_.3} parent=0
    _
  %s6 = ssub.s32 1, %s4
  %s7 = scalar_select 0, %s6, %s4
  // Predicated region
  $region2: #{_lambda_.3} parent=0 // pred_check
    _
  $region3: #{_lambda_.3} parent=0 // pred_check_branch
    %9 = sbr.rel (0) target = $region5
  $region4: #{_lambda_.3} parent=0 // pred_region
    _
  $region5: #{_lambda_.3} parent=0 // pred_fallthru
    _
  // Predicated region
  $region6: #{_lambda_.3} parent=0 // pred_check
    _
  $region7: #{_lambda_.3} parent=0 // pred_check_branch
    %11 = sbr.rel (0) target = $region9
  $region8: #{_lambda_.3} parent=0 // pred_region
    _
  $region9: #{_lambda_.3} parent=0 // pred_fallthru
    _
  // Predicated region
  $region10: #{_lambda_.3} parent=0 // pred_check
    _
  $region11: #{_lambda_.3} parent=0 // pred_check_branch
    %13 = sbr.rel (0) target = $region13
  $region12: #{_lambda_.3} parent=0 // pred_region
    _
  $region13: #{_lambda_.3} parent=0 // pred_fallthru
    _
  %v14 = vld [vmem:[%s0] sm:$0xff]
  %v15 = vld [vmem:[%s0 + $0x8] sm:$0xff]
  %v16 = vld [vmem:[%s0 + $0x10] sm:$0xff]
  %v17 = vld [vmem:[%s0 + $0x18] sm:$0xff]
  %v18 = vld [vmem:[%s0 + $0x20] sm:$0xff]
  %v19 = vld [vmem:[%s0 + $0x28] sm:$0xff]
  %v20 = vld [vmem:[%s0 + $0x30] sm:$0xff]
  %v21 = vld [vmem:[%s0 + $0x38] sm:$0xff]
  %v22 = vld [vmem:[%s1] sm:$0xff]
  %v23 = vld [vmem:[%s1 + $0x8] sm:$0xff]
  %v24 = vld [vmem:[%s1 + $0x10] sm:$0xff]
  %v25 = vld [vmem:[%s1 + $0x18] sm:$0xff]
  %v26 = vld [vmem:[%s1 + $0x20] sm:$0xff]
  %v27 = vld [vmem:[%s1 + $0x28] sm:$0xff]
  %v28 = vld [vmem:[%s1 + $0x30] sm:$0xff]
  %v29 = vld [vmem:[%s1 + $0x38] sm:$0xff]
  %v30 = vld [vmem:[%s1 + $0x40] sm:$0xff]
  %v31 = vld [vmem:[%s1 + $0x48] sm:$0xff]
  %v32 = vld [vmem:[%s1 + $0x50] sm:$0xff]
  %v33 = vld [vmem:[%s1 + $0x58] sm:$0xff]
  %v34 = vld [vmem:[%s1 + $0x60] sm:$0xff]
  %v35 = vld [vmem:[%s1 + $0x68] sm:$0xff]
  %v36 = vld [vmem:[%s1 + $0x70] sm:$0xff]
  %v37 = vld [vmem:[%s1 + $0x78] sm:$0xff]
  %v38 = vld [vmem:[%s1 + $0x80] sm:$0xff]
  %v39 = vld [vmem:[%s1 + $0x88] sm:$0xff]
  %v40 = vld [vmem:[%s1 + $0x90] sm:$0xff]
  %v41 = vld [vmem:[%s1 + $0x98] sm:$0xff]
  %v42 = vld [vmem:[%s1 + $0xa0] sm:$0xff]
  %v43 = vld [vmem:[%s1 + $0xa8] sm:$0xff]
  %v44 = vld [vmem:[%s1 + $0xb0] sm:$0xff]
  %v45 = vld [vmem:[%s1 + $0xb8] sm:$0xff]
  %v46 = vld [vmem:[%s2] sm:$0x3]
  %v48 = vlaneseq
  %v49 = vshrl.u32 %v48, 7
  %v50 = vsub.s32 0, %v49
  %v51 = vrot.slane %v46, %v50
  %v52 = vlaneseq
  %v53 = vshrl.u32 %v52, 7
  %v54 = vsub.s32 1, %v53
  %v55 = vrot.slane %v46, %v54
  %vm58 = vcmask 785408
  %v60 = vsel %vm58, %v14, 0
  %v63 = vsel %vm58, %v15, 0
  %v66 = vsel %vm58, %v16, 0
  %v69 = vsel %vm58, %v17, 0
  %v72 = vsel %vm58, %v18, 0
  %v75 = vsel %vm58, %v19, 0
  %v78 = vsel %vm58, %v20, 0
  %v81 = vsel %vm58, %v21, 0
  %83 = vmatprep.subr.mxu0 %v23
  %84 = vmatpush1.msra.mxu0 %v22
  %85 = vmatprep.subr.mxu0 %v25
  %86 = vmatpush1.msra.mxu0 %v24
  %87 = vmatprep.subr.mxu0 %v27
  %88 = vmatpush1.msra.mxu0 %v26
  %89 = vmatprep.subr.mxu0 %v29
  %90 = vmatpush1.msra.mxu0 %v28
  %91 = vmatprep.subr.mxu0 %v31
  %92 = vmatpush1.msra.mxu0 %v30
  %93 = vmatprep.subr.mxu0 %v33
  %94 = vmatpush1.msra.mxu0 %v32
  %95 = vmatprep.subr.mxu0 %v35
  %96 = vmatpush1.msra.mxu0 %v34
  %97 = vmatprep.subr.mxu0 %v37
  %98 = vmatpush1.msra.mxu0 %v36
  %99 = vmatprep.subr.mxu0 %v39
  %100 = vmatpush1.msra.mxu0 %v38
  %101 = vmatprep.subr.mxu0 %v41
  %102 = vmatpush1.msra.mxu0 %v40
  %103 = vmatprep.subr.mxu0 %v43
  %104 = vmatpush1.msra.mxu0 %v42
  %105 = vmatprep.subr.mxu0 %v45
  %106 = vmatpush1.msra.mxu0 %v44
  %107 = vmatprep.subr.mxu0 0.0
  %108 = vmatpush1.msra.mxu0 0.0
  %109 = vmatprep.subr.mxu0 0.0
  %110 = vmatpush1.msra.mxu0 0.0
  %111 = vmatprep.subr.mxu0 0.0
  %112 = vmatpush1.msra.mxu0 0.0
  %113 = vmatprep.subr.mxu0 0.0
  %114 = vmatpush1.msra.mxu0 0.0
  %115 = vmatprep.subr.mxu0 0.0
  %116 = vmatpush1.msra.mxu0 0.0
  %117 = vmatprep.subr.mxu0 0.0
  %118 = vmatpush1.msra.mxu0 0.0
  %119 = vmatprep.subr.mxu0 0.0
  %120 = vmatpush1.msra.mxu0 0.0
  %121 = vmatprep.subr.mxu0 0.0
  %122 = vmatpush1.msra.mxu0 0.0
  %123 = vmatprep.subr.mxu0 0.0
  %124 = vmatpush1.msra.mxu0 0.0
  %125 = vmatprep.subr.mxu0 0.0
  %126 = vmatpush1.msra.mxu0 0.0
  %127 = vmatprep.subr.mxu0 0.0
  %128 = vmatpush1.msra.mxu0 0.0
  %129 = vmatprep.subr.mxu0 0.0
  %130 = vmatpush1.msra.mxu0 0.0
  %131 = vmatprep.subr.mxu0 0.0
  %132 = vmatpush1.msra.mxu0 0.0
  %133 = vmatprep.subr.mxu0 0.0
  %134 = vmatpush1.msra.mxu0 0.0
  %135 = vmatprep.subr.mxu0 0.0
  %136 = vmatpush1.msra.mxu0 0.0
  %137 = vmatprep.subr.mxu0 0.0
  %138 = vmatpush1.msra.mxu0 0.0
  %139 = vmatprep.subr.mxu0 0.0
  %140 = vmatpush1.msra.mxu0 0.0
  %141 = vmatprep.subr.mxu0 0.0
  %142 = vmatpush1.msra.mxu0 0.0
  %143 = vmatprep.subr.mxu0 0.0
  %144 = vmatpush1.msra.mxu0 0.0
  %145 = vmatprep.subr.mxu0 0.0
  %146 = vmatpush1.msra.mxu0 0.0
  %147 = vmatprep.mubr.f32.mxu0 0.0
  %148 = vmatmul.mubr.f32.gmra.mrb[0].mxu0 %v60
  %v149 = vpop.f32.mrb[0].mxu0
  %v150 = vadd.f32 %v51, %v149
  %v151 = vpop.f32.mrb[0].mxu0
  %v152 = vadd.f32 %v55, %v151
  %153 = vmatprep.mubr.f32.mxu0 0.0
  %154 = vmatmul.mubr.f32.gmra.mrb[0].mxu0 %v63
  %v155 = vpop.f32.mrb[0].mxu0
  %v156 = vadd.f32 %v51, %v155
  %v157 = vpop.f32.mrb[0].mxu0
  %v158 = vadd.f32 %v55, %v157
  %159 = vmatprep.mubr.f32.mxu0 0.0
  %160 = vmatmul.mubr.f32.gmra.mrb[0].mxu0 %v66
  %v161 = vpop.f32.mrb[0].mxu0
  %v162 = vadd.f32 %v51, %v161
  %v163 = vpop.f32.mrb[0].mxu0
  %v164 = vadd.f32 %v55, %v163
  %165 = vmatprep.mubr.f32.mxu0 0.0
  %166 = vmatmul.mubr.f32.gmra.mrb[0].mxu0 %v69
  %v167 = vpop.f32.mrb[0].mxu0
  %v168 = vadd.f32 %v51, %v167
  %v169 = vpop.f32.mrb[0].mxu0
  %v170 = vadd.f32 %v55, %v169
  %171 = vmatprep.mubr.f32.mxu0 0.0
  %172 = vmatmul.mubr.f32.gmra.mrb[0].mxu0 %v72
  %v173 = vpop.f32.mrb[0].mxu0
  %v174 = vadd.f32 %v51, %v173
  %v175 = vpop.f32.mrb[0].mxu0
  %v176 = vadd.f32 %v55, %v175
  %177 = vmatprep.mubr.f32.mxu0 0.0
  %178 = vmatmul.mubr.f32.gmra.mrb[0].mxu0 %v75
  %v179 = vpop.f32.mrb[0].mxu0
  %v180 = vadd.f32 %v51, %v179
  %v181 = vpop.f32.mrb[0].mxu0
  %v182 = vadd.f32 %v55, %v181
  %183 = vmatprep.mubr.f32.mxu0 0.0
  %184 = vmatmul.mubr.f32.gmra.mrb[0].mxu0 %v78
  %v185 = vpop.f32.mrb[0].mxu0
  %v186 = vadd.f32 %v51, %v185
  %v187 = vpop.f32.mrb[0].mxu0
  %v188 = vadd.f32 %v55, %v187
  %189 = vmatprep.mubr.f32.mxu0 0.0
  %190 = vmatmul.mubr.f32.gmra.mrb[0].mxu0 %v81
  %v191 = vpop.f32.mrb[0].mxu0
  %v192 = vadd.f32 %v51, %v191
  %v193 = vpop.f32.mrb[0].mxu0
  %v194 = vadd.f32 %v55, %v193
  %195 = vdwg.mxu0
  %196 = vst [vmem:[%s3] sm:$0xff] %v150
  %197 = vst [vmem:[%s3 + $0x8] sm:$0xff] %v152
  %198 = vst [vmem:[%s3 + $0x10] sm:$0xff] %v156
  %199 = vst [vmem:[%s3 + $0x18] sm:$0xff] %v158
  %200 = vst [vmem:[%s3 + $0x20] sm:$0xff] %v162
  %201 = vst [vmem:[%s3 + $0x28] sm:$0xff] %v164
  %202 = vst [vmem:[%s3 + $0x30] sm:$0xff] %v168
  %203 = vst [vmem:[%s3 + $0x38] sm:$0xff] %v170
  %204 = vst [vmem:[%s3 + $0x40] sm:$0xff] %v174
  %205 = vst [vmem:[%s3 + $0x48] sm:$0xff] %v176
  %206 = vst [vmem:[%s3 + $0x50] sm:$0xff] %v180
  %207 = vst [vmem:[%s3 + $0x58] sm:$0xff] %v182
  %208 = vst [vmem:[%s3 + $0x60] sm:$0xff] %v186
  %209 = vst [vmem:[%s3 + $0x68] sm:$0xff] %v188
  %210 = vst [vmem:[%s3 + $0x70] sm:$0xff] %v192
  %211 = vst [vmem:[%s3 + $0x78] sm:$0xff] %v194
  // Predicated region
  $region14: #{_lambda_.3} parent=0 // pred_check
    _
  $region15: #{_lambda_.3} parent=0 // pred_check_branch
    %213 = sbr.rel (0) target = $region17
  $region16: #{_lambda_.3} parent=0 // pred_region
    _
  $region17: #{_lambda_.3} parent=0 // pred_fallthru
    _
  // Predicated region
  $region18: #{_lambda_.3} parent=0 // pred_check
    _
  $region19: #{_lambda_.3} parent=0 // pred_check_branch
    %215 = sbr.rel (0) target = $region21
  $region20: #{_lambda_.3} parent=0 // pred_region
    _
  $region21: #{_lambda_.3} parent=0 // pred_fallthru
    _

// kernel: _lambda_.5
$region0: #{_lambda_.5}
  #allocation0 [shape = 'u32[]', space=smem, size = 0x4, offset = 0x4, fixed_abs, tag = 'smem constant byte address 0x4 - core index']
  #allocation1 [shape = 'u32[144,128]{1,0:T(1,128)}', space=vmem, size = 0x12000, scoped, tag = 'internal scratch']
  %s0 = inlined_call_operand.vmem [shape: f32[64,32], index: 0, kind: input, shape index: {}]
  %s1 = inlined_call_operand.vmem [shape: f32[64,32], index: 1, kind: input, shape index: {}]
  %s2 = inlined_call_operand.vmem [shape: f32[32,128], index: 2, kind: input, shape index: {}]
  %s3 = inlined_call_operand.vmem [shape: f32[32,128], index: 3, kind: input, shape index: {}]
  %s4 = inlined_call_operand.vmem [shape: f32[1,128], index: 4, kind: input, shape index: {}]
  %s5 = inlined_call_operand.vmem [shape: f32[64,128], index: 5, kind: output, shape index: {}]
  %s6 = sld [smem:[#allocation0]]
  $region30: #{_lambda_.5} parent=0
    _
  %s8 = ssub.s32 1, %s6
  %s9 = scalar_select 0, %s8, %s6
  // Predicated region
  $region2: #{_lambda_.5} parent=0 // pred_check
    _
  $region3: #{_lambda_.5} parent=0 // pred_check_branch
    %11 = sbr.rel (0) target = $region5
  $region4: #{_lambda_.5} parent=0 // pred_region
    _
  $region5: #{_lambda_.5} parent=0 // pred_fallthru
    _
  // Predicated region
  $region6: #{_lambda_.5} parent=0 // pred_check
    _
  $region7: #{_lambda_.5} parent=0 // pred_check_branch
    %13 = sbr.rel (0) target = $region9
  $region8: #{_lambda_.5} parent=0 // pred_region
    _
  $region9: #{_lambda_.5} parent=0 // pred_fallthru
    _
  // Predicated region
  $region10: #{_lambda_.5} parent=0 // pred_check
    _
  $region11: #{_lambda_.5} parent=0 // pred_check_branch
    %15 = sbr.rel (0) target = $region13
  $region12: #{_lambda_.5} parent=0 // pred_region
    _
  $region13: #{_lambda_.5} parent=0 // pred_fallthru
    _
  // Predicated region
  $region14: #{_lambda_.5} parent=0 // pred_check
    _
  $region15: #{_lambda_.5} parent=0 // pred_check_branch
    %17 = sbr.rel (0) target = $region17
  $region16: #{_lambda_.5} parent=0 // pred_region
    _
  $region17: #{_lambda_.5} parent=0 // pred_fallthru
    _
  // Predicated region
  $region18: #{_lambda_.5} parent=0 // pred_check
    _
  $region19: #{_lambda_.5} parent=0 // pred_check_branch
    %19 = sbr.rel (0) target = $region21
  $region20: #{_lambda_.5} parent=0 // pred_region
    _
  $region21: #{_lambda_.5} parent=0 // pred_fallthru
    _
  %v20 = vld [vmem:[%s0] sm:$0xff]
  %v21 = vld [vmem:[%s0 + $0x8] sm:$0xff]
  %v22 = vld [vmem:[%s0 + $0x10] sm:$0xff]
  %v23 = vld [vmem:[%s0 + $0x18] sm:$0xff]
  %v24 = vld [vmem:[%s0 + $0x20] sm:$0xff]
  %v25 = vld [vmem:[%s0 + $0x28] sm:$0xff]
  %v26 = vld [vmem:[%s0 + $0x30] sm:$0xff]
  %v27 = vld [vmem:[%s0 + $0x38] sm:$0xff]
  %v28 = vld [vmem:[%s2] sm:$0xff]
  %v29 = vld [vmem:[%s2 + $0x8] sm:$0xff]
  %v30 = vld [vmem:[%s2 + $0x10] sm:$0xff]
  %v31 = vld [vmem:[%s2 + $0x18] sm:$0xff]
  %v32 = vld [vmem:[%s1] sm:$0xff]
  %v33 = vld [vmem:[%s1 + $0x8] sm:$0xff]
  %v34 = vld [vmem:[%s1 + $0x10] sm:$0xff]
  %v35 = vld [vmem:[%s1 + $0x18] sm:$0xff]
  %v36 = vld [vmem:[%s1 + $0x20] sm:$0xff]
  %v37 = vld [vmem:[%s1 + $0x28] sm:$0xff]
  %v38 = vld [vmem:[%s1 + $0x30] sm:$0xff]
  %v39 = vld [vmem:[%s1 + $0x38] sm:$0xff]
  %v40 = vld [vmem:[%s3] sm:$0xff]
  %v41 = vld [vmem:[%s3 + $0x8] sm:$0xff]
  %v42 = vld [vmem:[%s3 + $0x10] sm:$0xff]
  %v43 = vld [vmem:[%s3 + $0x18] sm:$0xff]
  %vm44 = vcmask 261120
  %v46 = vsel %vm44, %v32, 0
  %v49 = vsel %vm44, %v33, 0
  %v52 = vsel %vm44, %v34, 0
  %v55 = vsel %vm44, %v35, 0
  %v58 = vsel %vm44, %v36, 0
  %v61 = vsel %vm44, %v37, 0
  %v64 = vsel %vm44, %v38, 0
  %v67 = vsel %vm44, %v39, 0
  %69 = vmatprep.subr.mxu0 0.0
  %70 = vmatpush1.msra.mxu0 %v40
  %71 = vmatprep.subr.mxu0 0.0
  %72 = vmatpush1.msra.mxu0 %v41
  %73 = vmatprep.subr.mxu0 0.0
  %74 = vmatpush1.msra.mxu0 %v42
  %75 = vmatprep.subr.mxu0 0.0
  %76 = vmatpush1.msra.mxu0 %v43
  %77 = vmatprep.subr.mxu0 0.0
  %78 = vmatpush1.msra.mxu0 0.0
  %79 = vmatprep.subr.mxu0 0.0
  %80 = vmatpush1.msra.mxu0 0.0
  %81 = vmatprep.subr.mxu0 0.0
  %82 = vmatpush1.msra.mxu0 0.0
  %83 = vmatprep.subr.mxu0 0.0
  %84 = vmatpush1.msra.mxu0 0.0
  %85 = vmatprep.subr.mxu0 0.0
  %86 = vmatpush1.msra.mxu0 0.0
  %87 = vmatprep.subr.mxu0 0.0
  %88 = vmatpush1.msra.mxu0 0.0
  %89 = vmatprep.subr.mxu0 0.0
  %90 = vmatpush1.msra.mxu0 0.0
  %91 = vmatprep.subr.mxu0 0.0
  %92 = vmatpush1.msra.mxu0 0.0
  %93 = vmatprep.subr.mxu0 0.0
  %94 = vmatpush1.msra.mxu0 0.0
  %95 = vmatprep.subr.mxu0 0.0
  %96 = vmatpush1.msra.mxu0 0.0
  %97 = vmatprep.subr.mxu0 0.0
  %98 = vmatpush1.msra.mxu0 0.0
  %99 = vmatprep.subr.mxu0 0.0
  %100 = vmatpush1.msra.mxu0 0.0
  %101 = vmatprep.subr.mxu0 0.0
  %102 = vmatpush1.msra.mxu0 0.0
  %103 = vmatprep.subr.mxu0 0.0
  %104 = vmatpush1.msra.mxu0 0.0
  %105 = vmatprep.subr.mxu0 0.0
  %106 = vmatpush1.msra.mxu0 0.0
  %107 = vmatprep.subr.mxu0 0.0
  %108 = vmatpush1.msra.mxu0 0.0
  %109 = vmatprep.subr.mxu0 0.0
  %110 = vmatpush1.msra.mxu0 0.0
  %111 = vmatprep.subr.mxu0 0.0
  %112 = vmatpush1.msra.mxu0 0.0
  %113 = vmatprep.subr.mxu0 0.0
  %114 = vmatpush1.msra.mxu0 0.0
  %115 = vmatprep.subr.mxu0 0.0
  %116 = vmatpush1.msra.mxu0 0.0
  %117 = vmatprep.subr.mxu0 0.0
  %118 = vmatpush1.msra.mxu0 0.0
  %119 = vmatprep.subr.mxu0 0.0
  %120 = vmatpush1.msra.mxu0 0.0
  %121 = vmatprep.subr.mxu0 0.0
  %122 = vmatpush1.msra.mxu0 0.0
  %123 = vmatprep.subr.mxu0 0.0
  %124 = vmatpush1.msra.mxu0 0.0
  %125 = vmatprep.subr.mxu0 0.0
  %126 = vmatpush1.msra.mxu0 0.0
  %127 = vmatprep.subr.mxu0 0.0
  %128 = vmatpush1.msra.mxu0 0.0
  %129 = vmatprep.subr.mxu0 0.0
  %130 = vmatpush1.msra.mxu0 0.0
  %131 = vmatprep.subr.mxu0 0.0
  %132 = vmatpush1.msra.mxu0 0.0
  %133 = vmatprep.mubr.f32.mxu0 0.0
  %134 = vmatmul.mubr.f32.gmra.mrb[0].mxu0 %v46
  %v135 = vpop.f32.mrb[0].mxu0
  %v136 = vadd.f32 0.0, %v135
  %v137 = vpop.f32.mrb[0].mxu0
  %138 = vmatprep.mubr.f32.mxu0 0.0
  %139 = vmatmul.mubr.f32.gmra.mrb[0].mxu0 %v49
  %v140 = vpop.f32.mrb[0].mxu0
  %v141 = vadd.f32 0.0, %v140
  %v142 = vpop.f32.mrb[0].mxu0
  %143 = vmatprep.mubr.f32.mxu0 0.0
  %144 = vmatmul.mubr.f32.gmra.mrb[0].mxu0 %v52
  %v145 = vpop.f32.mrb[0].mxu0
  %v146 = vadd.f32 0.0, %v145
  %v147 = vpop.f32.mrb[0].mxu0
  %148 = vmatprep.mubr.f32.mxu0 0.0
  %149 = vmatmul.mubr.f32.gmra.mrb[0].mxu0 %v55
  %v150 = vpop.f32.mrb[0].mxu0
  %v151 = vadd.f32 0.0, %v150
  %v152 = vpop.f32.mrb[0].mxu0
  %153 = vmatprep.mubr.f32.mxu0 0.0
  %154 = vmatmul.mubr.f32.gmra.mrb[0].mxu0 %v58
  %v155 = vpop.f32.mrb[0].mxu0
  %v156 = vadd.f32 0.0, %v155
  %v157 = vpop.f32.mrb[0].mxu0
  %158 = vmatprep.mubr.f32.mxu0 0.0
  %159 = vmatmul.mubr.f32.gmra.mrb[0].mxu0 %v61
  %v160 = vpop.f32.mrb[0].mxu0
  %v161 = vadd.f32 0.0, %v160
  %v162 = vpop.f32.mrb[0].mxu0
  %163 = vmatprep.mubr.f32.mxu0 0.0
  %164 = vmatmul.mubr.f32.gmra.mrb[0].mxu0 %v64
  %v165 = vpop.f32.mrb[0].mxu0
  %v166 = vadd.f32 0.0, %v165
  %v167 = vpop.f32.mrb[0].mxu0
  %168 = vmatprep.mubr.f32.mxu0 0.0
  %169 = vmatmul.mubr.f32.gmra.mrb[0].mxu0 %v67
  %v170 = vpop.f32.mrb[0].mxu0
  %v171 = vadd.f32 0.0, %v170
  %v172 = vpop.f32.mrb[0].mxu0
  %173 = vdwg.mxu0
  %v175 = vsel %vm44, %v20, 0
  %v178 = vsel %vm44, %v21, 0
  %v181 = vsel %vm44, %v22, 0
  %v184 = vsel %vm44, %v23, 0
  %v187 = vsel %vm44, %v24, 0
  %v190 = vsel %vm44, %v25, 0
  %v193 = vsel %vm44, %v26, 0
  %v196 = vsel %vm44, %v27, 0
  %198 = vmatprep.subr.mxu0 0.0
  %199 = vmatpush1.msra.mxu0 %v28
  %200 = vmatprep.subr.mxu0 0.0
  %201 = vmatpush1.msra.mxu0 %v29
  %202 = vmatprep.subr.mxu0 0.0
  %203 = vmatpush1.msra.mxu0 %v30
  %204 = vmatprep.subr.mxu0 0.0
  %205 = vmatpush1.msra.mxu0 %v31
  %206 = vmatprep.subr.mxu0 0.0
  %207 = vmatpush1.msra.mxu0 0.0
  %208 = vmatprep.subr.mxu0 0.0
  %209 = vmatpush1.msra.mxu0 0.0
  %210 = vmatprep.subr.mxu0 0.0
  %211 = vmatpush1.msra.mxu0 0.0
  %212 = vmatprep.subr.mxu0 0.0
  %213 = vmatpush1.msra.mxu0 0.0
  %214 = vmatprep.subr.mxu0 0.0
  %215 = vmatpush1.msra.mxu0 0.0
  %216 = vmatprep.subr.mxu0 0.0
  %217 = vmatpush1.msra.mxu0 0.0
  %218 = vmatprep.subr.mxu0 0.0
  %219 = vmatpush1.msra.mxu0 0.0
  %220 = vmatprep.subr.mxu0 0.0
  %221 = vmatpush1.msra.mxu0 0.0
  %222 = vmatprep.subr.mxu0 0.0
  %223 = vmatpush1.msra.mxu0 0.0
  %224 = vmatprep.subr.mxu0 0.0
  %225 = vmatpush1.msra.mxu0 0.0
  %226 = vmatprep.subr.mxu0 0.0
  %227 = vmatpush1.msra.mxu0 0.0
  %228 = vmatprep.subr.mxu0 0.0
  %229 = vmatpush1.msra.mxu0 0.0
  %230 = vmatprep.subr.mxu0 0.0
  %231 = vmatpush1.msra.mxu0 0.0
  %232 = vmatprep.subr.mxu0 0.0
  %233 = vmatpush1.msra.mxu0 0.0
  %234 = vmatprep.subr.mxu0 0.0
  %235 = vmatpush1.msra.mxu0 0.0
  %236 = vmatprep.subr.mxu0 0.0
  %237 = vmatpush1.msra.mxu0 0.0
  %238 = vmatprep.subr.mxu0 0.0
  %239 = vmatpush1.msra.mxu0 0.0
  %240 = vmatprep.subr.mxu0 0.0
  %241 = vmatpush1.msra.mxu0 0.0
  %242 = vmatprep.subr.mxu0 0.0
  %243 = vmatpush1.msra.mxu0 0.0
  %244 = vmatprep.subr.mxu0 0.0
  %245 = vmatpush1.msra.mxu0 0.0
  %246 = vmatprep.subr.mxu0 0.0
  %247 = vmatpush1.msra.mxu0 0.0
  %248 = vmatprep.subr.mxu0 0.0
  %249 = vmatpush1.msra.mxu0 0.0
  %250 = vmatprep.subr.mxu0 0.0
  %251 = vmatpush1.msra.mxu0 0.0
  %252 = vmatprep.subr.mxu0 0.0
  %253 = vmatpush1.msra.mxu0 0.0
  %254 = vmatprep.subr.mxu0 0.0
  %255 = vmatpush1.msra.mxu0 0.0
  %256 = vmatprep.subr.mxu0 0.0
  %257 = vmatpush1.msra.mxu0 0.0
  %258 = vmatprep.subr.mxu0 0.0
  %259 = vmatpush1.msra.mxu0 0.0
  %260 = vmatprep.subr.mxu0 0.0
  %261 = vmatpush1.msra.mxu0 0.0
  %262 = vmatprep.mubr.f32.mxu0 0.0
  %263 = vmatmul.mubr.f32.gmra.mrb[0].mxu0 %v175
  %v264 = vpop.f32.mrb[0].mxu0
  %v265 = vadd.f32 %v136, %v264
  %v266 = vpop.f32.mrb[0].mxu0
  %267 = vmatprep.mubr.f32.mxu0 0.0
  %268 = vmatmul.mubr.f32.gmra.mrb[0].mxu0 %v178
  %v269 = vpop.f32.mrb[0].mxu0
  %v270 = vadd.f32 %v141, %v269
  %v271 = vpop.f32.mrb[0].mxu0
  %272 = vmatprep.mubr.f32.mxu0 0.0
  %273 = vmatmul.mubr.f32.gmra.mrb[0].mxu0 %v181
  %v274 = vpop.f32.mrb[0].mxu0
  %v275 = vadd.f32 %v146, %v274
  %v276 = vpop.f32.mrb[0].mxu0
  %277 = vmatprep.mubr.f32.mxu0 0.0
  %278 = vmatmul.mubr.f32.gmra.mrb[0].mxu0 %v184
  %v279 = vpop.f32.mrb[0].mxu0
  %v280 = vadd.f32 %v151, %v279
  %v281 = vpop.f32.mrb[0].mxu0
  %282 = vmatprep.mubr.f32.mxu0 0.0
  %283 = vmatmul.mubr.f32.gmra.mrb[0].mxu0 %v187
  %v284 = vpop.f32.mrb[0].mxu0
  %v285 = vadd.f32 %v156, %v284
  %v286 = vpop.f32.mrb[0].mxu0
  %287 = vmatprep.mubr.f32.mxu0 0.0
  %288 = vmatmul.mubr.f32.gmra.mrb[0].mxu0 %v190
  %v289 = vpop.f32.mrb[0].mxu0
  %v290 = vadd.f32 %v161, %v289
  %v291 = vpop.f32.mrb[0].mxu0
  %292 = vmatprep.mubr.f32.mxu0 0.0
  %293 = vmatmul.mubr.f32.gmra.mrb[0].mxu0 %v193
  %v294 = vpop.f32.mrb[0].mxu0
  %v295 = vadd.f32 %v166, %v294
  %v296 = vpop.f32.mrb[0].mxu0
  %297 = vmatprep.mubr.f32.mxu0 0.0
  %298 = vmatmul.mubr.f32.gmra.mrb[0].mxu0 %v196
  %v299 = vpop.f32.mrb[0].mxu0
  %v300 = vadd.f32 %v171, %v299
  %v301 = vpop.f32.mrb[0].mxu0
  %302 = vdwg.mxu0
  %v303 = vld [vmem:[%s4] sm:$0x1]
  %v305 = vlaneseq
  %v306 = vshrl.u32 %v305, 7
  %v307 = vsub.s32 0, %v306
  %v308 = vrot.slane %v303, %v307
  %v310 = vadd.f32 %v265, %v308
  %v311 = vadd.f32 %v270, %v308
  %v312 = vadd.f32 %v275, %v308
  %v313 = vadd.f32 %v280, %v308
  %v314 = vadd.f32 %v285, %v308
  %v315 = vadd.f32 %v290, %v308
  %v316 = vadd.f32 %v295, %v308
  %v317 = vadd.f32 %v300, %v308
  %318 = vst [vmem:[%s5] sm:$0xff] %v310
  %319 = vst [vmem:[%s5 + $0x8] sm:$0xff] %v311
  %320 = vst [vmem:[%s5 + $0x10] sm:$0xff] %v312
  %321 = vst [vmem:[%s5 + $0x18] sm:$0xff] %v313
  %322 = vst [vmem:[%s5 + $0x20] sm:$0xff] %v314
  %323 = vst [vmem:[%s5 + $0x28] sm:$0xff] %v315
  %324 = vst [vmem:[%s5 + $0x30] sm:$0xff] %v316
  %325 = vst [vmem:[%s5 + $0x38] sm:$0xff] %v317
  // Predicated region
  $region22: #{_lambda_.5} parent=0 // pred_check
    _
  $region23: #{_lambda_.5} parent=0 // pred_check_branch
    %327 = sbr.rel (0) target = $region25
  $region24: #{_lambda_.5} parent=0 // pred_region
    _
  $region25: #{_lambda_.5} parent=0 // pred_fallthru
    _
  // Predicated region
  $region26: #{_lambda_.5} parent=0 // pred_check
    _
  $region27: #{_lambda_.5} parent=0 // pred_check_branch
    %329 = sbr.rel (0) target = $region29
  $region28: #{_lambda_.5} parent=0 // pred_region
    _
  $region29: #{_lambda_.5} parent=0 // pred_fallthru
    _

// kernel: _lambda_.4
$region0: #{_lambda_.4}
  #allocation0 [shape = 'u32[]', space=smem, size = 0x4, offset = 0x4, fixed_abs, tag = 'smem constant byte address 0x4 - core index']
  #allocation1 [shape = 'u32[144,128]{1,0:T(1,128)}', space=vmem, size = 0x12000, scoped, tag = 'internal scratch']
  #allocation2 [shape = 'f32[8,32]{1,0:T(8,128)}', space=vmem, size = 0x1000, scoped, tag = 'scratch operand']
  #allocation3 [shape = 'f32[8,32]{1,0:T(8,128)}', space=vmem, size = 0x1000, scoped, tag = 'scratch operand']
  #allocation4 [shape = 'f32[8,32]{1,0:T(8,128)}', space=vmem, size = 0x1000, scoped, tag = 'scratch operand']
  #allocation5 [shape = 'f32[8,32]{1,0:T(8,128)}', space=vmem, size = 0x1000, scoped, tag = 'scratch operand']
  %s0 = inlined_call_operand.vmem [shape: s32[8,1], index: 0, kind: input, shape index: {}]
  %s1 = inlined_call_operand.vmem [shape: f32[8,8,256], index: 1, kind: input, shape index: {}, may-alias: {1,2}]
  %s2 = inlined_call_operand.vmem [shape: f32[8,8,256], index: 2, kind: input, shape index: {}, may-alias: {1,2}]
  %s3 = inlined_call_operand.vmem [shape: f32[64,256], index: 3, kind: input, shape index: {}]
  %s4 = inlined_call_operand.vmem [shape: f32[8,8,32], index: 4, kind: output, shape index: {0}]
  %s5 = inlined_call_operand.vmem [shape: f32[8,8,32], index: 5, kind: output, shape index: {1}]
  %6 = xla_tuple %s4, %s5
  %s7 = sld [smem:[#allocation0]]
  $region114: #{_lambda_.4} parent=0
    _
  %s9 = ssub.s32 1, %s7
  %s10 = scalar_select 0, %s9, %s7
  $region1: #{_lambda_.4} parent=0
    #allocation6 [shape = 'u8[32768]{0}', space=vmem, size = 0x8000, scoped, tag = 'input window, operand 1, single buffered']
    #allocation7 [shape = 'u8[32768]{0}', space=vmem, size = 0x8000, scoped, tag = 'input window, operand 2, single buffered']
    // Predicated region
    $region2: #{_lambda_.4} parent=1 // pred_check
      _
    $region3: #{_lambda_.4} parent=1 // pred_check_branch
      %12 = sbr.rel (0) target = $region5
    $region4: #{_lambda_.4} parent=1 // pred_region
      _
    $region5: #{_lambda_.4} parent=1 // pred_fallthru
      _
    // Predicated region
    $region6: #{_lambda_.4} parent=1 // pred_check
      _
    $region7: #{_lambda_.4} parent=1 // pred_check_branch
      %14 = sbr.rel (0) target = $region9
    $region8: #{_lambda_.4} parent=1 // pred_region
      // Predicated region
      $region10: #{_lambda_.4} parent=8 // pred_check
        _
      $region11: #{_lambda_.4} parent=8 // pred_check_branch
        %16 = sbr.rel (0) target = $region13
      $region12: #{_lambda_.4} parent=8 // pred_region
        // Predicated region
        $region14: #{_lambda_.4} parent=12 // pred_check
          _
        $region15: #{_lambda_.4} parent=12 // pred_check_branch
          %18 = sbr.rel (0) target = $region17
        $region16: #{_lambda_.4} parent=12 // pred_region
          // Predicated region
          $region29: #{_lambda_.4} parent=16 // pred_check
            _
          $region30: #{_lambda_.4} parent=16 // pred_check_branch
            %47 = sbr.rel (0) target = $region32
          $region31: #{_lambda_.4} parent=16 // pred_region
            loop: start=0, step=1, limit=1
            $region33: #{_lambda_.4} parent=31 // loop_pre_header
              _
            $region34: #{_lambda_.4} parent=31 // loop_header
              %s49 = sphi 0, %s53
              %p50 = scmp.ge.s32.totalorder %s49, 1
              %s54 = sphi %s1, %s1
              %s55 = sphi [#allocation6], [#allocation6]
            $region35: #{_lambda_.4} parent=31 // loop_header_branch
              %52 = sbr.rel (%p50) target = $region39
            $region36: #{_lambda_.4} parent=31 // loop_body
              %v56 = vld [vmem:[%s54] sm:$0xff]
              %57 = vst [vmem:[%s55] sm:$0xff] %v56
              %v58 = vld [vmem:[%s54 + $0x10] sm:$0xff]
              %59 = vst [vmem:[%s55 + $0x8] sm:$0xff] %v58
              %v60 = vld [vmem:[%s54 + $0x20] sm:$0xff]
              %61 = vst [vmem:[%s55 + $0x10] sm:$0xff] %v60
              %v62 = vld [vmem:[%s54 + $0x30] sm:$0xff]
              %63 = vst [vmem:[%s55 + $0x18] sm:$0xff] %v62
              %v64 = vld [vmem:[%s54 + $0x40] sm:$0xff]
              %65 = vst [vmem:[%s55 + $0x20] sm:$0xff] %v64
              %v66 = vld [vmem:[%s54 + $0x50] sm:$0xff]
              %67 = vst [vmem:[%s55 + $0x28] sm:$0xff] %v66
              %v68 = vld [vmem:[%s54 + $0x60] sm:$0xff]
              %69 = vst [vmem:[%s55 + $0x30] sm:$0xff] %v68
              %v70 = vld [vmem:[%s54 + $0x70] sm:$0xff]
              %71 = vst [vmem:[%s55 + $0x38] sm:$0xff] %v70
            $region37: #{_lambda_.4} parent=31 // loop_footer
              %s53 = sadd.s32 1, %s49
            $region38: #{_lambda_.4} parent=31 // loop_footer_branch
              %48 = sbr.rel target = $region34
            $region39: #{_lambda_.4} parent=31 // loop_exit
              _
          $region32: #{_lambda_.4} parent=16 // pred_fallthru
            _
          // Predicated region
          $region40: #{_lambda_.4} parent=16 // pred_check
            _
          $region41: #{_lambda_.4} parent=16 // pred_check_branch
            %73 = sbr.rel target = $region43
          $region42: #{_lambda_.4} parent=16 // pred_region
            _
          $region43: #{_lambda_.4} parent=16 // pred_fallthru
            _
        $region17: #{_lambda_.4} parent=12 // pred_fallthru
          _
        // Predicated region
        $region18: #{_lambda_.4} parent=12 // pred_check
          _
        $region19: #{_lambda_.4} parent=12 // pred_check_branch
          %20 = sbr.rel target = $region21
        $region20: #{_lambda_.4} parent=12 // pred_region
          loop: start=0, step=1, limit=1
          $region22: #{_lambda_.4} parent=20 // loop_pre_header
            _
          $region23: #{_lambda_.4} parent=20 // loop_header
            %s23 = sphi 0, %s27
            %p24 = scmp.ge.s32.totalorder %s23, 1
            %s28 = sphi %s1, %s1
            %s29 = sphi [#allocation6], [#allocation6]
          $region24: #{_lambda_.4} parent=20 // loop_header_branch
            %26 = sbr.rel (%p24) target = $region28
          $region25: #{_lambda_.4} parent=20 // loop_body
            %v30 = vld [vmem:[%s28] sm:$0xff]
            %31 = vst [vmem:[%s29] sm:$0xff] %v30
            %v32 = vld [vmem:[%s28 + $0x10] sm:$0xff]
            %33 = vst [vmem:[%s29 + $0x8] sm:$0xff] %v32
            %v34 = vld [vmem:[%s28 + $0x20] sm:$0xff]
            %35 = vst [vmem:[%s29 + $0x10] sm:$0xff] %v34
            %v36 = vld [vmem:[%s28 + $0x30] sm:$0xff]
            %37 = vst [vmem:[%s29 + $0x18] sm:$0xff] %v36
            %v38 = vld [vmem:[%s28 + $0x40] sm:$0xff]
            %39 = vst [vmem:[%s29 + $0x20] sm:$0xff] %v38
            %v40 = vld [vmem:[%s28 + $0x50] sm:$0xff]
            %41 = vst [vmem:[%s29 + $0x28] sm:$0xff] %v40
            %v42 = vld [vmem:[%s28 + $0x60] sm:$0xff]
            %43 = vst [vmem:[%s29 + $0x30] sm:$0xff] %v42
            %v44 = vld [vmem:[%s28 + $0x70] sm:$0xff]
            %45 = vst [vmem:[%s29 + $0x38] sm:$0xff] %v44
          $region26: #{_lambda_.4} parent=20 // loop_footer
            %s27 = sadd.s32 1, %s23
          $region27: #{_lambda_.4} parent=20 // loop_footer_branch
            %22 = sbr.rel target = $region23
          $region28: #{_lambda_.4} parent=20 // loop_exit
            _
        $region21: #{_lambda_.4} parent=12 // pred_fallthru
          _
      $region13: #{_lambda_.4} parent=8 // pred_fallthru
        _
      %74 = vnop
    $region9: #{_lambda_.4} parent=1 // pred_fallthru
      _
    // Predicated region
    $region44: #{_lambda_.4} parent=1 // pred_check
      _
    $region45: #{_lambda_.4} parent=1 // pred_check_branch
      %76 = sbr.rel (0) target = $region47
    $region46: #{_lambda_.4} parent=1 // pred_region
      %s77 = ssub.s32 0, 0
      %s78 = smul.u32 8, %s77
      %s79 = smul.addr %s78, 2
      %s80 = sadd.s32 1, %s79
      %s81 = smul.addr %s80, 8
      %s82 = scalar_lea.vmem %s2, %s81
      // Predicated region
      $region48: #{_lambda_.4} parent=46 // pred_check
        _
      $region49: #{_lambda_.4} parent=46 // pred_check_branch
        %84 = sbr.rel (0) target = $region51
      $region50: #{_lambda_.4} parent=46 // pred_region
        // Predicated region
        $region52: #{_lambda_.4} parent=50 // pred_check
          _
        $region53: #{_lambda_.4} parent=50 // pred_check_branch
          %86 = sbr.rel (0) target = $region55
        $region54: #{_lambda_.4} parent=50 // pred_region
          // Predicated region
          $region67: #{_lambda_.4} parent=54 // pred_check
            _
          $region68: #{_lambda_.4} parent=54 // pred_check_branch
            %115 = sbr.rel (0) target = $region70
          $region69: #{_lambda_.4} parent=54 // pred_region
            loop: start=0, step=1, limit=1
            $region71: #{_lambda_.4} parent=69 // loop_pre_header
              _
            $region72: #{_lambda_.4} parent=69 // loop_header
              %s117 = sphi 0, %s121
              %p118 = scmp.ge.s32.totalorder %s117, 1
              %s122 = sphi %s82, %s82
              %s123 = sphi [#allocation7], [#allocation7]
            $region73: #{_lambda_.4} parent=69 // loop_header_branch
              %120 = sbr.rel (%p118) target = $region77
            $region74: #{_lambda_.4} parent=69 // loop_body
              %v124 = vld [vmem:[%s122] sm:$0xff]
              %125 = vst [vmem:[%s123] sm:$0xff] %v124
              %v126 = vld [vmem:[%s122 + $0x10] sm:$0xff]
              %127 = vst [vmem:[%s123 + $0x8] sm:$0xff] %v126
              %v128 = vld [vmem:[%s122 + $0x20] sm:$0xff]
              %129 = vst [vmem:[%s123 + $0x10] sm:$0xff] %v128
              %v130 = vld [vmem:[%s122 + $0x30] sm:$0xff]
              %131 = vst [vmem:[%s123 + $0x18] sm:$0xff] %v130
              %v132 = vld [vmem:[%s122 + $0x40] sm:$0xff]
              %133 = vst [vmem:[%s123 + $0x20] sm:$0xff] %v132
              %v134 = vld [vmem:[%s122 + $0x50] sm:$0xff]
              %135 = vst [vmem:[%s123 + $0x28] sm:$0xff] %v134
              %v136 = vld [vmem:[%s122 + $0x60] sm:$0xff]
              %137 = vst [vmem:[%s123 + $0x30] sm:$0xff] %v136
              %v138 = vld [vmem:[%s122 + $0x70] sm:$0xff]
              %139 = vst [vmem:[%s123 + $0x38] sm:$0xff] %v138
            $region75: #{_lambda_.4} parent=69 // loop_footer
              %s121 = sadd.s32 1, %s117
            $region76: #{_lambda_.4} parent=69 // loop_footer_branch
              %116 = sbr.rel target = $region72
            $region77: #{_lambda_.4} parent=69 // loop_exit
              _
          $region70: #{_lambda_.4} parent=54 // pred_fallthru
            _
          // Predicated region
          $region78: #{_lambda_.4} parent=54 // pred_check
            _
          $region79: #{_lambda_.4} parent=54 // pred_check_branch
            %141 = sbr.rel target = $region81
          $region80: #{_lambda_.4} parent=54 // pred_region
            _
          $region81: #{_lambda_.4} parent=54 // pred_fallthru
            _
        $region55: #{_lambda_.4} parent=50 // pred_fallthru
          _
        // Predicated region
        $region56: #{_lambda_.4} parent=50 // pred_check
          _
        $region57: #{_lambda_.4} parent=50 // pred_check_branch
          %88 = sbr.rel target = $region59
        $region58: #{_lambda_.4} parent=50 // pred_region
          loop: start=0, step=1, limit=1
          $region60: #{_lambda_.4} parent=58 // loop_pre_header
            _
          $region61: #{_lambda_.4} parent=58 // loop_header
            %s91 = sphi 0, %s95
            %p92 = scmp.ge.s32.totalorder %s91, 1
            %s96 = sphi %s82, %s82
            %s97 = sphi [#allocation7], [#allocation7]
          $region62: #{_lambda_.4} parent=58 // loop_header_branch
            %94 = sbr.rel (%p92) target = $region66
          $region63: #{_lambda_.4} parent=58 // loop_body
            %v98 = vld [vmem:[%s96] sm:$0xff]
            %99 = vst [vmem:[%s97] sm:$0xff] %v98
            %v100 = vld [vmem:[%s96 + $0x10] sm:$0xff]
            %101 = vst [vmem:[%s97 + $0x8] sm:$0xff] %v100
            %v102 = vld [vmem:[%s96 + $0x20] sm:$0xff]
            %103 = vst [vmem:[%s97 + $0x10] sm:$0xff] %v102
            %v104 = vld [vmem:[%s96 + $0x30] sm:$0xff]
            %105 = vst [vmem:[%s97 + $0x18] sm:$0xff] %v104
            %v106 = vld [vmem:[%s96 + $0x40] sm:$0xff]
            %107 = vst [vmem:[%s97 + $0x20] sm:$0xff] %v106
            %v108 = vld [vmem:[%s96 + $0x50] sm:$0xff]
            %109 = vst [vmem:[%s97 + $0x28] sm:$0xff] %v108
            %v110 = vld [vmem:[%s96 + $0x60] sm:$0xff]
            %111 = vst [vmem:[%s97 + $0x30] sm:$0xff] %v110
            %v112 = vld [vmem:[%s96 + $0x70] sm:$0xff]
            %113 = vst [vmem:[%s97 + $0x38] sm:$0xff] %v112
          $region64: #{_lambda_.4} parent=58 // loop_footer
            %s95 = sadd.s32 1, %s91
          $region65: #{_lambda_.4} parent=58 // loop_footer_branch
            %90 = sbr.rel target = $region61
          $region66: #{_lambda_.4} parent=58 // loop_exit
            _
        $region59: #{_lambda_.4} parent=50 // pred_fallthru
          _
      $region51: #{_lambda_.4} parent=46 // pred_fallthru
        _
      %142 = vnop
    $region47: #{_lambda_.4} parent=1 // pred_fallthru
      _
    // Predicated region
    $region82: #{_lambda_.4} parent=1 // pred_check
      _
    $region83: #{_lambda_.4} parent=1 // pred_check_branch
      %144 = sbr.rel (0) target = $region85
    $region84: #{_lambda_.4} parent=1 // pred_region
      _
    $region85: #{_lambda_.4} parent=1 // pred_fallthru
      _
    // Predicated region
    $region86: #{_lambda_.4} parent=1 // pred_check
      _
    $region87: #{_lambda_.4} parent=1 // pred_check_branch
      %146 = sbr.rel (0) target = $region89
    $region88: #{_lambda_.4} parent=1 // pred_region
      _
    $region89: #{_lambda_.4} parent=1 // pred_fallthru
      _
    // Predicated region
    $region90: #{_lambda_.4} parent=1 // pred_check
      _
    $region91: #{_lambda_.4} parent=1 // pred_check_branch
      %148 = sbr.rel (0) target = $region93
    $region92: #{_lambda_.4} parent=1 // pred_region
      _
    $region93: #{_lambda_.4} parent=1 // pred_fallthru
      _
    %s149 = ssub.s32 0, 0
    %s150 = smul.u32 8, %s149
    %p151 = scmp.lt.s32.totalorder %s150, 7
    %s152 = scalar_select %p151, %s150, 7
    %s153 = smul.addr %s152, 8
    %s154 = scalar_lea.vmem %s5, %s153
    %s155 = ssub.s32 0, 0
    %s156 = smul.u32 8, %s155
    %s157 = ssub.s32 0, 0
    %s158 = smul.u32 8, %s157
    %p159 = scmp.lt.s32.totalorder %s158, 7
    %s160 = scalar_select %p159, %s158, 7
    %s161 = smul.addr %s160, 8
    %s162 = scalar_lea.vmem %s5, %s161
    %s163 = ssub.s32 0, 0
    %s164 = smul.u32 8, %s163
    %p165 = scmp.eq.s32.totalorder 0, 0
    // Predicated region
    $region94: #{_lambda_.4} parent=1 // pred_check
      %p166 = pneg %p165
    $region95: #{_lambda_.4} parent=1 // pred_check_branch
      %168 = sbr.rel (%p166) target = $region97
    $region96: #{_lambda_.4} parent=1 // pred_region
      %vm169 = vcmask 261120
      %170 = vst.msk [vmem:[#allocation2] sm:$0xff] %vm169, 0.0
      %171 = vst.msk [vmem:[#allocation3] sm:$0xff] %vm169, 0.0
      %172 = vst.msk [vmem:[#allocation4] sm:$0xff] %vm169, 0.0
      %173 = vst.msk [vmem:[#allocation5] sm:$0xff] %vm169, 0.0
    $region97: #{_lambda_.4} parent=1 // pred_fallthru
      _
    %v174 = vld [vmem:[%s0] sm:$0xff]
    %v175 = vld [vmem:[%s3] sm:$0xff]
    %v176 = vld [vmem:[%s3 + $0x8] sm:$0xff]
    %v177 = vld [vmem:[%s3 + $0x10] sm:$0xff]
    %v178 = vld [vmem:[%s3 + $0x18] sm:$0xff]
    %v179 = vld [vmem:[%s3 + $0x20] sm:$0xff]
    %v180 = vld [vmem:[%s3 + $0x28] sm:$0xff]
    %v181 = vld [vmem:[%s3 + $0x30] sm:$0xff]
    %v182 = vld [vmem:[%s3 + $0x38] sm:$0xff]
    %v183 = vld [vmem:[%s3 + $0x40] sm:$0xff]
    %v184 = vld [vmem:[%s3 + $0x48] sm:$0xff]
    %v185 = vld [vmem:[%s3 + $0x50] sm:$0xff]
    %v186 = vld [vmem:[%s3 + $0x58] sm:$0xff]
    %v187 = vld [vmem:[%s3 + $0x60] sm:$0xff]
    %v188 = vld [vmem:[%s3 + $0x68] sm:$0xff]
    %v189 = vld [vmem:[%s3 + $0x70] sm:$0xff]
    %v190 = vld [vmem:[%s3 + $0x78] sm:$0xff]
    %v191 = vld [vmem:[#allocation2] sm:$0xff]
    %v192 = vld [vmem:[#allocation3] sm:$0xff]
    %v193 = vld [vmem:[#allocation4] sm:$0xff]
    %v194 = vld [vmem:[#allocation5] sm:$0xff]
    %s195 = smul.u32 0, 8
    %s196 = ssub.s32 7, %s195
    %198 = vrot.lane.b32.xlu0 %v193, 32
    %v199 = vpop.permute.xlu0 %198
    %vm201 = vcmask 261120
    %v202 = vsel %vm201, %v191, %v199
    %vm203 = vcmask 523264
    %v205 = vsel %vm203, %v202, 0
    %207 = vmatprep.subr.mxu0 %v176
    %208 = vmatpush1.msra.mxu0 %v175
    %209 = vmatprep.subr.mxu0 %v178
    %210 = vmatpush1.msra.mxu0 %v177
    %211 = vmatprep.subr.mxu0 %v180
    %212 = vmatpush1.msra.mxu0 %v179
    %213 = vmatprep.subr.mxu0 %v182
    %214 = vmatpush1.msra.mxu0 %v181
    %215 = vmatprep.subr.mxu0 %v184
    %216 = vmatpush1.msra.mxu0 %v183
    %217 = vmatprep.subr.mxu0 %v186
    %218 = vmatpush1.msra.mxu0 %v185
    %219 = vmatprep.subr.mxu0 %v188
    %220 = vmatpush1.msra.mxu0 %v187
    %221 = vmatprep.subr.mxu0 %v190
    %222 = vmatpush1.msra.mxu0 %v189
    %223 = vmatprep.subr.mxu0 0.0
    %224 = vmatpush1.msra.mxu0 0.0
    %225 = vmatprep.subr.mxu0 0.0
    %226 = vmatpush1.msra.mxu0 0.0
    %227 = vmatprep.subr.mxu0 0.0
    %228 = vmatpush1.msra.mxu0 0.0
    %229 = vmatprep.subr.mxu0 0.0
    %230 = vmatpush1.msra.mxu0 0.0
    %231 = vmatprep.subr.mxu0 0.0
    %232 = vmatpush1.msra.mxu0 0.0
    %233 = vmatprep.subr.mxu0 0.0
    %234 = vmatpush1.msra.mxu0 0.0
    %235 = vmatprep.subr.mxu0 0.0
    %236 = vmatpush1.msra.mxu0 0.0
    %237 = vmatprep.subr.mxu0 0.0
    %238 = vmatpush1.msra.mxu0 0.0
    %239 = vmatprep.subr.mxu0 0.0
    %240 = vmatpush1.msra.mxu0 0.0
    %241 = vmatprep.subr.mxu0 0.0
    %242 = vmatpush1.msra.mxu0 0.0
    %243 = vmatprep.subr.mxu0 0.0
    %244 = vmatpush1.msra.mxu0 0.0
    %245 = vmatprep.subr.mxu0 0.0
    %246 = vmatpush1.msra.mxu0 0.0
    %247 = vmatprep.subr.mxu0 0.0
    %248 = vmatpush1.msra.mxu0 0.0
    %249 = vmatprep.subr.mxu0 0.0
    %250 = vmatpush1.msra.mxu0 0.0
    %251 = vmatprep.subr.mxu0 0.0
    %252 = vmatpush1.msra.mxu0 0.0
    %253 = vmatprep.subr.mxu0 0.0
    %254 = vmatpush1.msra.mxu0 0.0
    %255 = vmatprep.subr.mxu0 0.0
    %256 = vmatpush1.msra.mxu0 0.0
    %257 = vmatprep.subr.mxu0 0.0
    %258 = vmatpush1.msra.mxu0 0.0
    %259 = vmatprep.subr.mxu0 0.0
    %260 = vmatpush1.msra.mxu0 0.0
    %261 = vmatprep.subr.mxu0 0.0
    %262 = vmatpush1.msra.mxu0 0.0
    %263 = vmatprep.subr.mxu0 0.0
    %264 = vmatpush1.msra.mxu0 0.0
    %265 = vmatprep.subr.mxu0 0.0
    %266 = vmatpush1.msra.mxu0 0.0
    %267 = vmatprep.subr.mxu0 0.0
    %268 = vmatpush1.msra.mxu0 0.0
    %269 = vmatprep.subr.mxu0 0.0
    %270 = vmatpush1.msra.mxu0 0.0
    %271 = vmatprep.mubr.f32.mxu0 0.0
    %272 = vmatmul.mubr.f32.gmra.mrb[0].mxu0 %v205
    %v273 = vpop.f32.mrb[0].mxu0
    %v274 = vadd.f32 0.0, %v273
    %v275 = vpop.f32.mrb[0].mxu0
    %v276 = vadd.f32 0.0, %v275
    %277 = vdwg.mxu0
    %v278 = vld [vmem:[#allocation6] sm:$0xff]
    %v279 = vadd.f32 %v278, %v274
    %v280 = vxor.u32 %v279, 2147483648
    %v281 = vmul.f32 %v280, 1.442695
    %v282 = vpow.pop %v281
    %v283 = vadd.f32 %v282, 1.0
    %v284 = vrcp.pop %v283
    %v285 = vmul.f32 1.0, %v284
    %v286 = vtanh.pop %v279
    %288 = vrot.lane.b32.xlu0 %v192, 32
    %v289 = vpop.permute.xlu0 %288
    %v291 = vmul.f32 %v285, %v289
    %293 = vrot.lane.b32.xlu0 %v286, 64
    %v294 = vpop.permute.xlu0 %293
    %v296 = vmul.f32 %v285, %v294
    %298 = vrot.lane.b32.xlu0 %v296, 32
    %v299 = vpop.permute.xlu0 %298
    %v301 = vadd.f32 %v291, %v299
    %v302 = vtanh.pop %v301
    %304 = vrot.lane.b32.xlu0 %v302, 64
    %v305 = vpop.permute.xlu0 %304
    %v307 = vmul.f32 %v285, %v305
    %s308 = scalar_lea.vmem [#allocation7], 56
    %v309 = vld [vmem:[%s308] sm:$0xff]
    %v310 = vadd.f32 %v309, %v276
    %v311 = vxor.u32 %v310, 2147483648
    %v312 = vmul.f32 %v311, 1.442695
    %v313 = vpow.pop %v312
    %v314 = vadd.f32 %v313, 1.0
    %v315 = vrcp.pop %v314
    %v316 = vmul.f32 1.0, %v315
    %v317 = vtanh.pop %v310
    %319 = vrot.lane.b32.xlu0 %v194, 32
    %v320 = vpop.permute.xlu0 %319
    %v322 = vmul.f32 %v316, %v320
    %324 = vrot.lane.b32.xlu0 %v317, 64
    %v325 = vpop.permute.xlu0 %324
    %v327 = vmul.f32 %v316, %v325
    %329 = vrot.lane.b32.xlu0 %v327, 32
    %v330 = vpop.permute.xlu0 %329
    %v332 = vadd.f32 %v322, %v330
    %v333 = vtanh.pop %v332
    %335 = vrot.lane.b32.xlu0 %v333, 64
    %v336 = vpop.permute.xlu0 %335
    %v338 = vmul.f32 %v316, %v336
    %v339 = vstv %s195
    %vm340 = vcmp.lt.s32.totalorder %v339, %v174
    %v341 = vstv %s196
    %vm342 = vcmp.lt.s32.totalorder %v341, %v174
    %v343 = vsel %vm340, 1, 0
    %344 = vset.pattern.permute.xlu0 0
    %345 = vperm.xlu0 %344, %v343
    %v346 = vpop.permute.xlu0 %345
    %vm347 = vcmp.eq.s32.totalorder %v346, 1
    %349 = vrot.lane.b32.xlu0 %v191, 96
    %v350 = vpop.permute.xlu0 %349
    %v352 = vsel %vm347, %v307, %v350
    %v353 = vsel %vm347, %v301, %v289
    %v354 = vsel %vm342, 1, 0
    %355 = vset.pattern.permute.xlu0 0
    %356 = vperm.xlu0 %355, %v354
    %v357 = vpop.permute.xlu0 %356
    %vm358 = vcmp.eq.s32.totalorder %v357, 1
    %359 = vrot.lane.b32.xlu0 %v193, 96
    %v360 = vpop.permute.xlu0 %359
    %v362 = vsel %vm358, %v338, %v360
    %v363 = vsel %vm358, %v332, %v320
    %v364 = vsel %vm347, %v307, 0.0
    %366 = vrot.lane.b32.xlu0 %v364, 32
    %v367 = vpop.permute.xlu0 %366
    %369 = vst.msk [vmem:[%s4] sm:$0xff] %vm201, %v367
    %v370 = vsel %vm358, %v338, 0.0
    %372 = vrot.lane.b32.xlu0 %v370, 32
    %v373 = vpop.permute.xlu0 %372
    %s375 = scalar_lea.vmem %s162, 56
    %376 = vst.msk [vmem:[%s375] sm:$0xff] %vm201, %v373
    %s377 = sadd.s32 %s195, 1
    %s378 = ssub.s32 6, %s195
    %380 = vrot.lane.b32.xlu0 %v352, 32
    %v381 = vpop.permute.xlu0 %380
    %384 = vrot.lane.b32.xlu0 %v362, 64
    %v385 = vpop.permute.xlu0 %384
    %v387 = vsel %vm201, %v381, %v385
    %v389 = vsel %vm203, %v387, 0
    %391 = vmatprep.subr.mxu0 %v176
    %392 = vmatpush1.msra.mxu0 %v175
    %393 = vmatprep.subr.mxu0 %v178
    %394 = vmatpush1.msra.mxu0 %v177
    %395 = vmatprep.subr.mxu0 %v180
    %396 = vmatpush1.msra.mxu0 %v179
    %397 = vmatprep.subr.mxu0 %v182
    %398 = vmatpush1.msra.mxu0 %v181
    %399 = vmatprep.subr.mxu0 %v184
    %400 = vmatpush1.msra.mxu0 %v183
    %401 = vmatprep.subr.mxu0 %v186
    %402 = vmatpush1.msra.mxu0 %v185
    %403 = vmatprep.subr.mxu0 %v188
    %404 = vmatpush1.msra.mxu0 %v187
    %405 = vmatprep.subr.mxu0 %v190
    %406 = vmatpush1.msra.mxu0 %v189
    %407 = vmatprep.subr.mxu0 0.0
    %408 = vmatpush1.msra.mxu0 0.0
    %409 = vmatprep.subr.mxu0 0.0
    %410 = vmatpush1.msra.mxu0 0.0
    %411 = vmatprep.subr.mxu0 0.0
    %412 = vmatpush1.msra.mxu0 0.0
    %413 = vmatprep.subr.mxu0 0.0
    %414 = vmatpush1.msra.mxu0 0.0
    %415 = vmatprep.subr.mxu0 0.0
    %416 = vmatpush1.msra.mxu0 0.0
    %417 = vmatprep.subr.mxu0 0.0
    %418 = vmatpush1.msra.mxu0 0.0
    %419 = vmatprep.subr.mxu0 0.0
    %420 = vmatpush1.msra.mxu0 0.0
    %421 = vmatprep.subr.mxu0 0.0
    %422 = vmatpush1.msra.mxu0 0.0
    %423 = vmatprep.subr.mxu0 0.0
    %424 = vmatpush1.msra.mxu0 0.0
    %425 = vmatprep.subr.mxu0 0.0
    %426 = vmatpush1.msra.mxu0 0.0
    %427 = vmatprep.subr.mxu0 0.0
    %428 = vmatpush1.msra.mxu0 0.0
    %429 = vmatprep.subr.mxu0 0.0
    %430 = vmatpush1.msra.mxu0 0.0
    %431 = vmatprep.subr.mxu0 0.0
    %432 = vmatpush1.msra.mxu0 0.0
    %433 = vmatprep.subr.mxu0 0.0
    %434 = vmatpush1.msra.mxu0 0.0
    %435 = vmatprep.subr.mxu0 0.0
    %436 = vmatpush1.msra.mxu0 0.0
    %437 = vmatprep.subr.mxu0 0.0
    %438 = vmatpush1.msra.mxu0 0.0
    %439 = vmatprep.subr.mxu0 0.0
    %440 = vmatpush1.msra.mxu0 0.0
    %441 = vmatprep.subr.mxu0 0.0
    %442 = vmatpush1.msra.mxu0 0.0
    %443 = vmatprep.subr.mxu0 0.0
    %444 = vmatpush1.msra.mxu0 0.0
    %445 = vmatprep.subr.mxu0 0.0
    %446 = vmatpush1.msra.mxu0 0.0
    %447 = vmatprep.subr.mxu0 0.0
    %448 = vmatpush1.msra.mxu0 0.0
    %449 = vmatprep.subr.mxu0 0.0
    %450 = vmatpush1.msra.mxu0 0.0
    %451 = vmatprep.subr.mxu0 0.0
    %452 = vmatpush1.msra.mxu0 0.0
    %453 = vmatprep.subr.mxu0 0.0
    %454 = vmatpush1.msra.mxu0 0.0
    %455 = vmatprep.mubr.f32.mxu0 0.0
    %456 = vmatmul.mubr.f32.gmra.mrb[0].mxu0 %v389
    %v457 = vpop.f32.mrb[0].mxu0
    %v458 = vadd.f32 0.0, %v457
    %v459 = vpop.f32.mrb[0].mxu0
    %v460 = vadd.f32 0.0, %v459
    %461 = vdwg.mxu0
    %s462 = scalar_lea.vmem [#allocation6], 8
    %v463 = vld [vmem:[%s462] sm:$0xff]
    %v464 = vadd.f32 %v463, %v458
    %v465 = vxor.u32 %v464, 2147483648
    %v466 = vmul.f32 %v465, 1.442695
    %v467 = vpow.pop %v466
    %v468 = vadd.f32 %v467, 1.0
    %v469 = vrcp.pop %v468
    %v470 = vmul.f32 1.0, %v469
    %v471 = vtanh.pop %v464
    %v472 = vmul.f32 %v470, %v353
    %474 = vrot.lane.b32.xlu0 %v471, 64
    %v475 = vpop.permute.xlu0 %474
    %v477 = vmul.f32 %v470, %v475
    %479 = vrot.lane.b32.xlu0 %v477, 32
    %v480 = vpop.permute.xlu0 %479
    %v482 = vadd.f32 %v472, %v480
    %v483 = vtanh.pop %v482
    %485 = vrot.lane.b32.xlu0 %v483, 64
    %v486 = vpop.permute.xlu0 %485
    %v488 = vmul.f32 %v470, %v486
    %s489 = scalar_lea.vmem [#allocation7], 48
    %v490 = vld [vmem:[%s489] sm:$0xff]
    %v491 = vadd.f32 %v490, %v460
    %v492 = vxor.u32 %v491, 2147483648
    %v493 = vmul.f32 %v492, 1.442695
    %v494 = vpow.pop %v493
    %v495 = vadd.f32 %v494, 1.0
    %v496 = vrcp.pop %v495
    %v497 = vmul.f32 1.0, %v496
    %v498 = vtanh.pop %v491
    %v499 = vmul.f32 %v497, %v363
    %501 = vrot.lane.b32.xlu0 %v498, 64
    %v502 = vpop.permute.xlu0 %501
    %v504 = vmul.f32 %v497, %v502
    %506 = vrot.lane.b32.xlu0 %v504, 32
    %v507 = vpop.permute.xlu0 %506
    %v509 = vadd.f32 %v499, %v507
    %v510 = vtanh.pop %v509
    %512 = vrot.lane.b32.xlu0 %v510, 64
    %v513 = vpop.permute.xlu0 %512
    %v515 = vmul.f32 %v497, %v513
    %v516 = vstv %s377
    %vm517 = vcmp.lt.s32.totalorder %v516, %v174
    %v518 = vstv %s378
    %vm519 = vcmp.lt.s32.totalorder %v518, %v174
    %v520 = vsel %vm517, 1, 0
    %521 = vset.pattern.permute.xlu0 0
    %522 = vperm.xlu0 %521, %v520
    %v523 = vpop.permute.xlu0 %522
    %vm524 = vcmp.eq.s32.totalorder %v523, 1
    %v525 = vsel %vm524, %v488, %v352
    %v526 = vsel %vm524, %v482, %v353
    %v527 = vsel %vm519, 1, 0
    %528 = vset.pattern.permute.xlu0 0
    %529 = vperm.xlu0 %528, %v527
    %v530 = vpop.permute.xlu0 %529
    %vm531 = vcmp.eq.s32.totalorder %v530, 1
    %v532 = vsel %vm531, %v515, %v362
    %v533 = vsel %vm531, %v509, %v363
    %v534 = vsel %vm524, %v488, 0.0
    %536 = vrot.lane.b32.xlu0 %v534, 32
    %v537 = vpop.permute.xlu0 %536
    %s539 = scalar_lea.vmem %s4, 8
    %540 = vst.msk [vmem:[%s539] sm:$0xff] %vm201, %v537
    %v541 = vsel %vm531, %v515, 0.0
    %543 = vrot.lane.b32.xlu0 %v541, 32
    %v544 = vpop.permute.xlu0 %543
    %s546 = scalar_lea.vmem %s162, 48
    %547 = vst.msk [vmem:[%s546] sm:$0xff] %vm201, %v544
    %s548 = sadd.s32 %s195, 2
    %s549 = ssub.s32 5, %s195
    %551 = vrot.lane.b32.xlu0 %v525, 32
    %v552 = vpop.permute.xlu0 %551
    %555 = vrot.lane.b32.xlu0 %v532, 64
    %v556 = vpop.permute.xlu0 %555
    %v558 = vsel %vm201, %v552, %v556
    %v560 = vsel %vm203, %v558, 0
    %562 = vmatprep.subr.mxu0 %v176
    %563 = vmatpush1.msra.mxu0 %v175
    %564 = vmatprep.subr.mxu0 %v178
    %565 = vmatpush1.msra.mxu0 %v177
    %566 = vmatprep.subr.mxu0 %v180
    %567 = vmatpush1.msra.mxu0 %v179
    %568 = vmatprep.subr.mxu0 %v182
    %569 = vmatpush1.msra.mxu0 %v181
    %570 = vmatprep.subr.mxu0 %v184
    %571 = vmatpush1.msra.mxu0 %v183
    %572 = vmatprep.subr.mxu0 %v186
    %573 = vmatpush1.msra.mxu0 %v185
    %574 = vmatprep.subr.mxu0 %v188
    %575 = vmatpush1.msra.mxu0 %v187
    %576 = vmatprep.subr.mxu0 %v190
    %577 = vmatpush1.msra.mxu0 %v189
    %578 = vmatprep.subr.mxu0 0.0
    %579 = vmatpush1.msra.mxu0 0.0
    %580 = vmatprep.subr.mxu0 0.0
    %581 = vmatpush1.msra.mxu0 0.0
    %582 = vmatprep.subr.mxu0 0.0
    %583 = vmatpush1.msra.mxu0 0.0
    %584 = vmatprep.subr.mxu0 0.0
    %585 = vmatpush1.msra.mxu0 0.0
    %586 = vmatprep.subr.mxu0 0.0
    %587 = vmatpush1.msra.mxu0 0.0
    %588 = vmatprep.subr.mxu0 0.0
    %589 = vmatpush1.msra.mxu0 0.0
    %590 = vmatprep.subr.mxu0 0.0
    %591 = vmatpush1.msra.mxu0 0.0
    %592 = vmatprep.subr.mxu0 0.0
    %593 = vmatpush1.msra.mxu0 0.0
    %594 = vmatprep.subr.mxu0 0.0
    %595 = vmatpush1.msra.mxu0 0.0
    %596 = vmatprep.subr.mxu0 0.0
    %597 = vmatpush1.msra.mxu0 0.0
    %598 = vmatprep.subr.mxu0 0.0
    %599 = vmatpush1.msra.mxu0 0.0
    %600 = vmatprep.subr.mxu0 0.0
    %601 = vmatpush1.msra.mxu0 0.0
    %602 = vmatprep.subr.mxu0 0.0
    %603 = vmatpush1.msra.mxu0 0.0
    %604 = vmatprep.subr.mxu0 0.0
    %605 = vmatpush1.msra.mxu0 0.0
    %606 = vmatprep.subr.mxu0 0.0
    %607 = vmatpush1.msra.mxu0 0.0
    %608 = vmatprep.subr.mxu0 0.0
    %609 = vmatpush1.msra.mxu0 0.0
    %610 = vmatprep.subr.mxu0 0.0
    %611 = vmatpush1.msra.mxu0 0.0
    %612 = vmatprep.subr.mxu0 0.0
    %613 = vmatpush1.msra.mxu0 0.0
    %614 = vmatprep.subr.mxu0 0.0
    %615 = vmatpush1.msra.mxu0 0.0
    %616 = vmatprep.subr.mxu0 0.0
    %617 = vmatpush1.msra.mxu0 0.0
    %618 = vmatprep.subr.mxu0 0.0
    %619 = vmatpush1.msra.mxu0 0.0
    %620 = vmatprep.subr.mxu0 0.0
    %621 = vmatpush1.msra.mxu0 0.0
    %622 = vmatprep.subr.mxu0 0.0
    %623 = vmatpush1.msra.mxu0 0.0
    %624 = vmatprep.subr.mxu0 0.0
    %625 = vmatpush1.msra.mxu0 0.0
    %626 = vmatprep.mubr.f32.mxu0 0.0
    %627 = vmatmul.mubr.f32.gmra.mrb[0].mxu0 %v560
    %v628 = vpop.f32.mrb[0].mxu0
    %v629 = vadd.f32 0.0, %v628
    %v630 = vpop.f32.mrb[0].mxu0
    %v631 = vadd.f32 0.0, %v630
    %632 = vdwg.mxu0
    %s633 = scalar_lea.vmem [#allocation6], 16
    %v634 = vld [vmem:[%s633] sm:$0xff]
    %v635 = vadd.f32 %v634, %v629
    %v636 = vxor.u32 %v635, 2147483648
    %v637 = vmul.f32 %v636, 1.442695
    %v638 = vpow.pop %v637
    %v639 = vadd.f32 %v638, 1.0
    %v640 = vrcp.pop %v639
    %v641 = vmul.f32 1.0, %v640
    %v642 = vtanh.pop %v635
    %v643 = vmul.f32 %v641, %v526
    %645 = vrot.lane.b32.xlu0 %v642, 64
    %v646 = vpop.permute.xlu0 %645
    %v648 = vmul.f32 %v641, %v646
    %650 = vrot.lane.b32.xlu0 %v648, 32
    %v651 = vpop.permute.xlu0 %650
    %v653 = vadd.f32 %v643, %v651
    %v654 = vtanh.pop %v653
    %656 = vrot.lane.b32.xlu0 %v654, 64
    %v657 = vpop.permute.xlu0 %656
    %v659 = vmul.f32 %v641, %v657
    %s660 = scalar_lea.vmem [#allocation7], 40
    %v661 = vld [vmem:[%s660] sm:$0xff]
    %v662 = vadd.f32 %v661, %v631
    %v663 = vxor.u32 %v662, 2147483648
    %v664 = vmul.f32 %v663, 1.442695
    %v665 = vpow.pop %v664
    %v666 = vadd.f32 %v665, 1.0
    %v667 = vrcp.pop %v666
    %v668 = vmul.f32 1.0, %v667
    %v669 = vtanh.pop %v662
    %v670 = vmul.f32 %v668, %v533
    %672 = vrot.lane.b32.xlu0 %v669, 64
    %v673 = vpop.permute.xlu0 %672
    %v675 = vmul.f32 %v668, %v673
    %677 = vrot.lane.b32.xlu0 %v675, 32
    %v678 = vpop.permute.xlu0 %677
    %v680 = vadd.f32 %v670, %v678
    %v681 = vtanh.pop %v680
    %683 = vrot.lane.b32.xlu0 %v681, 64
    %v684 = vpop.permute.xlu0 %683
    %v686 = vmul.f32 %v668, %v684
    %v687 = vstv %s548
    %vm688 = vcmp.lt.s32.totalorder %v687, %v174
    %v689 = vstv %s549
    %vm690 = vcmp.lt.s32.totalorder %v689, %v174
    %v691 = vsel %vm688, 1, 0
    %692 = vset.pattern.permute.xlu0 0
    %693 = vperm.xlu0 %692, %v691
    %v694 = vpop.permute.xlu0 %693
    %vm695 = vcmp.eq.s32.totalorder %v694, 1
    %v696 = vsel %vm695, %v659, %v525
    %v697 = vsel %vm695, %v653, %v526
    %v698 = vsel %vm690, 1, 0
    %699 = vset.pattern.permute.xlu0 0
    %700 = vperm.xlu0 %699, %v698
    %v701 = vpop.permute.xlu0 %700
    %vm702 = vcmp.eq.s32.totalorder %v701, 1
    %v703 = vsel %vm702, %v686, %v532
    %v704 = vsel %vm702, %v680, %v533
    %v705 = vsel %vm695, %v659, 0.0
    %707 = vrot.lane.b32.xlu0 %v705, 32
    %v708 = vpop.permute.xlu0 %707
    %s710 = scalar_lea.vmem %s4, 16
    %711 = vst.msk [vmem:[%s710] sm:$0xff] %vm201, %v708
    %v712 = vsel %vm702, %v686, 0.0
    %714 = vrot.lane.b32.xlu0 %v712, 32
    %v715 = vpop.permute.xlu0 %714
    %s717 = scalar_lea.vmem %s162, 40
    %718 = vst.msk [vmem:[%s717] sm:$0xff] %vm201, %v715
    %s719 = sadd.s32 %s195, 3
    %s720 = ssub.s32 4, %s195
    %722 = vrot.lane.b32.xlu0 %v696, 32
    %v723 = vpop.permute.xlu0 %722
    %726 = vrot.lane.b32.xlu0 %v703, 64
    %v727 = vpop.permute.xlu0 %726
    %v729 = vsel %vm201, %v723, %v727
    %v731 = vsel %vm203, %v729, 0
    %733 = vmatprep.subr.mxu0 %v176
    %734 = vmatpush1.msra.mxu0 %v175
    %735 = vmatprep.subr.mxu0 %v178
    %736 = vmatpush1.msra.mxu0 %v177
    %737 = vmatprep.subr.mxu0 %v180
    %738 = vmatpush1.msra.mxu0 %v179
    %739 = vmatprep.subr.mxu0 %v182
    %740 = vmatpush1.msra.mxu0 %v181
    %741 = vmatprep.subr.mxu0 %v184
    %742 = vmatpush1.msra.mxu0 %v183
    %743 = vmatprep.subr.mxu0 %v186
    %744 = vmatpush1.msra.mxu0 %v185
    %745 = vmatprep.subr.mxu0 %v188
    %746 = vmatpush1.msra.mxu0 %v187
    %747 = vmatprep.subr.mxu0 %v190
    %748 = vmatpush1.msra.mxu0 %v189
    %749 = vmatprep.subr.mxu0 0.0
    %750 = vmatpush1.msra.mxu0 0.0
    %751 = vmatprep.subr.mxu0 0.0
    %752 = vmatpush1.msra.mxu0 0.0
    %753 = vmatprep.subr.mxu0 0.0
    %754 = vmatpush1.msra.mxu0 0.0
    %755 = vmatprep.subr.mxu0 0.0
    %756 = vmatpush1.msra.mxu0 0.0
    %757 = vmatprep.subr.mxu0 0.0
    %758 = vmatpush1.msra.mxu0 0.0
    %759 = vmatprep.subr.mxu0 0.0
    %760 = vmatpush1.msra.mxu0 0.0
    %761 = vmatprep.subr.mxu0 0.0
    %762 = vmatpush1.msra.mxu0 0.0
    %763 = vmatprep.subr.mxu0 0.0
    %764 = vmatpush1.msra.mxu0 0.0
    %765 = vmatprep.subr.mxu0 0.0
    %766 = vmatpush1.msra.mxu0 0.0
    %767 = vmatprep.subr.mxu0 0.0
    %768 = vmatpush1.msra.mxu0 0.0
    %769 = vmatprep.subr.mxu0 0.0
    %770 = vmatpush1.msra.mxu0 0.0
    %771 = vmatprep.subr.mxu0 0.0
    %772 = vmatpush1.msra.mxu0 0.0
    %773 = vmatprep.subr.mxu0 0.0
    %774 = vmatpush1.msra.mxu0 0.0
    %775 = vmatprep.subr.mxu0 0.0
    %776 = vmatpush1.msra.mxu0 0.0
    %777 = vmatprep.subr.mxu0 0.0
    %778 = vmatpush1.msra.mxu0 0.0
    %779 = vmatprep.subr.mxu0 0.0
    %780 = vmatpush1.msra.mxu0 0.0
    %781 = vmatprep.subr.mxu0 0.0
    %782 = vmatpush1.msra.mxu0 0.0
    %783 = vmatprep.subr.mxu0 0.0
    %784 = vmatpush1.msra.mxu0 0.0
    %785 = vmatprep.subr.mxu0 0.0
    %786 = vmatpush1.msra.mxu0 0.0
    %787 = vmatprep.subr.mxu0 0.0
    %788 = vmatpush1.msra.mxu0 0.0
    %789 = vmatprep.subr.mxu0 0.0
    %790 = vmatpush1.msra.mxu0 0.0
    %791 = vmatprep.subr.mxu0 0.0
    %792 = vmatpush1.msra.mxu0 0.0
    %793 = vmatprep.subr.mxu0 0.0
    %794 = vmatpush1.msra.mxu0 0.0
    %795 = vmatprep.subr.mxu0 0.0
    %796 = vmatpush1.msra.mxu0 0.0
    %797 = vmatprep.mubr.f32.mxu0 0.0
    %798 = vmatmul.mubr.f32.gmra.mrb[0].mxu0 %v731
    %v799 = vpop.f32.mrb[0].mxu0
    %v800 = vadd.f32 0.0, %v799
    %v801 = vpop.f32.mrb[0].mxu0
    %v802 = vadd.f32 0.0, %v801
    %803 = vdwg.mxu0
    %s804 = scalar_lea.vmem [#allocation6], 24
    %v805 = vld [vmem:[%s804] sm:$0xff]
    %v806 = vadd.f32 %v805, %v800
    %v807 = vxor.u32 %v806, 2147483648
    %v808 = vmul.f32 %v807, 1.442695
    %v809 = vpow.pop %v808
    %v810 = vadd.f32 %v809, 1.0
    %v811 = vrcp.pop %v810
    %v812 = vmul.f32 1.0, %v811
    %v813 = vtanh.pop %v806
    %v814 = vmul.f32 %v812, %v697
    %816 = vrot.lane.b32.xlu0 %v813, 64
    %v817 = vpop.permute.xlu0 %816
    %v819 = vmul.f32 %v812, %v817
    %821 = vrot.lane.b32.xlu0 %v819, 32
    %v822 = vpop.permute.xlu0 %821
    %v824 = vadd.f32 %v814, %v822
    %v825 = vtanh.pop %v824
    %827 = vrot.lane.b32.xlu0 %v825, 64
    %v828 = vpop.permute.xlu0 %827
    %v830 = vmul.f32 %v812, %v828
    %s831 = scalar_lea.vmem [#allocation7], 32
    %v832 = vld [vmem:[%s831] sm:$0xff]
    %v833 = vadd.f32 %v832, %v802
    %v834 = vxor.u32 %v833, 2147483648
    %v835 = vmul.f32 %v834, 1.442695
    %v836 = vpow.pop %v835
    %v837 = vadd.f32 %v836, 1.0
    %v838 = vrcp.pop %v837
    %v839 = vmul.f32 1.0, %v838
    %v840 = vtanh.pop %v833
    %v841 = vmul.f32 %v839, %v704
    %843 = vrot.lane.b32.xlu0 %v840, 64
    %v844 = vpop.permute.xlu0 %843
    %v846 = vmul.f32 %v839, %v844
    %848 = vrot.lane.b32.xlu0 %v846, 32
    %v849 = vpop.permute.xlu0 %848
    %v851 = vadd.f32 %v841, %v849
    %v852 = vtanh.pop %v851
    %854 = vrot.lane.b32.xlu0 %v852, 64
    %v855 = vpop.permute.xlu0 %854
    %v857 = vmul.f32 %v839, %v855
    %v858 = vstv %s719
    %vm859 = vcmp.lt.s32.totalorder %v858, %v174
    %v860 = vstv %s720
    %vm861 = vcmp.lt.s32.totalorder %v860, %v174
    %v862 = vsel %vm859, 1, 0
    %863 = vset.pattern.permute.xlu0 0
    %864 = vperm.xlu0 %863, %v862
    %v865 = vpop.permute.xlu0 %864
    %vm866 = vcmp.eq.s32.totalorder %v865, 1
    %v867 = vsel %vm866, %v830, %v696
    %v868 = vsel %vm866, %v824, %v697
    %v869 = vsel %vm861, 1, 0
    %870 = vset.pattern.permute.xlu0 0
    %871 = vperm.xlu0 %870, %v869
    %v872 = vpop.permute.xlu0 %871
    %vm873 = vcmp.eq.s32.totalorder %v872, 1
    %v874 = vsel %vm873, %v857, %v703
    %v875 = vsel %vm873, %v851, %v704
    %v876 = vsel %vm866, %v830, 0.0
    %878 = vrot.lane.b32.xlu0 %v876, 32
    %v879 = vpop.permute.xlu0 %878
    %s881 = scalar_lea.vmem %s4, 24
    %882 = vst.msk [vmem:[%s881] sm:$0xff] %vm201, %v879
    %v883 = vsel %vm873, %v857, 0.0
    %885 = vrot.lane.b32.xlu0 %v883, 32
    %v886 = vpop.permute.xlu0 %885
    %s888 = scalar_lea.vmem %s162, 32
    %889 = vst.msk [vmem:[%s888] sm:$0xff] %vm201, %v886
    %s890 = sadd.s32 %s195, 4
    %s891 = ssub.s32 3, %s195
    %893 = vrot.lane.b32.xlu0 %v867, 32
    %v894 = vpop.permute.xlu0 %893
    %897 = vrot.lane.b32.xlu0 %v874, 64
    %v898 = vpop.permute.xlu0 %897
    %v900 = vsel %vm201, %v894, %v898
    %v902 = vsel %vm203, %v900, 0
    %904 = vmatprep.subr.mxu0 %v176
    %905 = vmatpush1.msra.mxu0 %v175
    %906 = vmatprep.subr.mxu0 %v178
    %907 = vmatpush1.msra.mxu0 %v177
    %908 = vmatprep.subr.mxu0 %v180
    %909 = vmatpush1.msra.mxu0 %v179
    %910 = vmatprep.subr.mxu0 %v182
    %911 = vmatpush1.msra.mxu0 %v181
    %912 = vmatprep.subr.mxu0 %v184
    %913 = vmatpush1.msra.mxu0 %v183
    %914 = vmatprep.subr.mxu0 %v186
    %915 = vmatpush1.msra.mxu0 %v185
    %916 = vmatprep.subr.mxu0 %v188
    %917 = vmatpush1.msra.mxu0 %v187
    %918 = vmatprep.subr.mxu0 %v190
    %919 = vmatpush1.msra.mxu0 %v189
    %920 = vmatprep.subr.mxu0 0.0
    %921 = vmatpush1.msra.mxu0 0.0
    %922 = vmatprep.subr.mxu0 0.0
    %923 = vmatpush1.msra.mxu0 0.0
    %924 = vmatprep.subr.mxu0 0.0
    %925 = vmatpush1.msra.mxu0 0.0
    %926 = vmatprep.subr.mxu0 0.0
    %927 = vmatpush1.msra.mxu0 0.0
    %928 = vmatprep.subr.mxu0 0.0
    %929 = vmatpush1.msra.mxu0 0.0
    %930 = vmatprep.subr.mxu0 0.0
    %931 = vmatpush1.msra.mxu0 0.0
    %932 = vmatprep.subr.mxu0 0.0
    %933 = vmatpush1.msra.mxu0 0.0
    %934 = vmatprep.subr.mxu0 0.0
    %935 = vmatpush1.msra.mxu0 0.0
    %936 = vmatprep.subr.mxu0 0.0
    %937 = vmatpush1.msra.mxu0 0.0
    %938 = vmatprep.subr.mxu0 0.0
    %939 = vmatpush1.msra.mxu0 0.0
    %940 = vmatprep.subr.mxu0 0.0
    %941 = vmatpush1.msra.mxu0 0.0
    %942 = vmatprep.subr.mxu0 0.0
    %943 = vmatpush1.msra.mxu0 0.0
    %944 = vmatprep.subr.mxu0 0.0
    %945 = vmatpush1.msra.mxu0 0.0
    %946 = vmatprep.subr.mxu0 0.0
    %947 = vmatpush1.msra.mxu0 0.0
    %948 = vmatprep.subr.mxu0 0.0
    %949 = vmatpush1.msra.mxu0 0.0
    %950 = vmatprep.subr.mxu0 0.0
    %951 = vmatpush1.msra.mxu0 0.0
    %952 = vmatprep.subr.mxu0 0.0
    %953 = vmatpush1.msra.mxu0 0.0
    %954 = vmatprep.subr.mxu0 0.0
    %955 = vmatpush1.msra.mxu0 0.0
    %956 = vmatprep.subr.mxu0 0.0
    %957 = vmatpush1.msra.mxu0 0.0
    %958 = vmatprep.subr.mxu0 0.0
    %959 = vmatpush1.msra.mxu0 0.0
    %960 = vmatprep.subr.mxu0 0.0
    %961 = vmatpush1.msra.mxu0 0.0
    %962 = vmatprep.subr.mxu0 0.0
    %963 = vmatpush1.msra.mxu0 0.0
    %964 = vmatprep.subr.mxu0 0.0
    %965 = vmatpush1.msra.mxu0 0.0
    %966 = vmatprep.subr.mxu0 0.0
    %967 = vmatpush1.msra.mxu0 0.0
    %968 = vmatprep.mubr.f32.mxu0 0.0
    %969 = vmatmul.mubr.f32.gmra.mrb[0].mxu0 %v902
    %v970 = vpop.f32.mrb[0].mxu0
    %v971 = vadd.f32 0.0, %v970
    %v972 = vpop.f32.mrb[0].mxu0
    %v973 = vadd.f32 0.0, %v972
    %974 = vdwg.mxu0
    %s975 = scalar_lea.vmem [#allocation6], 32
    %v976 = vld [vmem:[%s975] sm:$0xff]
    %v977 = vadd.f32 %v976, %v971
    %v978 = vxor.u32 %v977, 2147483648
    %v979 = vmul.f32 %v978, 1.442695
    %v980 = vpow.pop %v979
    %v981 = vadd.f32 %v980, 1.0
    %v982 = vrcp.pop %v981
    %v983 = vmul.f32 1.0, %v982
    %v984 = vtanh.pop %v977
    %v985 = vmul.f32 %v983, %v868
    %987 = vrot.lane.b32.xlu0 %v984, 64
    %v988 = vpop.permute.xlu0 %987
    %v990 = vmul.f32 %v983, %v988
    %992 = vrot.lane.b32.xlu0 %v990, 32
    %v993 = vpop.permute.xlu0 %992
    %v995 = vadd.f32 %v985, %v993
    %v996 = vtanh.pop %v995
    %998 = vrot.lane.b32.xlu0 %v996, 64
    %v999 = vpop.permute.xlu0 %998
    %v1001 = vmul.f32 %v983, %v999
    %s1002 = scalar_lea.vmem [#allocation7], 24
    %v1003 = vld [vmem:[%s1002] sm:$0xff]
    %v1004 = vadd.f32 %v1003, %v973
    %v1005 = vxor.u32 %v1004, 2147483648
    %v1006 = vmul.f32 %v1005, 1.442695
    %v1007 = vpow.pop %v1006
    %v1008 = vadd.f32 %v1007, 1.0
    %v1009 = vrcp.pop %v1008
    %v1010 = vmul.f32 1.0, %v1009
    %v1011 = vtanh.pop %v1004
    %v1012 = vmul.f32 %v1010, %v875
    %1014 = vrot.lane.b32.xlu0 %v1011, 64
    %v1015 = vpop.permute.xlu0 %1014
    %v1017 = vmul.f32 %v1010, %v1015
    %1019 = vrot.lane.b32.xlu0 %v1017, 32
    %v1020 = vpop.permute.xlu0 %1019
    %v1022 = vadd.f32 %v1012, %v1020
    %v1023 = vtanh.pop %v1022
    %1025 = vrot.lane.b32.xlu0 %v1023, 64
    %v1026 = vpop.permute.xlu0 %1025
    %v1028 = vmul.f32 %v1010, %v1026
    %v1029 = vstv %s890
    %vm1030 = vcmp.lt.s32.totalorder %v1029, %v174
    %v1031 = vstv %s891
    %vm1032 = vcmp.lt.s32.totalorder %v1031, %v174
    %v1033 = vsel %vm1030, 1, 0
    %1034 = vset.pattern.permute.xlu0 0
    %1035 = vperm.xlu0 %1034, %v1033
    %v1036 = vpop.permute.xlu0 %1035
    %vm1037 = vcmp.eq.s32.totalorder %v1036, 1
    %v1038 = vsel %vm1037, %v1001, %v867
    %v1039 = vsel %vm1037, %v995, %v868
    %v1040 = vsel %vm1032, 1, 0
    %1041 = vset.pattern.permute.xlu0 0
    %1042 = vperm.xlu0 %1041, %v1040
    %v1043 = vpop.permute.xlu0 %1042
    %vm1044 = vcmp.eq.s32.totalorder %v1043, 1
    %v1045 = vsel %vm1044, %v1028, %v874
    %v1046 = vsel %vm1044, %v1022, %v875
    %v1047 = vsel %vm1037, %v1001, 0.0
    %1049 = vrot.lane.b32.xlu0 %v1047, 32
    %v1050 = vpop.permute.xlu0 %1049
    %s1052 = scalar_lea.vmem %s4, 32
    %1053 = vst.msk [vmem:[%s1052] sm:$0xff] %vm201, %v1050
    %v1054 = vsel %vm1044, %v1028, 0.0
    %1056 = vrot.lane.b32.xlu0 %v1054, 32
    %v1057 = vpop.permute.xlu0 %1056
    %s1059 = scalar_lea.vmem %s162, 24
    %1060 = vst.msk [vmem:[%s1059] sm:$0xff] %vm201, %v1057
    %s1061 = sadd.s32 %s195, 5
    %s1062 = ssub.s32 2, %s195
    %1064 = vrot.lane.b32.xlu0 %v1038, 32
    %v1065 = vpop.permute.xlu0 %1064
    %1068 = vrot.lane.b32.xlu0 %v1045, 64
    %v1069 = vpop.permute.xlu0 %1068
    %v1071 = vsel %vm201, %v1065, %v1069
    %v1073 = vsel %vm203, %v1071, 0
    %1075 = vmatprep.subr.mxu0 %v176
    %1076 = vmatpush1.msra.mxu0 %v175
    %1077 = vmatprep.subr.mxu0 %v178
    %1078 = vmatpush1.msra.mxu0 %v177
    %1079 = vmatprep.subr.mxu0 %v180
    %1080 = vmatpush1.msra.mxu0 %v179
    %1081 = vmatprep.subr.mxu0 %v182
    %1082 = vmatpush1.msra.mxu0 %v181
    %1083 = vmatprep.subr.mxu0 %v184
    %1084 = vmatpush1.msra.mxu0 %v183
    %1085 = vmatprep.subr.mxu0 %v186
    %1086 = vmatpush1.msra.mxu0 %v185
    %1087 = vmatprep.subr.mxu0 %v188
    %1088 = vmatpush1.msra.mxu0 %v187
    %1089 = vmatprep.subr.mxu0 %v190
    %1090 = vmatpush1.msra.mxu0 %v189
    %1091 = vmatprep.subr.mxu0 0.0
    %1092 = vmatpush1.msra.mxu0 0.0
    %1093 = vmatprep.subr.mxu0 0.0
    %1094 = vmatpush1.msra.mxu0 0.0
    %1095 = vmatprep.subr.mxu0 0.0
    %1096 = vmatpush1.msra.mxu0 0.0
    %1097 = vmatprep.subr.mxu0 0.0
    %1098 = vmatpush1.msra.mxu0 0.0
    %1099 = vmatprep.subr.mxu0 0.0
    %1100 = vmatpush1.msra.mxu0 0.0
    %1101 = vmatprep.subr.mxu0 0.0
    %1102 = vmatpush1.msra.mxu0 0.0
    %1103 = vmatprep.subr.mxu0 0.0
    %1104 = vmatpush1.msra.mxu0 0.0
    %1105 = vmatprep.subr.mxu0 0.0
    %1106 = vmatpush1.msra.mxu0 0.0
    %1107 = vmatprep.subr.mxu0 0.0
    %1108 = vmatpush1.msra.mxu0 0.0
    %1109 = vmatprep.subr.mxu0 0.0
    %1110 = vmatpush1.msra.mxu0 0.0
    %1111 = vmatprep.subr.mxu0 0.0
    %1112 = vmatpush1.msra.mxu0 0.0
    %1113 = vmatprep.subr.mxu0 0.0
    %1114 = vmatpush1.msra.mxu0 0.0
    %1115 = vmatprep.subr.mxu0 0.0
    %1116 = vmatpush1.msra.mxu0 0.0
    %1117 = vmatprep.subr.mxu0 0.0
    %1118 = vmatpush1.msra.mxu0 0.0
    %1119 = vmatprep.subr.mxu0 0.0
    %1120 = vmatpush1.msra.mxu0 0.0
    %1121 = vmatprep.subr.mxu0 0.0
    %1122 = vmatpush1.msra.mxu0 0.0
    %1123 = vmatprep.subr.mxu0 0.0
    %1124 = vmatpush1.msra.mxu0 0.0
    %1125 = vmatprep.subr.mxu0 0.0
    %1126 = vmatpush1.msra.mxu0 0.0
    %1127 = vmatprep.subr.mxu0 0.0
    %1128 = vmatpush1.msra.mxu0 0.0
    %1129 = vmatprep.subr.mxu0 0.0
    %1130 = vmatpush1.msra.mxu0 0.0
    %1131 = vmatprep.subr.mxu0 0.0
    %1132 = vmatpush1.msra.mxu0 0.0
    %1133 = vmatprep.subr.mxu0 0.0
    %1134 = vmatpush1.msra.mxu0 0.0
    %1135 = vmatprep.subr.mxu0 0.0
    %1136 = vmatpush1.msra.mxu0 0.0
    %1137 = vmatprep.subr.mxu0 0.0
    %1138 = vmatpush1.msra.mxu0 0.0
    %1139 = vmatprep.mubr.f32.mxu0 0.0
    %1140 = vmatmul.mubr.f32.gmra.mrb[0].mxu0 %v1073
    %v1141 = vpop.f32.mrb[0].mxu0
    %v1142 = vadd.f32 0.0, %v1141
    %v1143 = vpop.f32.mrb[0].mxu0
    %v1144 = vadd.f32 0.0, %v1143
    %1145 = vdwg.mxu0
    %s1146 = scalar_lea.vmem [#allocation6], 40
    %v1147 = vld [vmem:[%s1146] sm:$0xff]
    %v1148 = vadd.f32 %v1147, %v1142
    %v1149 = vxor.u32 %v1148, 2147483648
    %v1150 = vmul.f32 %v1149, 1.442695
    %v1151 = vpow.pop %v1150
    %v1152 = vadd.f32 %v1151, 1.0
    %v1153 = vrcp.pop %v1152
    %v1154 = vmul.f32 1.0, %v1153
    %v1155 = vtanh.pop %v1148
    %v1156 = vmul.f32 %v1154, %v1039
    %1158 = vrot.lane.b32.xlu0 %v1155, 64
    %v1159 = vpop.permute.xlu0 %1158
    %v1161 = vmul.f32 %v1154, %v1159
    %1163 = vrot.lane.b32.xlu0 %v1161, 32
    %v1164 = vpop.permute.xlu0 %1163
    %v1166 = vadd.f32 %v1156, %v1164
    %v1167 = vtanh.pop %v1166
    %1169 = vrot.lane.b32.xlu0 %v1167, 64
    %v1170 = vpop.permute.xlu0 %1169
    %v1172 = vmul.f32 %v1154, %v1170
    %s1173 = scalar_lea.vmem [#allocation7], 16
    %v1174 = vld [vmem:[%s1173] sm:$0xff]
    %v1175 = vadd.f32 %v1174, %v1144
    %v1176 = vxor.u32 %v1175, 2147483648
    %v1177 = vmul.f32 %v1176, 1.442695
    %v1178 = vpow.pop %v1177
    %v1179 = vadd.f32 %v1178, 1.0
    %v1180 = vrcp.pop %v1179
    %v1181 = vmul.f32 1.0, %v1180
    %v1182 = vtanh.pop %v1175
    %v1183 = vmul.f32 %v1181, %v1046
    %1185 = vrot.lane.b32.xlu0 %v1182, 64
    %v1186 = vpop.permute.xlu0 %1185
    %v1188 = vmul.f32 %v1181, %v1186
    %1190 = vrot.lane.b32.xlu0 %v1188, 32
    %v1191 = vpop.permute.xlu0 %1190
    %v1193 = vadd.f32 %v1183, %v1191
    %v1194 = vtanh.pop %v1193
    %1196 = vrot.lane.b32.xlu0 %v1194, 64
    %v1197 = vpop.permute.xlu0 %1196
    %v1199 = vmul.f32 %v1181, %v1197
    %v1200 = vstv %s1061
    %vm1201 = vcmp.lt.s32.totalorder %v1200, %v174
    %v1202 = vstv %s1062
    %vm1203 = vcmp.lt.s32.totalorder %v1202, %v174
    %v1204 = vsel %vm1201, 1, 0
    %1205 = vset.pattern.permute.xlu0 0
    %1206 = vperm.xlu0 %1205, %v1204
    %v1207 = vpop.permute.xlu0 %1206
    %vm1208 = vcmp.eq.s32.totalorder %v1207, 1
    %v1209 = vsel %vm1208, %v1172, %v1038
    %v1210 = vsel %vm1208, %v1166, %v1039
    %v1211 = vsel %vm1203, 1, 0
    %1212 = vset.pattern.permute.xlu0 0
    %1213 = vperm.xlu0 %1212, %v1211
    %v1214 = vpop.permute.xlu0 %1213
    %vm1215 = vcmp.eq.s32.totalorder %v1214, 1
    %v1216 = vsel %vm1215, %v1199, %v1045
    %v1217 = vsel %vm1215, %v1193, %v1046
    %v1218 = vsel %vm1208, %v1172, 0.0
    %1220 = vrot.lane.b32.xlu0 %v1218, 32
    %v1221 = vpop.permute.xlu0 %1220
    %s1223 = scalar_lea.vmem %s4, 40
    %1224 = vst.msk [vmem:[%s1223] sm:$0xff] %vm201, %v1221
    %v1225 = vsel %vm1215, %v1199, 0.0
    %1227 = vrot.lane.b32.xlu0 %v1225, 32
    %v1228 = vpop.permute.xlu0 %1227
    %s1230 = scalar_lea.vmem %s162, 16
    %1231 = vst.msk [vmem:[%s1230] sm:$0xff] %vm201, %v1228
    %s1232 = sadd.s32 %s195, 6
    %s1233 = ssub.s32 1, %s195
    %1235 = vrot.lane.b32.xlu0 %v1209, 32
    %v1236 = vpop.permute.xlu0 %1235
    %1239 = vrot.lane.b32.xlu0 %v1216, 64
    %v1240 = vpop.permute.xlu0 %1239
    %v1242 = vsel %vm201, %v1236, %v1240
    %v1244 = vsel %vm203, %v1242, 0
    %1246 = vmatprep.subr.mxu0 %v176
    %1247 = vmatpush1.msra.mxu0 %v175
    %1248 = vmatprep.subr.mxu0 %v178
    %1249 = vmatpush1.msra.mxu0 %v177
    %1250 = vmatprep.subr.mxu0 %v180
    %1251 = vmatpush1.msra.mxu0 %v179
    %1252 = vmatprep.subr.mxu0 %v182
    %1253 = vmatpush1.msra.mxu0 %v181
    %1254 = vmatprep.subr.mxu0 %v184
    %1255 = vmatpush1.msra.mxu0 %v183
    %1256 = vmatprep.subr.mxu0 %v186
    %1257 = vmatpush1.msra.mxu0 %v185
    %1258 = vmatprep.subr.mxu0 %v188
    %1259 = vmatpush1.msra.mxu0 %v187
    %1260 = vmatprep.subr.mxu0 %v190
    %1261 = vmatpush1.msra.mxu0 %v189
    %1262 = vmatprep.subr.mxu0 0.0
    %1263 = vmatpush1.msra.mxu0 0.0
    %1264 = vmatprep.subr.mxu0 0.0
    %1265 = vmatpush1.msra.mxu0 0.0
    %1266 = vmatprep.subr.mxu0 0.0
    %1267 = vmatpush1.msra.mxu0 0.0
    %1268 = vmatprep.subr.mxu0 0.0
    %1269 = vmatpush1.msra.mxu0 0.0
    %1270 = vmatprep.subr.mxu0 0.0
    %1271 = vmatpush1.msra.mxu0 0.0
    %1272 = vmatprep.subr.mxu0 0.0
    %1273 = vmatpush1.msra.mxu0 0.0
    %1274 = vmatprep.subr.mxu0 0.0
    %1275 = vmatpush1.msra.mxu0 0.0
    %1276 = vmatprep.subr.mxu0 0.0
    %1277 = vmatpush1.msra.mxu0 0.0
    %1278 = vmatprep.subr.mxu0 0.0
    %1279 = vmatpush1.msra.mxu0 0.0
    %1280 = vmatprep.subr.mxu0 0.0
    %1281 = vmatpush1.msra.mxu0 0.0
    %1282 = vmatprep.subr.mxu0 0.0
    %1283 = vmatpush1.msra.mxu0 0.0
    %1284 = vmatprep.subr.mxu0 0.0
    %1285 = vmatpush1.msra.mxu0 0.0
    %1286 = vmatprep.subr.mxu0 0.0
    %1287 = vmatpush1.msra.mxu0 0.0
    %1288 = vmatprep.subr.mxu0 0.0
    %1289 = vmatpush1.msra.mxu0 0.0
    %1290 = vmatprep.subr.mxu0 0.0
    %1291 = vmatpush1.msra.mxu0 0.0
    %1292 = vmatprep.subr.mxu0 0.0
    %1293 = vmatpush1.msra.mxu0 0.0
    %1294 = vmatprep.subr.mxu0 0.0
    %1295 = vmatpush1.msra.mxu0 0.0
    %1296 = vmatprep.subr.mxu0 0.0
    %1297 = vmatpush1.msra.mxu0 0.0
    %1298 = vmatprep.subr.mxu0 0.0
    %1299 = vmatpush1.msra.mxu0 0.0
    %1300 = vmatprep.subr.mxu0 0.0
    %1301 = vmatpush1.msra.mxu0 0.0
    %1302 = vmatprep.subr.mxu0 0.0
    %1303 = vmatpush1.msra.mxu0 0.0
    %1304 = vmatprep.subr.mxu0 0.0
    %1305 = vmatpush1.msra.mxu0 0.0
    %1306 = vmatprep.subr.mxu0 0.0
    %1307 = vmatpush1.msra.mxu0 0.0
    %1308 = vmatprep.subr.mxu0 0.0
    %1309 = vmatpush1.msra.mxu0 0.0
    %1310 = vmatprep.mubr.f32.mxu0 0.0
    %1311 = vmatmul.mubr.f32.gmra.mrb[0].mxu0 %v1244
    %v1312 = vpop.f32.mrb[0].mxu0
    %v1313 = vadd.f32 0.0, %v1312
    %v1314 = vpop.f32.mrb[0].mxu0
    %v1315 = vadd.f32 0.0, %v1314
    %1316 = vdwg.mxu0
    %s1317 = scalar_lea.vmem [#allocation6], 48
    %v1318 = vld [vmem:[%s1317] sm:$0xff]
    %v1319 = vadd.f32 %v1318, %v1313
    %v1320 = vxor.u32 %v1319, 2147483648
    %v1321 = vmul.f32 %v1320, 1.442695
    %v1322 = vpow.pop %v1321
    %v1323 = vadd.f32 %v1322, 1.0
    %v1324 = vrcp.pop %v1323
    %v1325 = vmul.f32 1.0, %v1324
    %v1326 = vtanh.pop %v1319
    %v1327 = vmul.f32 %v1325, %v1210
    %1329 = vrot.lane.b32.xlu0 %v1326, 64
    %v1330 = vpop.permute.xlu0 %1329
    %v1332 = vmul.f32 %v1325, %v1330
    %1334 = vrot.lane.b32.xlu0 %v1332, 32
    %v1335 = vpop.permute.xlu0 %1334
    %v1337 = vadd.f32 %v1327, %v1335
    %v1338 = vtanh.pop %v1337
    %1340 = vrot.lane.b32.xlu0 %v1338, 64
    %v1341 = vpop.permute.xlu0 %1340
    %v1343 = vmul.f32 %v1325, %v1341
    %s1344 = scalar_lea.vmem [#allocation7], 8
    %v1345 = vld [vmem:[%s1344] sm:$0xff]
    %v1346 = vadd.f32 %v1345, %v1315
    %v1347 = vxor.u32 %v1346, 2147483648
    %v1348 = vmul.f32 %v1347, 1.442695
    %v1349 = vpow.pop %v1348
    %v1350 = vadd.f32 %v1349, 1.0
    %v1351 = vrcp.pop %v1350
    %v1352 = vmul.f32 1.0, %v1351
    %v1353 = vtanh.pop %v1346
    %v1354 = vmul.f32 %v1352, %v1217
    %1356 = vrot.lane.b32.xlu0 %v1353, 64
    %v1357 = vpop.permute.xlu0 %1356
    %v1359 = vmul.f32 %v1352, %v1357
    %1361 = vrot.lane.b32.xlu0 %v1359, 32
    %v1362 = vpop.permute.xlu0 %1361
    %v1364 = vadd.f32 %v1354, %v1362
    %v1365 = vtanh.pop %v1364
    %1367 = vrot.lane.b32.xlu0 %v1365, 64
    %v1368 = vpop.permute.xlu0 %1367
    %v1370 = vmul.f32 %v1352, %v1368
    %v1371 = vstv %s1232
    %vm1372 = vcmp.lt.s32.totalorder %v1371, %v174
    %v1373 = vstv %s1233
    %vm1374 = vcmp.lt.s32.totalorder %v1373, %v174
    %v1375 = vsel %vm1372, 1, 0
    %1376 = vset.pattern.permute.xlu0 0
    %1377 = vperm.xlu0 %1376, %v1375
    %v1378 = vpop.permute.xlu0 %1377
    %vm1379 = vcmp.eq.s32.totalorder %v1378, 1
    %v1380 = vsel %vm1379, %v1343, %v1209
    %v1381 = vsel %vm1379, %v1337, %v1210
    %v1382 = vsel %vm1374, 1, 0
    %1383 = vset.pattern.permute.xlu0 0
    %1384 = vperm.xlu0 %1383, %v1382
    %v1385 = vpop.permute.xlu0 %1384
    %vm1386 = vcmp.eq.s32.totalorder %v1385, 1
    %v1387 = vsel %vm1386, %v1370, %v1216
    %v1388 = vsel %vm1386, %v1364, %v1217
    %v1389 = vsel %vm1379, %v1343, 0.0
    %1391 = vrot.lane.b32.xlu0 %v1389, 32
    %v1392 = vpop.permute.xlu0 %1391
    %s1394 = scalar_lea.vmem %s4, 48
    %1395 = vst.msk [vmem:[%s1394] sm:$0xff] %vm201, %v1392
    %v1396 = vsel %vm1386, %v1370, 0.0
    %1398 = vrot.lane.b32.xlu0 %v1396, 32
    %v1399 = vpop.permute.xlu0 %1398
    %s1401 = scalar_lea.vmem %s162, 8
    %1402 = vst.msk [vmem:[%s1401] sm:$0xff] %vm201, %v1399
    %s1403 = sadd.s32 %s195, 7
    %s1404 = ssub.s32 0, %s195
    %1406 = vrot.lane.b32.xlu0 %v1380, 32
    %v1407 = vpop.permute.xlu0 %1406
    %1410 = vrot.lane.b32.xlu0 %v1387, 64
    %v1411 = vpop.permute.xlu0 %1410
    %v1413 = vsel %vm201, %v1407, %v1411
    %v1415 = vsel %vm203, %v1413, 0
    %1417 = vmatprep.subr.mxu0 %v176
    %1418 = vmatpush1.msra.mxu0 %v175
    %1419 = vmatprep.subr.mxu0 %v178
    %1420 = vmatpush1.msra.mxu0 %v177
    %1421 = vmatprep.subr.mxu0 %v180
    %1422 = vmatpush1.msra.mxu0 %v179
    %1423 = vmatprep.subr.mxu0 %v182
    %1424 = vmatpush1.msra.mxu0 %v181
    %1425 = vmatprep.subr.mxu0 %v184
    %1426 = vmatpush1.msra.mxu0 %v183
    %1427 = vmatprep.subr.mxu0 %v186
    %1428 = vmatpush1.msra.mxu0 %v185
    %1429 = vmatprep.subr.mxu0 %v188
    %1430 = vmatpush1.msra.mxu0 %v187
    %1431 = vmatprep.subr.mxu0 %v190
    %1432 = vmatpush1.msra.mxu0 %v189
    %1433 = vmatprep.subr.mxu0 0.0
    %1434 = vmatpush1.msra.mxu0 0.0
    %1435 = vmatprep.subr.mxu0 0.0
    %1436 = vmatpush1.msra.mxu0 0.0
    %1437 = vmatprep.subr.mxu0 0.0
    %1438 = vmatpush1.msra.mxu0 0.0
    %1439 = vmatprep.subr.mxu0 0.0
    %1440 = vmatpush1.msra.mxu0 0.0
    %1441 = vmatprep.subr.mxu0 0.0
    %1442 = vmatpush1.msra.mxu0 0.0
    %1443 = vmatprep.subr.mxu0 0.0
    %1444 = vmatpush1.msra.mxu0 0.0
    %1445 = vmatprep.subr.mxu0 0.0
    %1446 = vmatpush1.msra.mxu0 0.0
    %1447 = vmatprep.subr.mxu0 0.0
    %1448 = vmatpush1.msra.mxu0 0.0
    %1449 = vmatprep.subr.mxu0 0.0
    %1450 = vmatpush1.msra.mxu0 0.0
    %1451 = vmatprep.subr.mxu0 0.0
    %1452 = vmatpush1.msra.mxu0 0.0
    %1453 = vmatprep.subr.mxu0 0.0
    %1454 = vmatpush1.msra.mxu0 0.0
    %1455 = vmatprep.subr.mxu0 0.0
    %1456 = vmatpush1.msra.mxu0 0.0
    %1457 = vmatprep.subr.mxu0 0.0
    %1458 = vmatpush1.msra.mxu0 0.0
    %1459 = vmatprep.subr.mxu0 0.0
    %1460 = vmatpush1.msra.mxu0 0.0
    %1461 = vmatprep.subr.mxu0 0.0
    %1462 = vmatpush1.msra.mxu0 0.0
    %1463 = vmatprep.subr.mxu0 0.0
    %1464 = vmatpush1.msra.mxu0 0.0
    %1465 = vmatprep.subr.mxu0 0.0
    %1466 = vmatpush1.msra.mxu0 0.0
    %1467 = vmatprep.subr.mxu0 0.0
    %1468 = vmatpush1.msra.mxu0 0.0
    %1469 = vmatprep.subr.mxu0 0.0
    %1470 = vmatpush1.msra.mxu0 0.0
    %1471 = vmatprep.subr.mxu0 0.0
    %1472 = vmatpush1.msra.mxu0 0.0
    %1473 = vmatprep.subr.mxu0 0.0
    %1474 = vmatpush1.msra.mxu0 0.0
    %1475 = vmatprep.subr.mxu0 0.0
    %1476 = vmatpush1.msra.mxu0 0.0
    %1477 = vmatprep.subr.mxu0 0.0
    %1478 = vmatpush1.msra.mxu0 0.0
    %1479 = vmatprep.subr.mxu0 0.0
    %1480 = vmatpush1.msra.mxu0 0.0
    %1481 = vmatprep.mubr.f32.mxu0 0.0
    %1482 = vmatmul.mubr.f32.gmra.mrb[0].mxu0 %v1415
    %v1483 = vpop.f32.mrb[0].mxu0
    %v1484 = vadd.f32 0.0, %v1483
    %v1485 = vpop.f32.mrb[0].mxu0
    %v1486 = vadd.f32 0.0, %v1485
    %1487 = vdwg.mxu0
    %s1488 = scalar_lea.vmem [#allocation6], 56
    %v1489 = vld [vmem:[%s1488] sm:$0xff]
    %v1490 = vadd.f32 %v1489, %v1484
    %v1491 = vxor.u32 %v1490, 2147483648
    %v1492 = vmul.f32 %v1491, 1.442695
    %v1493 = vpow.pop %v1492
    %v1494 = vadd.f32 %v1493, 1.0
    %v1495 = vrcp.pop %v1494
    %v1496 = vmul.f32 1.0, %v1495
    %v1497 = vtanh.pop %v1490
    %v1498 = vmul.f32 %v1496, %v1381
    %1500 = vrot.lane.b32.xlu0 %v1497, 64
    %v1501 = vpop.permute.xlu0 %1500
    %v1503 = vmul.f32 %v1496, %v1501
    %1505 = vrot.lane.b32.xlu0 %v1503, 32
    %v1506 = vpop.permute.xlu0 %1505
    %v1508 = vadd.f32 %v1498, %v1506
    %v1509 = vtanh.pop %v1508
    %1511 = vrot.lane.b32.xlu0 %v1509, 64
    %v1512 = vpop.permute.xlu0 %1511
    %v1514 = vmul.f32 %v1496, %v1512
    %v1515 = vld [vmem:[#allocation7] sm:$0xff]
    %v1516 = vadd.f32 %v1515, %v1486
    %v1517 = vxor.u32 %v1516, 2147483648
    %v1518 = vmul.f32 %v1517, 1.442695
    %v1519 = vpow.pop %v1518
    %v1520 = vadd.f32 %v1519, 1.0
    %v1521 = vrcp.pop %v1520
    %v1522 = vmul.f32 1.0, %v1521
    %v1523 = vtanh.pop %v1516
    %v1524 = vmul.f32 %v1522, %v1388
    %1526 = vrot.lane.b32.xlu0 %v1523, 64
    %v1527 = vpop.permute.xlu0 %1526
    %v1529 = vmul.f32 %v1522, %v1527
    %1531 = vrot.lane.b32.xlu0 %v1529, 32
    %v1532 = vpop.permute.xlu0 %1531
    %v1534 = vadd.f32 %v1524, %v1532
    %v1535 = vtanh.pop %v1534
    %1537 = vrot.lane.b32.xlu0 %v1535, 64
    %v1538 = vpop.permute.xlu0 %1537
    %v1540 = vmul.f32 %v1522, %v1538
    %v1541 = vstv %s1403
    %vm1542 = vcmp.lt.s32.totalorder %v1541, %v174
    %v1543 = vstv %s1404
    %vm1544 = vcmp.lt.s32.totalorder %v1543, %v174
    %v1545 = vsel %vm1542, 1, 0
    %1546 = vset.pattern.permute.xlu0 0
    %1547 = vperm.xlu0 %1546, %v1545
    %v1548 = vpop.permute.xlu0 %1547
    %vm1549 = vcmp.eq.s32.totalorder %v1548, 1
    %v1550 = vsel %vm1549, %v1514, %v1380
    %v1551 = vsel %vm1549, %v1508, %v1381
    %v1552 = vsel %vm1544, 1, 0
    %1553 = vset.pattern.permute.xlu0 0
    %1554 = vperm.xlu0 %1553, %v1552
    %v1555 = vpop.permute.xlu0 %1554
    %vm1556 = vcmp.eq.s32.totalorder %v1555, 1
    %v1557 = vsel %vm1556, %v1540, %v1387
    %v1558 = vsel %vm1556, %v1534, %v1388
    %v1559 = vsel %vm1549, %v1514, 0.0
    %1561 = vrot.lane.b32.xlu0 %v1559, 32
    %v1562 = vpop.permute.xlu0 %1561
    %s1564 = scalar_lea.vmem %s4, 56
    %1565 = vst.msk [vmem:[%s1564] sm:$0xff] %vm201, %v1562
    %v1566 = vsel %vm1556, %v1540, 0.0
    %1568 = vrot.lane.b32.xlu0 %v1566, 32
    %v1569 = vpop.permute.xlu0 %1568
    %1571 = vst.msk [vmem:[%s162] sm:$0xff] %vm201, %v1569
    %1573 = vrot.lane.b32.xlu0 %v1550, 32
    %v1574 = vpop.permute.xlu0 %1573
    %1576 = vst.msk [vmem:[#allocation2] sm:$0xff] %vm201, %v1574
    %1578 = vrot.lane.b32.xlu0 %v1551, 96
    %v1579 = vpop.permute.xlu0 %1578
    %1581 = vst.msk [vmem:[#allocation3] sm:$0xff] %vm201, %v1579
    %1583 = vrot.lane.b32.xlu0 %v1557, 32
    %v1584 = vpop.permute.xlu0 %1583
    %1586 = vst.msk [vmem:[#allocation4] sm:$0xff] %vm201, %v1584
    %1588 = vrot.lane.b32.xlu0 %v1558, 96
    %v1589 = vpop.permute.xlu0 %1588
    %1591 = vst.msk [vmem:[#allocation5] sm:$0xff] %vm201, %v1589
    %s1592 = ssub.s32 0, 0
    %s1593 = smul.u32 8, %s1592
    %p1594 = scmp.lt.s32.totalorder %s1593, 7
    %s1595 = scalar_select %p1594, %s1593, 7
    %s1596 = smul.addr %s1595, 8
    %s1597 = scalar_lea.vmem %s5, %s1596
    // Predicated region
    $region98: #{_lambda_.4} parent=1 // pred_check
      _
    $region99: #{_lambda_.4} parent=1 // pred_check_branch
      %1599 = sbr.rel (0) target = $region101
    $region100: #{_lambda_.4} parent=1 // pred_region
      _
    $region101: #{_lambda_.4} parent=1 // pred_fallthru
      _
    // Predicated region
    $region102: #{_lambda_.4} parent=1 // pred_check
      _
    $region103: #{_lambda_.4} parent=1 // pred_check_branch
      %1601 = sbr.rel (0) target = $region105
    $region104: #{_lambda_.4} parent=1 // pred_region
      %s1602 = ssub.s32 0, 0
      %s1603 = smul.u32 8, %s1602
    $region105: #{_lambda_.4} parent=1 // pred_fallthru
      _
    // Predicated region
    $region106: #{_lambda_.4} parent=1 // pred_check
      _
    $region107: #{_lambda_.4} parent=1 // pred_check_branch
      %1605 = sbr.rel (0) target = $region109
    $region108: #{_lambda_.4} parent=1 // pred_region
      _
    $region109: #{_lambda_.4} parent=1 // pred_fallthru
      _
    // Predicated region
    $region110: #{_lambda_.4} parent=1 // pred_check
      _
    $region111: #{_lambda_.4} parent=1 // pred_check_branch
      %1607 = sbr.rel (0) target = $region113
    $region112: #{_lambda_.4} parent=1 // pred_region
      %s1608 = ssub.s32 0, 0
      %s1609 = smul.u32 8, %s1608
      %p1610 = scmp.lt.s32.totalorder %s1609, 7
      %s1611 = scalar_select %p1610, %s1609, 7
      %s1612 = smul.addr %s1611, 8
      %s1613 = scalar_lea.vmem %s5, %s1612
    $region113: #{_lambda_.4} parent=1 // pred_fallthru
      _

</llo_original>
